<compile_context>
chip_gen: v7x
topology: tpu7x:2x2x1
jax: 0.10.0
libtpu: 0.0.40
codegen_flags: <defaults>
</compile_context>

<pallas_src>
import functools

import jax
import jax.numpy as jnp
from jax import lax
from jax.experimental import pallas as pl
from jax.experimental.pallas import tpu as pltpu


def _round_up(v, m):
    return ((v + m - 1) // m) * m


def _block_kernel(x_ref, w1_ref, b1_ref, wdw_ref, w2_ref, b2_ref, g_ref,
                  o_ref, hpad_ref, dw_ref, *, W, K, P, TH, WOFF, WP, CC):
    """Computes one (image n, row-tile t) output block.

    x_ref    : (1, 1, THP*W, Cin) f32   halo slab (THP = TH + 2P rows), flattened
    w1_ref   : (Cin, Chid)        bf16  pwconv1 weight with BN scale folded in
    b1_ref   : (1, Chid)          f32   pwconv1 bias with BN folded in
    wdw_ref  : (K*K, Chid)        f32   depthwise weights, (kh, kw) flattened
    w2_ref   : (Chid, Cout)       bf16  pwconv2 weight
    b2_ref   : (1, Cout)          f32   pwconv2 bias (+ dw bias folded through w2)
    g_ref    : (1, Cout)          f32   layer-scale gamma
    o_ref    : (1, 1, TH*W, Cout) f32
    hpad_ref : (THP, WP, Chid)    f32   scratch; data lives in cols [WOFF, WOFF+W)
    dw_ref   : (TH*W, Chid)       f32   scratch; matmul-ready depthwise output
    """
    Chid = w1_ref.shape[-1]
    THP = TH + 2 * P
    NCC = Chid // CC

    t = pl.program_id(1)
    nt = pl.num_programs(1)

    # ---- pwconv1 (1x1 conv == channel matmul, bf16 MXU) + folded BN + ReLU
    xm = x_ref[0, 0]                                              # (THP*W, Cin)
    h = jnp.dot(xm.astype(jnp.bfloat16), w1_ref[...],
                preferred_element_type=jnp.float32)
    h = jnp.maximum(h + b1_ref[...], 0.0)                         # (THP*W, Chid)

    # ---- stage into the padded scratch.  The left/right zero strips persist in
    #      the scratch, so they are written only at t == 0 (t is "arbitrary",
    #      i.e. sequential per core, so every core sees t == 0 first).
    @pl.when(t == 0)
    def _():
        hpad_ref[:, 0:WOFF, :] = jnp.zeros((THP, WOFF, Chid), jnp.float32)
        if WP > WOFF + W:
            hpad_ref[:, WOFF + W:WP, :] = jnp.zeros(
                (THP, WP - WOFF - W, Chid), jnp.float32)

    hpad_ref[:, WOFF:WOFF + W, :] = h.reshape(THP, W, Chid)

    if P > 0:
        @pl.when(t == 0)                     # halo rows above the image -> 0
        def _():
            hpad_ref[0:P, :, :] = jnp.zeros((P, WP, Chid), jnp.float32)

        @pl.when(t == nt - 1)                # halo rows below the image -> 0
        def _():
            hpad_ref[THP - P:THP, :, :] = jnp.zeros((P, WP, Chid), jnp.float32)

    # ---- depthwise KxK conv, stride 1 (dw bias folded into b2 on the host).
    #      kw outer / kh inner: per (row, channel chunk) there are only K XLU
    #      rolls, the (WP, CC) accumulator stays register-resident across all
    #      K*K taps, and the W-window slice + store happen exactly once.
    def row_body(th, carry):
        for ci in range(NCC):                                   # static chunks
            c0 = ci * CC
            acc = jnp.zeros((WP, CC), jnp.float32)
            for kw in range(K):                                 # static, K rolls
                tmp = jnp.zeros((WP, CC), jnp.float32)
                for kh in range(K):                             # static, pure VPU
                    row = hpad_ref[th + kh, :, c0:c0 + CC]      # (WP, CC)
                    tmp = tmp + row * wdw_ref[kh * K + kw, c0:c0 + CC]
                d = kw - P                                      # static shift
                if d != 0:
                    tmp = pltpu.roll(tmp, (-d) % WP, axis=0)
                acc = acc + tmp
            start = th * W
            if W % 8 == 0:
                start = pl.multiple_of(start, 8)
            dw_ref[pl.ds(start, W), c0:c0 + CC] = acc[WOFF:WOFF + W, :]
        return carry

    lax.fori_loop(0, TH, row_body, 0)

    # ---- pwconv2 (1x1, bf16 MXU) + layer-scale + residual
    y = jnp.dot(dw_ref[...].astype(jnp.bfloat16), w2_ref[...],
                preferred_element_type=jnp.float32)
    y = (y + b2_ref[...]) * g_ref[...]
    shortcut = x_ref[0, 0, P * W:(P + TH) * W, :]                # (TH*W, Cin)
    o_ref[0, 0] = y + shortcut


def _vmem_bytes_estimate(TH, W, WP, Cin, Chid, Cout, K, P):
    THP = TH + 2 * P
    f32, bf16 = 4, 2
    xblk = 2 * THP * W * Cin * f32           # double-buffered halo slab
    oblk = 2 * TH * W * Cout * f32           # double-buffered output block
    wgts = 2 * (Cin * Chid * bf16 + Chid * f32 + K * K * Chid * f32
                + Chid * Cout * bf16 + 2 * Cout * f32)
    hpad = THP * WP * Chid * f32             # padded dw input scratch
    dwb = TH * W * Chid * f32                # dw output scratch
    temps = 2 * THP * W * Chid * f32         # pwconv1 result / relu temporaries
    return xblk + oblk + wgts + hpad + dwb + temps


def _pick_row_tile(H, W, WP, Cin, Chid, Cout, K, P, budget_bytes, max_tile=64):
    divs = [d for d in range(1, H + 1) if H % d == 0 and (d == H or d >= P)]
    fits = [d for d in divs
            if _vmem_bytes_estimate(d, W, WP, Cin, Chid, Cout, K, P) <= budget_bytes]
    small_fits = [d for d in fits if d <= max_tile]
    if small_fits:
        return max(small_fits)
    if fits:
        return min(fits)
    return min(divs)


def robust_resnet_dw_inverted_block(x_nchw, params, *, kernel_size=11, padding=5,
                                    bn_eps=1e-5,
                                    vmem_budget_bytes=40 * 1024 * 1024):
    """NCHW in / NCHW out.  drop_path=0, downsample=None, stride=1 (defaults)."""
    w1 = params["w1"].astype(jnp.float32)        # (Cin, Chid)
    b1 = params["b1"].astype(jnp.float32)        # (Chid,)
    bn_w = params["bn_w"].astype(jnp.float32)
    bn_b = params["bn_b"].astype(jnp.float32)
    bn_mean = params["bn_mean"].astype(jnp.float32)
    bn_var = params["bn_var"].astype(jnp.float32)
    wdw = params["wdw"].astype(jnp.float32)      # (K, K, Chid)
    bdw = params["bdw"].astype(jnp.float32)      # (Chid,)
    w2 = params["w2"].astype(jnp.float32)        # (Chid, Cout)
    b2 = params["b2"].astype(jnp.float32)        # (Cout,)
    gamma = params["gamma"].astype(jnp.float32)  # (Cout,)

    N, C, H, W = x_nchw.shape
    Chid = w1.shape[1]
    Cout = w2.shape[1]
    K, P = kernel_size, padding
    assert C == Cout, "residual add requires indim == dim"
    assert K == 2 * P + 1, "halo/roll geometry assumes a 'same' depthwise conv"
    assert wdw.shape == (K, K, Chid)

    # ---- host-side constant folding (once, outside the hot loop)
    # TODO(synk): training-mode BatchNorm (batch statistics), DropPath and the
    #             optional downsample / stride != 1 path are not implemented.
    bn_scale = bn_w / jnp.sqrt(bn_var + bn_eps)
    bn_shift = bn_b - bn_mean * bn_scale
    w1f = (w1 * bn_scale[None, :]).astype(jnp.bfloat16)      # BN scale into w1
    b1f = (b1 * bn_scale + bn_shift).reshape(1, Chid)        # BN into conv1 bias
    b2f = (b2 + bdw @ w2).reshape(1, Cout)                   # dw bias through w2
    w2f = w2.astype(jnp.bfloat16)
    gmf = gamma.reshape(1, Cout)
    wdw2 = wdw.reshape(K * K, Chid)

    # ---- geometry: aligned data column offset + padded scratch width, then the
    #      largest row tile (divisor of H, <= 64) that fits the VMEM budget.
    WOFF = _round_up(P, 8)                                   # aligned data column
    WP = _round_up(WOFF + W + P, 8)                          # padded scratch width
    TH = _pick_row_tile(H, W, WP, C, Chid, Cout, K, P, vmem_budget_bytes)
    NT = H // TH
    THP = TH + 2 * P
    assert NT == 1 or TH >= P
    CC = 128 if Chid % 128 == 0 else Chid                    # dw channel chunk

    # ---- NHWC, zero-pad H, gather per-tile halo slabs (already flattened to
    #      (THP*W, Cin)) so only one slab is VMEM-resident per pipeline buffer.
    x = jnp.transpose(x_nchw, (0, 2, 3, 1)).astype(jnp.float32)   # (N, H, W, C)
    x = jnp.pad(x, ((0, 0), (P, P), (0, 0), (0, 0)))              # (N, H+2P, W, C)
    rows = jnp.arange(NT)[:, None] * TH + jnp.arange(THP)[None, :]
    x_tiles = x[:, rows].reshape(N, NT, THP * W, C)               # (N, NT, THP*W, C)

    est = _vmem_bytes_estimate(TH, W, WP, C, Chid, Cout, K, P)
    vmem_limit = int(min(max(1.5 * est + (4 << 20), 32 << 20), 64 << 20))

    flops = 2 * N * H * W * (C * Chid + Chid * Cout + K * K * Chid)
    bytes_accessed = (x_tiles.size + N * H * W * Cout) * 4 \
        + (w1f.size + w2f.size) * 2 \
        + (wdw2.size + b1f.size + b2f.size + gmf.size) * 4

    kernel = functools.partial(_block_kernel, W=W, K=K, P=P, TH=TH,
                               WOFF=WOFF, WP=WP, CC=CC)

    out = pl.pallas_call(
        kernel,
        out_shape=jax.ShapeDtypeStruct((N, NT, TH * W, Cout), jnp.float32),
        grid_spec=pltpu.PrefetchScalarGridSpec(
            num_scalar_prefetch=0,
            grid=(N, NT),
            in_specs=[
                pl.BlockSpec((1, 1, THP * W, C), lambda n, t: (n, t, 0, 0)),
                pl.BlockSpec((C, Chid),          lambda n, t: (0, 0)),
                pl.BlockSpec((1, Chid),          lambda n, t: (0, 0)),
                pl.BlockSpec((K * K, Chid),      lambda n, t: (0, 0)),
                pl.BlockSpec((Chid, Cout),       lambda n, t: (0, 0)),
                pl.BlockSpec((1, Cout),          lambda n, t: (0, 0)),
                pl.BlockSpec((1, Cout),          lambda n, t: (0, 0)),
            ],
            out_specs=pl.BlockSpec((1, 1, TH * W, Cout), lambda n, t: (n, t, 0, 0)),
            scratch_shapes=[
                pltpu.VMEM((THP, WP, Chid), jnp.float32),     # padded dw input
                pltpu.VMEM((TH * W, Chid), jnp.float32),      # dw output (matmul-ready)
            ],
        ),
        compiler_params=pltpu.CompilerParams(
            dimension_semantics=("parallel", "arbitrary"),
            vmem_limit_bytes=vmem_limit,
        ),
        cost_estimate=pl.CostEstimate(flops=int(flops), transcendentals=0,
                                      bytes_accessed=int(bytes_accessed)),
    )(x_tiles, w1f, b1f, wdw2, w2f, b2f, gmf)

    out = out.reshape(N, H, W, Cout)
    return jnp.transpose(out, (0, 3, 1, 2))                  # back to NCHW


def make_params(key, indim, dim, mlp_ratio=4.0, kernel_size=11,
                layer_scale_init_value=1e-6):
    hidden = int(mlp_ratio * dim)
    ks = jax.random.split(key, 10)
    return dict(
        w1=0.1 * jax.random.normal(ks[0], (indim, hidden), jnp.float32),
        b1=0.1 * jax.random.normal(ks[1], (hidden,), jnp.float32),
        bn_w=1.0 + 0.1 * jax.random.normal(ks[2], (hidden,), jnp.float32),
        bn_b=0.1 * jax.random.normal(ks[3], (hidden,), jnp.float32),
        bn_mean=0.1 * jax.random.normal(ks[4], (hidden,), jnp.float32),
        bn_var=1.0 + 0.1 * jnp.abs(jax.random.normal(ks[5], (hidden,), jnp.float32)),
        wdw=0.05 * jax.random.normal(ks[6], (kernel_size, kernel_size, hidden),
                                     jnp.float32),
        bdw=0.1 * jax.random.normal(ks[7], (hidden,), jnp.float32),
        w2=0.1 * jax.random.normal(ks[8], (hidden, dim), jnp.float32),
        b2=0.1 * jax.random.normal(ks[9], (dim,), jnp.float32),
        gamma=layer_scale_init_value * jnp.ones((dim,), jnp.float32),
    )


def _reference(x_nchw, params, bn_eps=1e-5, K=11, P=5):
    """Pure-JAX f32 reference of the module forward (eval-mode BN)."""
    x = jnp.transpose(x_nchw, (0, 2, 3, 1)).astype(jnp.float32)
    h = x @ params["w1"] + params["b1"]
    scale = params["bn_w"] / jnp.sqrt(params["bn_var"] + bn_eps)
    h = (h - params["bn_mean"]) * scale + params["bn_b"]
    h = jnp.maximum(h, 0.0)
    N, H, W, Chid = h.shape
    hp = jnp.pad(h, ((0, 0), (P, P), (P, P), (0, 0)))
    dw = jnp.zeros_like(h)
    for kh in range(K):
        for kw in range(K):
            dw = dw + hp[:, kh:kh + H, kw:kw + W, :] * params["wdw"][kh, kw]
    dw = dw + params["bdw"]
    y = dw @ params["w2"] + params["b2"]
    y = y * params["gamma"]
    y = y + x
    return jnp.transpose(y, (0, 3, 1, 2))


if __name__ == "__main__":
    # Small shapes: batch=2, indim=dim=4 (hidden=16), spatial 16x16, k=11, pad=5.
    N, C, H, W = 2, 4, 16, 16
    key = jax.random.PRNGKey(0)
    kx, kp = jax.random.split(key)
    x = jax.random.normal(kx, (N, C, H, W), jnp.float32)
    # Use a non-trivial layer scale in the test so the whole branch is exercised
    # by the numeric check (module default is 1e-6, which would hide it).
    params = make_params(kp, indim=C, dim=C, layer_scale_init_value=1.0)

    out = robust_resnet_dw_inverted_block(x, params)
    out = jax.block_until_ready(out)
    assert out.shape == (N, C, H, W) and out.dtype == jnp.float32

    ref = _reference(x, params)
    # bf16 MXU matmuls vs f32 torch reference -> allow ~1e-2 scale deviations.
    assert jnp.allclose(out, ref, atol=3e-2, rtol=3e-2), \
        float(jnp.max(jnp.abs(out - ref)))
    print("KERNEL_OK")
</pallas_src>

<mosaic_0001>
module attributes {stable_mosaic.version = 11 : i64} {
  func.func @_block_kernel(%arg0: i32, %arg1: i32, %arg2: memref<1x1x416x4xf32, #tpu.memory_space<vmem>>, %arg3: memref<4x16xbf16, #tpu.memory_space<vmem>>, %arg4: memref<1x16xf32, #tpu.memory_space<vmem>>, %arg5: memref<121x16xf32, #tpu.memory_space<vmem>>, %arg6: memref<16x4xbf16, #tpu.memory_space<vmem>>, %arg7: memref<1x4xf32, #tpu.memory_space<vmem>>, %arg8: memref<1x4xf32, #tpu.memory_space<vmem>>, %arg9: memref<1x1x256x4xf32, #tpu.memory_space<vmem>>, %arg10: memref<26x32x16xf32, #tpu.memory_space<vmem>>, %arg11: memref<256x16xf32, #tpu.memory_space<vmem>>) attributes {dimension_semantics = [#tpu.dimension_semantics<parallel>, #tpu.dimension_semantics<arbitrary>], iteration_bounds = array<i64: 2, 1>, scalar_prefetch = 0 : i64, scratch_operands = 2 : i64, tpu.core_type = #tpu.core_type<tc>, window_params = [{transform_indices = @transform_0, window_bounds = array<i64: 1, 1, 416, 4>}, {pipeline_mode = #tpu.pipeline_mode<synchronous>, transform_indices = @transform_1, window_bounds = array<i64: 4, 16>}, {pipeline_mode = #tpu.pipeline_mode<synchronous>, transform_indices = @transform_2, window_bounds = array<i64: 1, 16>}, {pipeline_mode = #tpu.pipeline_mode<synchronous>, transform_indices = @transform_3, window_bounds = array<i64: 121, 16>}, {pipeline_mode = #tpu.pipeline_mode<synchronous>, transform_indices = @transform_4, window_bounds = array<i64: 16, 4>}, {pipeline_mode = #tpu.pipeline_mode<synchronous>, transform_indices = @transform_5, window_bounds = array<i64: 1, 4>}, {pipeline_mode = #tpu.pipeline_mode<synchronous>, transform_indices = @transform_6, window_bounds = array<i64: 1, 4>}, {transform_indices = @transform_7, window_bounds = array<i64: 1, 1, 256, 4>}]} {
    %c0 = arith.constant 0 : index
    %c0_0 = arith.constant 0 : index
    %c0_1 = arith.constant 0 : index
    %c0_2 = arith.constant 0 : index
    %0 = vector.load %arg2[%c0, %c0_0, %c0_1, %c0_2] : memref<1x1x416x4xf32, #tpu.memory_space<vmem>>, vector<1x1x416x4xf32>
    %1 = vector.shape_cast %0 : vector<1x1x416x4xf32> to vector<416x4xf32>
    %2 = arith.truncf %1 : vector<416x4xf32> to vector<416x4xbf16>
    %c0_3 = arith.constant 0 : index
    %c0_4 = arith.constant 0 : index
    %3 = vector.load %arg3[%c0_3, %c0_4] : memref<4x16xbf16, #tpu.memory_space<vmem>>, vector<4x16xbf16>
    %cst = arith.constant dense<0.000000e+00> : vector<416x16xf32>
    %4 = tpu.matmul %2, %3, %cst {dimension_numbers = #tpu.dot_dimension_numbers<[1], [0], [0], [1], [0, 0, 1, 1], [], []>} : vector<416x4xbf16>, vector<4x16xbf16>, vector<416x16xf32> -> vector<416x16xf32>
    %c0_5 = arith.constant 0 : index
    %c0_6 = arith.constant 0 : index
    %5 = vector.load %arg4[%c0_5, %c0_6] : memref<1x16xf32, #tpu.memory_space<vmem>>, vector<1x16xf32>
    %6 = vector.broadcast %5 : vector<1x16xf32> to vector<416x16xf32>
    %7 = arith.addf %4, %6 : vector<416x16xf32>
    %cst_7 = arith.constant 0.000000e+00 : f32
    %8 = vector.broadcast %cst_7 : f32 to vector<416x16xf32>
    %9 = arith.maximumf %7, %8 : vector<416x16xf32>
    %c0_i32 = arith.constant 0 : i32
    %10 = arith.cmpi eq, %arg1, %c0_i32 : i32
    %11 = arith.extui %10 : i1 to i32
    %c0_i32_8 = arith.constant 0 : i32
    %12 = arith.cmpi ne, %11, %c0_i32_8 : i32
    scf.if %12 {
      %cst_33 = arith.constant 0.000000e+00 : f32
      %38 = vector.broadcast %cst_33 : f32 to vector<26x8x16xf32>
      %c0_34 = arith.constant 0 : index
      %c0_35 = arith.constant 0 : index
      %c0_36 = arith.constant 0 : index
      %39 = vector.load %arg10[%c0_34, %c0_35, %c0_36] : memref<26x32x16xf32, #tpu.memory_space<vmem>>, vector<26x8x16xf32>
      tpu.vector_store %arg10[%c0_34, %c0_35, %c0_36], %38 {strides = array<i32>} : memref<26x32x16xf32, #tpu.memory_space<vmem>>, vector<26x8x16xf32>,
      %cst_37 = arith.constant 0.000000e+00 : f32
      %40 = vector.broadcast %cst_37 : f32 to vector<26x8x16xf32>
      %c0_38 = arith.constant 0 : index
      %c24 = arith.constant 24 : index
      %c0_39 = arith.constant 0 : index
      %41 = vector.load %arg10[%c0_38, %c24, %c0_39] : memref<26x32x16xf32, #tpu.memory_space<vmem>>, vector<26x8x16xf32>
      tpu.vector_store %arg10[%c0_38, %c24, %c0_39], %40 {strides = array<i32>} : memref<26x32x16xf32, #tpu.memory_space<vmem>>, vector<26x8x16xf32>,
    } else {
    }
    %13 = vector.shape_cast %9 : vector<416x16xf32> to vector<26x16x16xf32>
    %c0_9 = arith.constant 0 : index
    %c8 = arith.constant 8 : index
    %c0_10 = arith.constant 0 : index
    %14 = vector.load %arg10[%c0_9, %c8, %c0_10] : memref<26x32x16xf32, #tpu.memory_space<vmem>>, vector<26x16x16xf32>
    tpu.vector_store %arg10[%c0_9, %c8, %c0_10], %13 {strides = array<i32>} : memref<26x32x16xf32, #tpu.memory_space<vmem>>, vector<26x16x16xf32>,
    %c0_i32_11 = arith.constant 0 : i32
    %15 = arith.cmpi eq, %arg1, %c0_i32_11 : i32
    %16 = arith.extui %15 : i1 to i32
    %c0_i32_12 = arith.constant 0 : i32
    %17 = arith.cmpi ne, %16, %c0_i32_12 : i32
    scf.if %17 {
      %cst_33 = arith.constant 0.000000e+00 : f32
      %38 = vector.broadcast %cst_33 : f32 to vector<5x32x16xf32>
      %c0_34 = arith.constant 0 : index
      %c0_35 = arith.constant 0 : index
      %c0_36 = arith.constant 0 : index
      %39 = vector.load %arg10[%c0_34, %c0_35, %c0_36] : memref<26x32x16xf32, #tpu.memory_space<vmem>>, vector<5x32x16xf32>
      tpu.vector_store %arg10[%c0_34, %c0_35, %c0_36], %38 {strides = array<i32>} : memref<26x32x16xf32, #tpu.memory_space<vmem>>, vector<5x32x16xf32>,
    } else {
    }
    %c0_i32_13 = arith.constant 0 : i32
    %18 = arith.cmpi eq, %arg1, %c0_i32_13 : i32
    %19 = arith.extui %18 : i1 to i32
    %c0_i32_14 = arith.constant 0 : i32
    %20 = arith.cmpi ne, %19, %c0_i32_14 : i32
    scf.if %20 {
      %cst_33 = arith.constant 0.000000e+00 : f32
      %38 = vector.broadcast %cst_33 : f32 to vector<5x32x16xf32>
      %c21 = arith.constant 21 : index
      %c0_34 = arith.constant 0 : index
      %c0_35 = arith.constant 0 : index
      %39 = vector.load %arg10[%c21, %c0_34, %c0_35] : memref<26x32x16xf32, #tpu.memory_space<vmem>>, vector<5x32x16xf32>
      tpu.vector_store %arg10[%c21, %c0_34, %c0_35], %38 {strides = array<i32>} : memref<26x32x16xf32, #tpu.memory_space<vmem>>, vector<5x32x16xf32>,
    } else {
    }
    %c0_i32_15 = arith.constant 0 : i32
    %c16_i32 = arith.constant 16 : i32
    %21 = arith.addi %c0_i32_15, %c16_i32 : i32
    %c1_i32 = arith.constant 1 : i32
    scf.for %arg12 = %c0_i32_15 to %21 step %c1_i32  : i32 {
      %cst_33 = arith.constant 0.000000e+00 : f32
      %38 = vector.broadcast %cst_33 : f32 to vector<32x16xf32>
      %cst_34 = arith.constant 0.000000e+00 : f32
      %39 = vector.broadcast %cst_34 : f32 to vector<32x16xf32>
      %c0_i32_35 = arith.constant 0 : i32
      %40 = arith.addi %arg12, %c0_i32_35 : i32
      %41 = arith.index_cast %40 : i32 to index
      %c0_36 = arith.constant 0 : index
      %c0_37 = arith.constant 0 : index
      %42 = vector.load %arg10[%41, %c0_36, %c0_37] : memref<26x32x16xf32, #tpu.memory_space<vmem>>, vector<1x32x16xf32>
      %43 = vector.shape_cast %42 : vector<1x32x16xf32> to vector<32x16xf32>
      %c0_38 = arith.constant 0 : index
      %c0_39 = arith.constant 0 : index
      %44 = vector.load %arg5[%c0_38, %c0_39] : memref<121x16xf32, #tpu.memory_space<vmem>>, vector<1x16xf32>
      %45 = vector.shape_cast %44 : vector<1x16xf32> to vector<16xf32>
      %46 = vector.shape_cast %45 : vector<16xf32> to vector<1x16xf32>
      %47 = vector.broadcast %46 : vector<1x16xf32> to vector<32x16xf32>
      %48 = arith.mulf %43, %47 : vector<32x16xf32>
      %49 = arith.addf %39, %48 : vector<32x16xf32>
      %c1_i32_40 = arith.constant 1 : i32
      %50 = arith.addi %arg12, %c1_i32_40 : i32
      %51 = arith.index_cast %50 : i32 to index
      %c0_41 = arith.constant 0 : index
      %c0_42 = arith.constant 0 : index
      %52 = vector.load %arg10[%51, %c0_41, %c0_42] : memref<26x32x16xf32, #tpu.memory_space<vmem>>, vector<1x32x16xf32>
      %53 = vector.shape_cast %52 : vector<1x32x16xf32> to vector<32x16xf32>
      %c11 = arith.constant 11 : index
      %c0_43 = arith.constant 0 : index
      %54 = vector.load %arg5[%c11, %c0_43] : memref<121x16xf32, #tpu.memory_space<vmem>>, vector<1x16xf32>
      %55 = vector.shape_cast %54 : vector<1x16xf32> to vector<16xf32>
      %56 = vector.shape_cast %55 : vector<16xf32> to vector<1x16xf32>
      %57 = vector.broadcast %56 : vector<1x16xf32> to vector<32x16xf32>
      %58 = arith.mulf %53, %57 : vector<32x16xf32>
      %59 = arith.addf %49, %58 : vector<32x16xf32>
      %c2_i32 = arith.constant 2 : i32
      %60 = arith.addi %arg12, %c2_i32 : i32
      %61 = arith.index_cast %60 : i32 to index
      %c0_44 = arith.constant 0 : index
      %c0_45 = arith.constant 0 : index
      %62 = vector.load %arg10[%61, %c0_44, %c0_45] : memref<26x32x16xf32, #tpu.memory_space<vmem>>, vector<1x32x16xf32>
      %63 = vector.shape_cast %62 : vector<1x32x16xf32> to vector<32x16xf32>
      %c22 = arith.constant 22 : index
      %c0_46 = arith.constant 0 : index
      %64 = vector.load %arg5[%c22, %c0_46] : memref<121x16xf32, #tpu.memory_space<vmem>>, vector<1x16xf32>
      %65 = vector.shape_cast %64 : vector<1x16xf32> to vector<16xf32>
      %66 = vector.shape_cast %65 : vector<16xf32> to vector<1x16xf32>
      %67 = vector.broadcast %66 : vector<1x16xf32> to vector<32x16xf32>
      %68 = arith.mulf %63, %67 : vector<32x16xf32>
      %69 = arith.addf %59, %68 : vector<32x16xf32>
      %c3_i32 = arith.constant 3 : i32
      %70 = arith.addi %arg12, %c3_i32 : i32
      %71 = arith.index_cast %70 : i32 to index
      %c0_47 = arith.constant 0 : index
      %c0_48 = arith.constant 0 : index
      %72 = vector.load %arg10[%71, %c0_47, %c0_48] : memref<26x32x16xf32, #tpu.memory_space<vmem>>, vector<1x32x16xf32>
      %73 = vector.shape_cast %72 : vector<1x32x16xf32> to vector<32x16xf32>
      %c33 = arith.constant 33 : index
      %c0_49 = arith.constant 0 : index
      %74 = vector.load %arg5[%c33, %c0_49] : memref<121x16xf32, #tpu.memory_space<vmem>>, vector<1x16xf32>
      %75 = vector.shape_cast %74 : vector<1x16xf32> to vector<16xf32>
      %76 = vector.shape_cast %75 : vector<16xf32> to vector<1x16xf32>
      %77 = vector.broadcast %76 : vector<1x16xf32> to vector<32x16xf32>
      %78 = arith.mulf %73, %77 : vector<32x16xf32>
      %79 = arith.addf %69, %78 : vector<32x16xf32>
      %c4_i32 = arith.constant 4 : i32
      %80 = arith.addi %arg12, %c4_i32 : i32
      %81 = arith.index_cast %80 : i32 to index
      %c0_50 = arith.constant 0 : index
      %c0_51 = arith.constant 0 : index
      %82 = vector.load %arg10[%81, %c0_50, %c0_51] : memref<26x32x16xf32, #tpu.memory_space<vmem>>, vector<1x32x16xf32>
      %83 = vector.shape_cast %82 : vector<1x32x16xf32> to vector<32x16xf32>
      %c44 = arith.constant 44 : index
      %c0_52 = arith.constant 0 : index
      %84 = vector.load %arg5[%c44, %c0_52] : memref<121x16xf32, #tpu.memory_space<vmem>>, vector<1x16xf32>
      %85 = vector.shape_cast %84 : vector<1x16xf32> to vector<16xf32>
      %86 = vector.shape_cast %85 : vector<16xf32> to vector<1x16xf32>
      %87 = vector.broadcast %86 : vector<1x16xf32> to vector<32x16xf32>
      %88 = arith.mulf %83, %87 : vector<32x16xf32>
      %89 = arith.addf %79, %88 : vector<32x16xf32>
      %c5_i32 = arith.constant 5 : i32
      %90 = arith.addi %arg12, %c5_i32 : i32
      %91 = arith.index_cast %90 : i32 to index
      %c0_53 = arith.constant 0 : index
      %c0_54 = arith.constant 0 : index
      %92 = vector.load %arg10[%91, %c0_53, %c0_54] : memref<26x32x16xf32, #tpu.memory_space<vmem>>, vector<1x32x16xf32>
      %93 = vector.shape_cast %92 : vector<1x32x16xf32> to vector<32x16xf32>
      %c55 = arith.constant 55 : index
      %c0_55 = arith.constant 0 : index
      %94 = vector.load %arg5[%c55, %c0_55] : memref<121x16xf32, #tpu.memory_space<vmem>>, vector<1x16xf32>
      %95 = vector.shape_cast %94 : vector<1x16xf32> to vector<16xf32>
      %96 = vector.shape_cast %95 : vector<16xf32> to vector<1x16xf32>
      %97 = vector.broadcast %96 : vector<1x16xf32> to vector<32x16xf32>
      %98 = arith.mulf %93, %97 : vector<32x16xf32>
      %99 = arith.addf %89, %98 : vector<32x16xf32>
      %c6_i32 = arith.constant 6 : i32
      %100 = arith.addi %arg12, %c6_i32 : i32
      %101 = arith.index_cast %100 : i32 to index
      %c0_56 = arith.constant 0 : index
      %c0_57 = arith.constant 0 : index
      %102 = vector.load %arg10[%101, %c0_56, %c0_57] : memref<26x32x16xf32, #tpu.memory_space<vmem>>, vector<1x32x16xf32>
      %103 = vector.shape_cast %102 : vector<1x32x16xf32> to vector<32x16xf32>
      %c66 = arith.constant 66 : index
      %c0_58 = arith.constant 0 : index
      %104 = vector.load %arg5[%c66, %c0_58] : memref<121x16xf32, #tpu.memory_space<vmem>>, vector<1x16xf32>
      %105 = vector.shape_cast %104 : vector<1x16xf32> to vector<16xf32>
      %106 = vector.shape_cast %105 : vector<16xf32> to vector<1x16xf32>
      %107 = vector.broadcast %106 : vector<1x16xf32> to vector<32x16xf32>
      %108 = arith.mulf %103, %107 : vector<32x16xf32>
      %109 = arith.addf %99, %108 : vector<32x16xf32>
      %c7_i32 = arith.constant 7 : i32
      %110 = arith.addi %arg12, %c7_i32 : i32
      %111 = arith.index_cast %110 : i32 to index
      %c0_59 = arith.constant 0 : index
      %c0_60 = arith.constant 0 : index
      %112 = vector.load %arg10[%111, %c0_59, %c0_60] : memref<26x32x16xf32, #tpu.memory_space<vmem>>, vector<1x32x16xf32>
      %113 = vector.shape_cast %112 : vector<1x32x16xf32> to vector<32x16xf32>
      %c77 = arith.constant 77 : index
      %c0_61 = arith.constant 0 : index
      %114 = vector.load %arg5[%c77, %c0_61] : memref<121x16xf32, #tpu.memory_space<vmem>>, vector<1x16xf32>
      %115 = vector.shape_cast %114 : vector<1x16xf32> to vector<16xf32>
      %116 = vector.shape_cast %115 : vector<16xf32> to vector<1x16xf32>
      %117 = vector.broadcast %116 : vector<1x16xf32> to vector<32x16xf32>
      %118 = arith.mulf %113, %117 : vector<32x16xf32>
      %119 = arith.addf %109, %118 : vector<32x16xf32>
      %c8_i32 = arith.constant 8 : i32
      %120 = arith.addi %arg12, %c8_i32 : i32
      %121 = arith.index_cast %120 : i32 to index
      %c0_62 = arith.constant 0 : index
      %c0_63 = arith.constant 0 : index
      %122 = vector.load %arg10[%121, %c0_62, %c0_63] : memref<26x32x16xf32, #tpu.memory_space<vmem>>, vector<1x32x16xf32>
      %123 = vector.shape_cast %122 : vector<1x32x16xf32> to vector<32x16xf32>
      %c88 = arith.constant 88 : index
      %c0_64 = arith.constant 0 : index
      %124 = vector.load %arg5[%c88, %c0_64] : memref<121x16xf32, #tpu.memory_space<vmem>>, vector<1x16xf32>
      %125 = vector.shape_cast %124 : vector<1x16xf32> to vector<16xf32>
      %126 = vector.shape_cast %125 : vector<16xf32> to vector<1x16xf32>
      %127 = vector.broadcast %126 : vector<1x16xf32> to vector<32x16xf32>
      %128 = arith.mulf %123, %127 : vector<32x16xf32>
      %129 = arith.addf %119, %128 : vector<32x16xf32>
      %c9_i32 = arith.constant 9 : i32
      %130 = arith.addi %arg12, %c9_i32 : i32
      %131 = arith.index_cast %130 : i32 to index
      %c0_65 = arith.constant 0 : index
      %c0_66 = arith.constant 0 : index
      %132 = vector.load %arg10[%131, %c0_65, %c0_66] : memref<26x32x16xf32, #tpu.memory_space<vmem>>, vector<1x32x16xf32>
      %133 = vector.shape_cast %132 : vector<1x32x16xf32> to vector<32x16xf32>
      %c99 = arith.constant 99 : index
      %c0_67 = arith.constant 0 : index
      %134 = vector.load %arg5[%c99, %c0_67] : memref<121x16xf32, #tpu.memory_space<vmem>>, vector<1x16xf32>
      %135 = vector.shape_cast %134 : vector<1x16xf32> to vector<16xf32>
      %136 = vector.shape_cast %135 : vector<16xf32> to vector<1x16xf32>
      %137 = vector.broadcast %136 : vector<1x16xf32> to vector<32x16xf32>
      %138 = arith.mulf %133, %137 : vector<32x16xf32>
      %139 = arith.addf %129, %138 : vector<32x16xf32>
      %c10_i32 = arith.constant 10 : i32
      %140 = arith.addi %arg12, %c10_i32 : i32
      %141 = arith.index_cast %140 : i32 to index
      %c0_68 = arith.constant 0 : index
      %c0_69 = arith.constant 0 : index
      %142 = vector.load %arg10[%141, %c0_68, %c0_69] : memref<26x32x16xf32, #tpu.memory_space<vmem>>, vector<1x32x16xf32>
      %143 = vector.shape_cast %142 : vector<1x32x16xf32> to vector<32x16xf32>
      %c110 = arith.constant 110 : index
      %c0_70 = arith.constant 0 : index
      %144 = vector.load %arg5[%c110, %c0_70] : memref<121x16xf32, #tpu.memory_space<vmem>>, vector<1x16xf32>
      %145 = vector.shape_cast %144 : vector<1x16xf32> to vector<16xf32>
      %146 = vector.shape_cast %145 : vector<16xf32> to vector<1x16xf32>
      %147 = vector.broadcast %146 : vector<1x16xf32> to vector<32x16xf32>
      %148 = arith.mulf %143, %147 : vector<32x16xf32>
      %149 = arith.addf %139, %148 : vector<32x16xf32>
      %c5_i32_71 = arith.constant 5 : i32
      %150 = tpu.dynamic_rotate %149 by %c5_i32_71 dim 0 : vector<32x16xf32>, i32 -> vector<32x16xf32>
      %151 = arith.addf %38, %150 : vector<32x16xf32>
      %cst_72 = arith.constant 0.000000e+00 : f32
      %152 = vector.broadcast %cst_72 : f32 to vector<32x16xf32>
      %c0_i32_73 = arith.constant 0 : i32
      %153 = arith.addi %arg12, %c0_i32_73 : i32
      %154 = arith.index_cast %153 : i32 to index
      %c0_74 = arith.constant 0 : index
      %c0_75 = arith.constant 0 : index
      %155 = vector.load %arg10[%154, %c0_74, %c0_75] : memref<26x32x16xf32, #tpu.memory_space<vmem>>, vector<1x32x16xf32>
      %156 = vector.shape_cast %155 : vector<1x32x16xf32> to vector<32x16xf32>
      %c1 = arith.constant 1 : index
      %c0_76 = arith.constant 0 : index
      %157 = vector.load %arg5[%c1, %c0_76] : memref<121x16xf32, #tpu.memory_space<vmem>>, vector<1x16xf32>
      %158 = vector.shape_cast %157 : vector<1x16xf32> to vector<16xf32>
      %159 = vector.shape_cast %158 : vector<16xf32> to vector<1x16xf32>
      %160 = vector.broadcast %159 : vector<1x16xf32> to vector<32x16xf32>
      %161 = arith.mulf %156, %160 : vector<32x16xf32>
      %162 = arith.addf %152, %161 : vector<32x16xf32>
      %c1_i32_77 = arith.constant 1 : i32
      %163 = arith.addi %arg12, %c1_i32_77 : i32
      %164 = arith.index_cast %163 : i32 to index
      %c0_78 = arith.constant 0 : index
      %c0_79 = arith.constant 0 : index
      %165 = vector.load %arg10[%164, %c0_78, %c0_79] : memref<26x32x16xf32, #tpu.memory_space<vmem>>, vector<1x32x16xf32>
      %166 = vector.shape_cast %165 : vector<1x32x16xf32> to vector<32x16xf32>
      %c12 = arith.constant 12 : index
      %c0_80 = arith.constant 0 : index
      %167 = vector.load %arg5[%c12, %c0_80] : memref<121x16xf32, #tpu.memory_space<vmem>>, vector<1x16xf32>
      %168 = vector.shape_cast %167 : vector<1x16xf32> to vector<16xf32>
      %169 = vector.shape_cast %168 : vector<16xf32> to vector<1x16xf32>
      %170 = vector.broadcast %169 : vector<1x16xf32> to vector<32x16xf32>
      %171 = arith.mulf %166, %170 : vector<32x16xf32>
      %172 = arith.addf %162, %171 : vector<32x16xf32>
      %c2_i32_81 = arith.constant 2 : i32
      %173 = arith.addi %arg12, %c2_i32_81 : i32
      %174 = arith.index_cast %173 : i32 to index
      %c0_82 = arith.constant 0 : index
      %c0_83 = arith.constant 0 : index
      %175 = vector.load %arg10[%174, %c0_82, %c0_83] : memref<26x32x16xf32, #tpu.memory_space<vmem>>, vector<1x32x16xf32>
      %176 = vector.shape_cast %175 : vector<1x32x16xf32> to vector<32x16xf32>
      %c23 = arith.constant 23 : index
      %c0_84 = arith.constant 0 : index
      %177 = vector.load %arg5[%c23, %c0_84] : memref<121x16xf32, #tpu.memory_space<vmem>>, vector<1x16xf32>
      %178 = vector.shape_cast %177 : vector<1x16xf32> to vector<16xf32>
      %179 = vector.shape_cast %178 : vector<16xf32> to vector<1x16xf32>
      %180 = vector.broadcast %179 : vector<1x16xf32> to vector<32x16xf32>
      %181 = arith.mulf %176, %180 : vector<32x16xf32>
      %182 = arith.addf %172, %181 : vector<32x16xf32>
      %c3_i32_85 = arith.constant 3 : i32
      %183 = arith.addi %arg12, %c3_i32_85 : i32
      %184 = arith.index_cast %183 : i32 to index
      %c0_86 = arith.constant 0 : index
      %c0_87 = arith.constant 0 : index
      %185 = vector.load %arg10[%184, %c0_86, %c0_87] : memref<26x32x16xf32, #tpu.memory_space<vmem>>, vector<1x32x16xf32>
      %186 = vector.shape_cast %185 : vector<1x32x16xf32> to vector<32x16xf32>
      %c34 = arith.constant 34 : index
      %c0_88 = arith.constant 0 : index
      %187 = vector.load %arg5[%c34, %c0_88] : memref<121x16xf32, #tpu.memory_space<vmem>>, vector<1x16xf32>
      %188 = vector.shape_cast %187 : vector<1x16xf32> to vector<16xf32>
      %189 = vector.shape_cast %188 : vector<16xf32> to vector<1x16xf32>
      %190 = vector.broadcast %189 : vector<1x16xf32> to vector<32x16xf32>
      %191 = arith.mulf %186, %190 : vector<32x16xf32>
      %192 = arith.addf %182, %191 : vector<32x16xf32>
      %c4_i32_89 = arith.constant 4 : i32
      %193 = arith.addi %arg12, %c4_i32_89 : i32
      %194 = arith.index_cast %193 : i32 to index
      %c0_90 = arith.constant 0 : index
      %c0_91 = arith.constant 0 : index
      %195 = vector.load %arg10[%194, %c0_90, %c0_91] : memref<26x32x16xf32, #tpu.memory_space<vmem>>, vector<1x32x16xf32>
      %196 = vector.shape_cast %195 : vector<1x32x16xf32> to vector<32x16xf32>
      %c45 = arith.constant 45 : index
      %c0_92 = arith.constant 0 : index
      %197 = vector.load %arg5[%c45, %c0_92] : memref<121x16xf32, #tpu.memory_space<vmem>>, vector<1x16xf32>
      %198 = vector.shape_cast %197 : vector<1x16xf32> to vector<16xf32>
      %199 = vector.shape_cast %198 : vector<16xf32> to vector<1x16xf32>
      %200 = vector.broadcast %199 : vector<1x16xf32> to vector<32x16xf32>
      %201 = arith.mulf %196, %200 : vector<32x16xf32>
      %202 = arith.addf %192, %201 : vector<32x16xf32>
      %c5_i32_93 = arith.constant 5 : i32
      %203 = arith.addi %arg12, %c5_i32_93 : i32
      %204 = arith.index_cast %203 : i32 to index
      %c0_94 = arith.constant 0 : index
      %c0_95 = arith.constant 0 : index
      %205 = vector.load %arg10[%204, %c0_94, %c0_95] : memref<26x32x16xf32, #tpu.memory_space<vmem>>, vector<1x32x16xf32>
      %206 = vector.shape_cast %205 : vector<1x32x16xf32> to vector<32x16xf32>
      %c56 = arith.constant 56 : index
      %c0_96 = arith.constant 0 : index
      %207 = vector.load %arg5[%c56, %c0_96] : memref<121x16xf32, #tpu.memory_space<vmem>>, vector<1x16xf32>
      %208 = vector.shape_cast %207 : vector<1x16xf32> to vector<16xf32>
      %209 = vector.shape_cast %208 : vector<16xf32> to vector<1x16xf32>
      %210 = vector.broadcast %209 : vector<1x16xf32> to vector<32x16xf32>
      %211 = arith.mulf %206, %210 : vector<32x16xf32>
      %212 = arith.addf %202, %211 : vector<32x16xf32>
      %c6_i32_97 = arith.constant 6 : i32
      %213 = arith.addi %arg12, %c6_i32_97 : i32
      %214 = arith.index_cast %213 : i32 to index
      %c0_98 = arith.constant 0 : index
      %c0_99 = arith.constant 0 : index
      %215 = vector.load %arg10[%214, %c0_98, %c0_99] : memref<26x32x16xf32, #tpu.memory_space<vmem>>, vector<1x32x16xf32>
      %216 = vector.shape_cast %215 : vector<1x32x16xf32> to vector<32x16xf32>
      %c67 = arith.constant 67 : index
      %c0_100 = arith.constant 0 : index
      %217 = vector.load %arg5[%c67, %c0_100] : memref<121x16xf32, #tpu.memory_space<vmem>>, vector<1x16xf32>
      %218 = vector.shape_cast %217 : vector<1x16xf32> to vector<16xf32>
      %219 = vector.shape_cast %218 : vector<16xf32> to vector<1x16xf32>
      %220 = vector.broadcast %219 : vector<1x16xf32> to vector<32x16xf32>
      %221 = arith.mulf %216, %220 : vector<32x16xf32>
      %222 = arith.addf %212, %221 : vector<32x16xf32>
      %c7_i32_101 = arith.constant 7 : i32
      %223 = arith.addi %arg12, %c7_i32_101 : i32
      %224 = arith.index_cast %223 : i32 to index
      %c0_102 = arith.constant 0 : index
      %c0_103 = arith.constant 0 : index
      %225 = vector.load %arg10[%224, %c0_102, %c0_103] : memref<26x32x16xf32, #tpu.memory_space<vmem>>, vector<1x32x16xf32>
      %226 = vector.shape_cast %225 : vector<1x32x16xf32> to vector<32x16xf32>
      %c78 = arith.constant 78 : index
      %c0_104 = arith.constant 0 : index
      %227 = vector.load %arg5[%c78, %c0_104] : memref<121x16xf32, #tpu.memory_space<vmem>>, vector<1x16xf32>
      %228 = vector.shape_cast %227 : vector<1x16xf32> to vector<16xf32>
      %229 = vector.shape_cast %228 : vector<16xf32> to vector<1x16xf32>
      %230 = vector.broadcast %229 : vector<1x16xf32> to vector<32x16xf32>
      %231 = arith.mulf %226, %230 : vector<32x16xf32>
      %232 = arith.addf %222, %231 : vector<32x16xf32>
      %c8_i32_105 = arith.constant 8 : i32
      %233 = arith.addi %arg12, %c8_i32_105 : i32
      %234 = arith.index_cast %233 : i32 to index
      %c0_106 = arith.constant 0 : index
      %c0_107 = arith.constant 0 : index
      %235 = vector.load %arg10[%234, %c0_106, %c0_107] : memref<26x32x16xf32, #tpu.memory_space<vmem>>, vector<1x32x16xf32>
      %236 = vector.shape_cast %235 : vector<1x32x16xf32> to vector<32x16xf32>
      %c89 = arith.constant 89 : index
      %c0_108 = arith.constant 0 : index
      %237 = vector.load %arg5[%c89, %c0_108] : memref<121x16xf32, #tpu.memory_space<vmem>>, vector<1x16xf32>
      %238 = vector.shape_cast %237 : vector<1x16xf32> to vector<16xf32>
      %239 = vector.shape_cast %238 : vector<16xf32> to vector<1x16xf32>
      %240 = vector.broadcast %239 : vector<1x16xf32> to vector<32x16xf32>
      %241 = arith.mulf %236, %240 : vector<32x16xf32>
      %242 = arith.addf %232, %241 : vector<32x16xf32>
      %c9_i32_109 = arith.constant 9 : i32
      %243 = arith.addi %arg12, %c9_i32_109 : i32
      %244 = arith.index_cast %243 : i32 to index
      %c0_110 = arith.constant 0 : index
      %c0_111 = arith.constant 0 : index
      %245 = vector.load %arg10[%244, %c0_110, %c0_111] : memref<26x32x16xf32, #tpu.memory_space<vmem>>, vector<1x32x16xf32>
      %246 = vector.shape_cast %245 : vector<1x32x16xf32> to vector<32x16xf32>
      %c100 = arith.constant 100 : index
      %c0_112 = arith.constant 0 : index
      %247 = vector.load %arg5[%c100, %c0_112] : memref<121x16xf32, #tpu.memory_space<vmem>>, vector<1x16xf32>
      %248 = vector.shape_cast %247 : vector<1x16xf32> to vector<16xf32>
      %249 = vector.shape_cast %248 : vector<16xf32> to vector<1x16xf32>
      %250 = vector.broadcast %249 : vector<1x16xf32> to vector<32x16xf32>
      %251 = arith.mulf %246, %250 : vector<32x16xf32>
      %252 = arith.addf %242, %251 : vector<32x16xf32>
      %c10_i32_113 = arith.constant 10 : i32
      %253 = arith.addi %arg12, %c10_i32_113 : i32
      %254 = arith.index_cast %253 : i32 to index
      %c0_114 = arith.constant 0 : index
      %c0_115 = arith.constant 0 : index
      %255 = vector.load %arg10[%254, %c0_114, %c0_115] : memref<26x32x16xf32, #tpu.memory_space<vmem>>, vector<1x32x16xf32>
      %256 = vector.shape_cast %255 : vector<1x32x16xf32> to vector<32x16xf32>
      %c111 = arith.constant 111 : index
      %c0_116 = arith.constant 0 : index
      %257 = vector.load %arg5[%c111, %c0_116] : memref<121x16xf32, #tpu.memory_space<vmem>>, vector<1x16xf32>
      %258 = vector.shape_cast %257 : vector<1x16xf32> to vector<16xf32>
      %259 = vector.shape_cast %258 : vector<16xf32> to vector<1x16xf32>
      %260 = vector.broadcast %259 : vector<1x16xf32> to vector<32x16xf32>
      %261 = arith.mulf %256, %260 : vector<32x16xf32>
      %262 = arith.addf %252, %261 : vector<32x16xf32>
      %c4_i32_117 = arith.constant 4 : i32
      %263 = tpu.dynamic_rotate %262 by %c4_i32_117 dim 0 : vector<32x16xf32>, i32 -> vector<32x16xf32>
      %264 = arith.addf %151, %263 : vector<32x16xf32>
      %cst_118 = arith.constant 0.000000e+00 : f32
      %265 = vector.broadcast %cst_118 : f32 to vector<32x16xf32>
      %c0_i32_119 = arith.constant 0 : i32
      %266 = arith.addi %arg12, %c0_i32_119 : i32
      %267 = arith.index_cast %266 : i32 to index
      %c0_120 = arith.constant 0 : index
      %c0_121 = arith.constant 0 : index
      %268 = vector.load %arg10[%267, %c0_120, %c0_121] : memref<26x32x16xf32, #tpu.memory_space<vmem>>, vector<1x32x16xf32>
      %269 = vector.shape_cast %268 : vector<1x32x16xf32> to vector<32x16xf32>
      %c2 = arith.constant 2 : index
      %c0_122 = arith.constant 0 : index
      %270 = vector.load %arg5[%c2, %c0_122] : memref<121x16xf32, #tpu.memory_space<vmem>>, vector<1x16xf32>
      %271 = vector.shape_cast %270 : vector<1x16xf32> to vector<16xf32>
      %272 = vector.shape_cast %271 : vector<16xf32> to vector<1x16xf32>
      %273 = vector.broadcast %272 : vector<1x16xf32> to vector<32x16xf32>
      %274 = arith.mulf %269, %273 : vector<32x16xf32>
      %275 = arith.addf %265, %274 : vector<32x16xf32>
      %c1_i32_123 = arith.constant 1 : i32
      %276 = arith.addi %arg12, %c1_i32_123 : i32
      %277 = arith.index_cast %276 : i32 to index
      %c0_124 = arith.constant 0 : index
      %c0_125 = arith.constant 0 : index
      %278 = vector.load %arg10[%277, %c0_124, %c0_125] : memref<26x32x16xf32, #tpu.memory_space<vmem>>, vector<1x32x16xf32>
      %279 = vector.shape_cast %278 : vector<1x32x16xf32> to vector<32x16xf32>
      %c13 = arith.constant 13 : index
      %c0_126 = arith.constant 0 : index
      %280 = vector.load %arg5[%c13, %c0_126] : memref<121x16xf32, #tpu.memory_space<vmem>>, vector<1x16xf32>
      %281 = vector.shape_cast %280 : vector<1x16xf32> to vector<16xf32>
      %282 = vector.shape_cast %281 : vector<16xf32> to vector<1x16xf32>
      %283 = vector.broadcast %282 : vector<1x16xf32> to vector<32x16xf32>
      %284 = arith.mulf %279, %283 : vector<32x16xf32>
      %285 = arith.addf %275, %284 : vector<32x16xf32>
      %c2_i32_127 = arith.constant 2 : i32
      %286 = arith.addi %arg12, %c2_i32_127 : i32
      %287 = arith.index_cast %286 : i32 to index
      %c0_128 = arith.constant 0 : index
      %c0_129 = arith.constant 0 : index
      %288 = vector.load %arg10[%287, %c0_128, %c0_129] : memref<26x32x16xf32, #tpu.memory_space<vmem>>, vector<1x32x16xf32>
      %289 = vector.shape_cast %288 : vector<1x32x16xf32> to vector<32x16xf32>
      %c24 = arith.constant 24 : index
      %c0_130 = arith.constant 0 : index
      %290 = vector.load %arg5[%c24, %c0_130] : memref<121x16xf32, #tpu.memory_space<vmem>>, vector<1x16xf32>
      %291 = vector.shape_cast %290 : vector<1x16xf32> to vector<16xf32>
      %292 = vector.shape_cast %291 : vector<16xf32> to vector<1x16xf32>
      %293 = vector.broadcast %292 : vector<1x16xf32> to vector<32x16xf32>
      %294 = arith.mulf %289, %293 : vector<32x16xf32>
      %295 = arith.addf %285, %294 : vector<32x16xf32>
      %c3_i32_131 = arith.constant 3 : i32
      %296 = arith.addi %arg12, %c3_i32_131 : i32
      %297 = arith.index_cast %296 : i32 to index
      %c0_132 = arith.constant 0 : index
      %c0_133 = arith.constant 0 : index
      %298 = vector.load %arg10[%297, %c0_132, %c0_133] : memref<26x32x16xf32, #tpu.memory_space<vmem>>, vector<1x32x16xf32>
      %299 = vector.shape_cast %298 : vector<1x32x16xf32> to vector<32x16xf32>
      %c35 = arith.constant 35 : index
      %c0_134 = arith.constant 0 : index
      %300 = vector.load %arg5[%c35, %c0_134] : memref<121x16xf32, #tpu.memory_space<vmem>>, vector<1x16xf32>
      %301 = vector.shape_cast %300 : vector<1x16xf32> to vector<16xf32>
      %302 = vector.shape_cast %301 : vector<16xf32> to vector<1x16xf32>
      %303 = vector.broadcast %302 : vector<1x16xf32> to vector<32x16xf32>
      %304 = arith.mulf %299, %303 : vector<32x16xf32>
      %305 = arith.addf %295, %304 : vector<32x16xf32>
      %c4_i32_135 = arith.constant 4 : i32
      %306 = arith.addi %arg12, %c4_i32_135 : i32
      %307 = arith.index_cast %306 : i32 to index
      %c0_136 = arith.constant 0 : index
      %c0_137 = arith.constant 0 : index
      %308 = vector.load %arg10[%307, %c0_136, %c0_137] : memref<26x32x16xf32, #tpu.memory_space<vmem>>, vector<1x32x16xf32>
      %309 = vector.shape_cast %308 : vector<1x32x16xf32> to vector<32x16xf32>
      %c46 = arith.constant 46 : index
      %c0_138 = arith.constant 0 : index
      %310 = vector.load %arg5[%c46, %c0_138] : memref<121x16xf32, #tpu.memory_space<vmem>>, vector<1x16xf32>
      %311 = vector.shape_cast %310 : vector<1x16xf32> to vector<16xf32>
      %312 = vector.shape_cast %311 : vector<16xf32> to vector<1x16xf32>
      %313 = vector.broadcast %312 : vector<1x16xf32> to vector<32x16xf32>
      %314 = arith.mulf %309, %313 : vector<32x16xf32>
      %315 = arith.addf %305, %314 : vector<32x16xf32>
      %c5_i32_139 = arith.constant 5 : i32
      %316 = arith.addi %arg12, %c5_i32_139 : i32
      %317 = arith.index_cast %316 : i32 to index
      %c0_140 = arith.constant 0 : index
      %c0_141 = arith.constant 0 : index
      %318 = vector.load %arg10[%317, %c0_140, %c0_141] : memref<26x32x16xf32, #tpu.memory_space<vmem>>, vector<1x32x16xf32>
      %319 = vector.shape_cast %318 : vector<1x32x16xf32> to vector<32x16xf32>
      %c57 = arith.constant 57 : index
      %c0_142 = arith.constant 0 : index
      %320 = vector.load %arg5[%c57, %c0_142] : memref<121x16xf32, #tpu.memory_space<vmem>>, vector<1x16xf32>
      %321 = vector.shape_cast %320 : vector<1x16xf32> to vector<16xf32>
      %322 = vector.shape_cast %321 : vector<16xf32> to vector<1x16xf32>
      %323 = vector.broadcast %322 : vector<1x16xf32> to vector<32x16xf32>
      %324 = arith.mulf %319, %323 : vector<32x16xf32>
      %325 = arith.addf %315, %324 : vector<32x16xf32>
      %c6_i32_143 = arith.constant 6 : i32
      %326 = arith.addi %arg12, %c6_i32_143 : i32
      %327 = arith.index_cast %326 : i32 to index
      %c0_144 = arith.constant 0 : index
      %c0_145 = arith.constant 0 : index
      %328 = vector.load %arg10[%327, %c0_144, %c0_145] : memref<26x32x16xf32, #tpu.memory_space<vmem>>, vector<1x32x16xf32>
      %329 = vector.shape_cast %328 : vector<1x32x16xf32> to vector<32x16xf32>
      %c68 = arith.constant 68 : index
      %c0_146 = arith.constant 0 : index
      %330 = vector.load %arg5[%c68, %c0_146] : memref<121x16xf32, #tpu.memory_space<vmem>>, vector<1x16xf32>
      %331 = vector.shape_cast %330 : vector<1x16xf32> to vector<16xf32>
      %332 = vector.shape_cast %331 : vector<16xf32> to vector<1x16xf32>
      %333 = vector.broadcast %332 : vector<1x16xf32> to vector<32x16xf32>
      %334 = arith.mulf %329, %333 : vector<32x16xf32>
      %335 = arith.addf %325, %334 : vector<32x16xf32>
      %c7_i32_147 = arith.constant 7 : i32
      %336 = arith.addi %arg12, %c7_i32_147 : i32
      %337 = arith.index_cast %336 : i32 to index
      %c0_148 = arith.constant 0 : index
      %c0_149 = arith.constant 0 : index
      %338 = vector.load %arg10[%337, %c0_148, %c0_149] : memref<26x32x16xf32, #tpu.memory_space<vmem>>, vector<1x32x16xf32>
      %339 = vector.shape_cast %338 : vector<1x32x16xf32> to vector<32x16xf32>
      %c79 = arith.constant 79 : index
      %c0_150 = arith.constant 0 : index
      %340 = vector.load %arg5[%c79, %c0_150] : memref<121x16xf32, #tpu.memory_space<vmem>>, vector<1x16xf32>
      %341 = vector.shape_cast %340 : vector<1x16xf32> to vector<16xf32>
      %342 = vector.shape_cast %341 : vector<16xf32> to vector<1x16xf32>
      %343 = vector.broadcast %342 : vector<1x16xf32> to vector<32x16xf32>
      %344 = arith.mulf %339, %343 : vector<32x16xf32>
      %345 = arith.addf %335, %344 : vector<32x16xf32>
      %c8_i32_151 = arith.constant 8 : i32
      %346 = arith.addi %arg12, %c8_i32_151 : i32
      %347 = arith.index_cast %346 : i32 to index
      %c0_152 = arith.constant 0 : index
      %c0_153 = arith.constant 0 : index
      %348 = vector.load %arg10[%347, %c0_152, %c0_153] : memref<26x32x16xf32, #tpu.memory_space<vmem>>, vector<1x32x16xf32>
      %349 = vector.shape_cast %348 : vector<1x32x16xf32> to vector<32x16xf32>
      %c90 = arith.constant 90 : index
      %c0_154 = arith.constant 0 : index
      %350 = vector.load %arg5[%c90, %c0_154] : memref<121x16xf32, #tpu.memory_space<vmem>>, vector<1x16xf32>
      %351 = vector.shape_cast %350 : vector<1x16xf32> to vector<16xf32>
      %352 = vector.shape_cast %351 : vector<16xf32> to vector<1x16xf32>
      %353 = vector.broadcast %352 : vector<1x16xf32> to vector<32x16xf32>
      %354 = arith.mulf %349, %353 : vector<32x16xf32>
      %355 = arith.addf %345, %354 : vector<32x16xf32>
      %c9_i32_155 = arith.constant 9 : i32
      %356 = arith.addi %arg12, %c9_i32_155 : i32
      %357 = arith.index_cast %356 : i32 to index
      %c0_156 = arith.constant 0 : index
      %c0_157 = arith.constant 0 : index
      %358 = vector.load %arg10[%357, %c0_156, %c0_157] : memref<26x32x16xf32, #tpu.memory_space<vmem>>, vector<1x32x16xf32>
      %359 = vector.shape_cast %358 : vector<1x32x16xf32> to vector<32x16xf32>
      %c101 = arith.constant 101 : index
      %c0_158 = arith.constant 0 : index
      %360 = vector.load %arg5[%c101, %c0_158] : memref<121x16xf32, #tpu.memory_space<vmem>>, vector<1x16xf32>
      %361 = vector.shape_cast %360 : vector<1x16xf32> to vector<16xf32>
      %362 = vector.shape_cast %361 : vector<16xf32> to vector<1x16xf32>
      %363 = vector.broadcast %362 : vector<1x16xf32> to vector<32x16xf32>
      %364 = arith.mulf %359, %363 : vector<32x16xf32>
      %365 = arith.addf %355, %364 : vector<32x16xf32>
      %c10_i32_159 = arith.constant 10 : i32
      %366 = arith.addi %arg12, %c10_i32_159 : i32
      %367 = arith.index_cast %366 : i32 to index
      %c0_160 = arith.constant 0 : index
      %c0_161 = arith.constant 0 : index
      %368 = vector.load %arg10[%367, %c0_160, %c0_161] : memref<26x32x16xf32, #tpu.memory_space<vmem>>, vector<1x32x16xf32>
      %369 = vector.shape_cast %368 : vector<1x32x16xf32> to vector<32x16xf32>
      %c112 = arith.constant 112 : index
      %c0_162 = arith.constant 0 : index
      %370 = vector.load %arg5[%c112, %c0_162] : memref<121x16xf32, #tpu.memory_space<vmem>>, vector<1x16xf32>
      %371 = vector.shape_cast %370 : vector<1x16xf32> to vector<16xf32>
      %372 = vector.shape_cast %371 : vector<16xf32> to vector<1x16xf32>
      %373 = vector.broadcast %372 : vector<1x16xf32> to vector<32x16xf32>
      %374 = arith.mulf %369, %373 : vector<32x16xf32>
      %375 = arith.addf %365, %374 : vector<32x16xf32>
      %c3_i32_163 = arith.constant 3 : i32
      %376 = tpu.dynamic_rotate %375 by %c3_i32_163 dim 0 : vector<32x16xf32>, i32 -> vector<32x16xf32>
      %377 = arith.addf %264, %376 : vector<32x16xf32>
      %cst_164 = arith.constant 0.000000e+00 : f32
      %378 = vector.broadcast %cst_164 : f32 to vector<32x16xf32>
      %c0_i32_165 = arith.constant 0 : i32
      %379 = arith.addi %arg12, %c0_i32_165 : i32
      %380 = arith.index_cast %379 : i32 to index
      %c0_166 = arith.constant 0 : index
      %c0_167 = arith.constant 0 : index
      %381 = vector.load %arg10[%380, %c0_166, %c0_167] : memref<26x32x16xf32, #tpu.memory_space<vmem>>, vector<1x32x16xf32>
      %382 = vector.shape_cast %381 : vector<1x32x16xf32> to vector<32x16xf32>
      %c3 = arith.constant 3 : index
      %c0_168 = arith.constant 0 : index
      %383 = vector.load %arg5[%c3, %c0_168] : memref<121x16xf32, #tpu.memory_space<vmem>>, vector<1x16xf32>
      %384 = vector.shape_cast %383 : vector<1x16xf32> to vector<16xf32>
      %385 = vector.shape_cast %384 : vector<16xf32> to vector<1x16xf32>
      %386 = vector.broadcast %385 : vector<1x16xf32> to vector<32x16xf32>
      %387 = arith.mulf %382, %386 : vector<32x16xf32>
      %388 = arith.addf %378, %387 : vector<32x16xf32>
      %c1_i32_169 = arith.constant 1 : i32
      %389 = arith.addi %arg12, %c1_i32_169 : i32
      %390 = arith.index_cast %389 : i32 to index
      %c0_170 = arith.constant 0 : index
      %c0_171 = arith.constant 0 : index
      %391 = vector.load %arg10[%390, %c0_170, %c0_171] : memref<26x32x16xf32, #tpu.memory_space<vmem>>, vector<1x32x16xf32>
      %392 = vector.shape_cast %391 : vector<1x32x16xf32> to vector<32x16xf32>
      %c14 = arith.constant 14 : index
      %c0_172 = arith.constant 0 : index
      %393 = vector.load %arg5[%c14, %c0_172] : memref<121x16xf32, #tpu.memory_space<vmem>>, vector<1x16xf32>
      %394 = vector.shape_cast %393 : vector<1x16xf32> to vector<16xf32>
      %395 = vector.shape_cast %394 : vector<16xf32> to vector<1x16xf32>
      %396 = vector.broadcast %395 : vector<1x16xf32> to vector<32x16xf32>
      %397 = arith.mulf %392, %396 : vector<32x16xf32>
      %398 = arith.addf %388, %397 : vector<32x16xf32>
      %c2_i32_173 = arith.constant 2 : i32
      %399 = arith.addi %arg12, %c2_i32_173 : i32
      %400 = arith.index_cast %399 : i32 to index
      %c0_174 = arith.constant 0 : index
      %c0_175 = arith.constant 0 : index
      %401 = vector.load %arg10[%400, %c0_174, %c0_175] : memref<26x32x16xf32, #tpu.memory_space<vmem>>, vector<1x32x16xf32>
      %402 = vector.shape_cast %401 : vector<1x32x16xf32> to vector<32x16xf32>
      %c25 = arith.constant 25 : index
      %c0_176 = arith.constant 0 : index
      %403 = vector.load %arg5[%c25, %c0_176] : memref<121x16xf32, #tpu.memory_space<vmem>>, vector<1x16xf32>
      %404 = vector.shape_cast %403 : vector<1x16xf32> to vector<16xf32>
      %405 = vector.shape_cast %404 : vector<16xf32> to vector<1x16xf32>
      %406 = vector.broadcast %405 : vector<1x16xf32> to vector<32x16xf32>
      %407 = arith.mulf %402, %406 : vector<32x16xf32>
      %408 = arith.addf %398, %407 : vector<32x16xf32>
      %c3_i32_177 = arith.constant 3 : i32
      %409 = arith.addi %arg12, %c3_i32_177 : i32
      %410 = arith.index_cast %409 : i32 to index
      %c0_178 = arith.constant 0 : index
      %c0_179 = arith.constant 0 : index
      %411 = vector.load %arg10[%410, %c0_178, %c0_179] : memref<26x32x16xf32, #tpu.memory_space<vmem>>, vector<1x32x16xf32>
      %412 = vector.shape_cast %411 : vector<1x32x16xf32> to vector<32x16xf32>
      %c36 = arith.constant 36 : index
      %c0_180 = arith.constant 0 : index
      %413 = vector.load %arg5[%c36, %c0_180] : memref<121x16xf32, #tpu.memory_space<vmem>>, vector<1x16xf32>
      %414 = vector.shape_cast %413 : vector<1x16xf32> to vector<16xf32>
      %415 = vector.shape_cast %414 : vector<16xf32> to vector<1x16xf32>
      %416 = vector.broadcast %415 : vector<1x16xf32> to vector<32x16xf32>
      %417 = arith.mulf %412, %416 : vector<32x16xf32>
      %418 = arith.addf %408, %417 : vector<32x16xf32>
      %c4_i32_181 = arith.constant 4 : i32
      %419 = arith.addi %arg12, %c4_i32_181 : i32
      %420 = arith.index_cast %419 : i32 to index
      %c0_182 = arith.constant 0 : index
      %c0_183 = arith.constant 0 : index
      %421 = vector.load %arg10[%420, %c0_182, %c0_183] : memref<26x32x16xf32, #tpu.memory_space<vmem>>, vector<1x32x16xf32>
      %422 = vector.shape_cast %421 : vector<1x32x16xf32> to vector<32x16xf32>
      %c47 = arith.constant 47 : index
      %c0_184 = arith.constant 0 : index
      %423 = vector.load %arg5[%c47, %c0_184] : memref<121x16xf32, #tpu.memory_space<vmem>>, vector<1x16xf32>
      %424 = vector.shape_cast %423 : vector<1x16xf32> to vector<16xf32>
      %425 = vector.shape_cast %424 : vector<16xf32> to vector<1x16xf32>
      %426 = vector.broadcast %425 : vector<1x16xf32> to vector<32x16xf32>
      %427 = arith.mulf %422, %426 : vector<32x16xf32>
      %428 = arith.addf %418, %427 : vector<32x16xf32>
      %c5_i32_185 = arith.constant 5 : i32
      %429 = arith.addi %arg12, %c5_i32_185 : i32
      %430 = arith.index_cast %429 : i32 to index
      %c0_186 = arith.constant 0 : index
      %c0_187 = arith.constant 0 : index
      %431 = vector.load %arg10[%430, %c0_186, %c0_187] : memref<26x32x16xf32, #tpu.memory_space<vmem>>, vector<1x32x16xf32>
      %432 = vector.shape_cast %431 : vector<1x32x16xf32> to vector<32x16xf32>
      %c58 = arith.constant 58 : index
      %c0_188 = arith.constant 0 : index
      %433 = vector.load %arg5[%c58, %c0_188] : memref<121x16xf32, #tpu.memory_space<vmem>>, vector<1x16xf32>
      %434 = vector.shape_cast %433 : vector<1x16xf32> to vector<16xf32>
      %435 = vector.shape_cast %434 : vector<16xf32> to vector<1x16xf32>
      %436 = vector.broadcast %435 : vector<1x16xf32> to vector<32x16xf32>
      %437 = arith.mulf %432, %436 : vector<32x16xf32>
      %438 = arith.addf %428, %437 : vector<32x16xf32>
      %c6_i32_189 = arith.constant 6 : i32
      %439 = arith.addi %arg12, %c6_i32_189 : i32
      %440 = arith.index_cast %439 : i32 to index
      %c0_190 = arith.constant 0 : index
      %c0_191 = arith.constant 0 : index
      %441 = vector.load %arg10[%440, %c0_190, %c0_191] : memref<26x32x16xf32, #tpu.memory_space<vmem>>, vector<1x32x16xf32>
      %442 = vector.shape_cast %441 : vector<1x32x16xf32> to vector<32x16xf32>
      %c69 = arith.constant 69 : index
      %c0_192 = arith.constant 0 : index
      %443 = vector.load %arg5[%c69, %c0_192] : memref<121x16xf32, #tpu.memory_space<vmem>>, vector<1x16xf32>
      %444 = vector.shape_cast %443 : vector<1x16xf32> to vector<16xf32>
      %445 = vector.shape_cast %444 : vector<16xf32> to vector<1x16xf32>
      %446 = vector.broadcast %445 : vector<1x16xf32> to vector<32x16xf32>
      %447 = arith.mulf %442, %446 : vector<32x16xf32>
      %448 = arith.addf %438, %447 : vector<32x16xf32>
      %c7_i32_193 = arith.constant 7 : i32
      %449 = arith.addi %arg12, %c7_i32_193 : i32
      %450 = arith.index_cast %449 : i32 to index
      %c0_194 = arith.constant 0 : index
      %c0_195 = arith.constant 0 : index
      %451 = vector.load %arg10[%450, %c0_194, %c0_195] : memref<26x32x16xf32, #tpu.memory_space<vmem>>, vector<1x32x16xf32>
      %452 = vector.shape_cast %451 : vector<1x32x16xf32> to vector<32x16xf32>
      %c80_196 = arith.constant 80 : index
      %c0_197 = arith.constant 0 : index
      %453 = vector.load %arg5[%c80_196, %c0_197] : memref<121x16xf32, #tpu.memory_space<vmem>>, vector<1x16xf32>
      %454 = vector.shape_cast %453 : vector<1x16xf32> to vector<16xf32>
      %455 = vector.shape_cast %454 : vector<16xf32> to vector<1x16xf32>
      %456 = vector.broadcast %455 : vector<1x16xf32> to vector<32x16xf32>
      %457 = arith.mulf %452, %456 : vector<32x16xf32>
      %458 = arith.addf %448, %457 : vector<32x16xf32>
      %c8_i32_198 = arith.constant 8 : i32
      %459 = arith.addi %arg12, %c8_i32_198 : i32
      %460 = arith.index_cast %459 : i32 to index
      %c0_199 = arith.constant 0 : index
      %c0_200 = arith.constant 0 : index
      %461 = vector.load %arg10[%460, %c0_199, %c0_200] : memref<26x32x16xf32, #tpu.memory_space<vmem>>, vector<1x32x16xf32>
      %462 = vector.shape_cast %461 : vector<1x32x16xf32> to vector<32x16xf32>
      %c91 = arith.constant 91 : index
      %c0_201 = arith.constant 0 : index
      %463 = vector.load %arg5[%c91, %c0_201] : memref<121x16xf32, #tpu.memory_space<vmem>>, vector<1x16xf32>
      %464 = vector.shape_cast %463 : vector<1x16xf32> to vector<16xf32>
      %465 = vector.shape_cast %464 : vector<16xf32> to vector<1x16xf32>
      %466 = vector.broadcast %465 : vector<1x16xf32> to vector<32x16xf32>
      %467 = arith.mulf %462, %466 : vector<32x16xf32>
      %468 = arith.addf %458, %467 : vector<32x16xf32>
      %c9_i32_202 = arith.constant 9 : i32
      %469 = arith.addi %arg12, %c9_i32_202 : i32
      %470 = arith.index_cast %469 : i32 to index
      %c0_203 = arith.constant 0 : index
      %c0_204 = arith.constant 0 : index
      %471 = vector.load %arg10[%470, %c0_203, %c0_204] : memref<26x32x16xf32, #tpu.memory_space<vmem>>, vector<1x32x16xf32>
      %472 = vector.shape_cast %471 : vector<1x32x16xf32> to vector<32x16xf32>
      %c102 = arith.constant 102 : index
      %c0_205 = arith.constant 0 : index
      %473 = vector.load %arg5[%c102, %c0_205] : memref<121x16xf32, #tpu.memory_space<vmem>>, vector<1x16xf32>
      %474 = vector.shape_cast %473 : vector<1x16xf32> to vector<16xf32>
      %475 = vector.shape_cast %474 : vector<16xf32> to vector<1x16xf32>
      %476 = vector.broadcast %475 : vector<1x16xf32> to vector<32x16xf32>
      %477 = arith.mulf %472, %476 : vector<32x16xf32>
      %478 = arith.addf %468, %477 : vector<32x16xf32>
      %c10_i32_206 = arith.constant 10 : i32
      %479 = arith.addi %arg12, %c10_i32_206 : i32
      %480 = arith.index_cast %479 : i32 to index
      %c0_207 = arith.constant 0 : index
      %c0_208 = arith.constant 0 : index
      %481 = vector.load %arg10[%480, %c0_207, %c0_208] : memref<26x32x16xf32, #tpu.memory_space<vmem>>, vector<1x32x16xf32>
      %482 = vector.shape_cast %481 : vector<1x32x16xf32> to vector<32x16xf32>
      %c113 = arith.constant 113 : index
      %c0_209 = arith.constant 0 : index
      %483 = vector.load %arg5[%c113, %c0_209] : memref<121x16xf32, #tpu.memory_space<vmem>>, vector<1x16xf32>
      %484 = vector.shape_cast %483 : vector<1x16xf32> to vector<16xf32>
      %485 = vector.shape_cast %484 : vector<16xf32> to vector<1x16xf32>
      %486 = vector.broadcast %485 : vector<1x16xf32> to vector<32x16xf32>
      %487 = arith.mulf %482, %486 : vector<32x16xf32>
      %488 = arith.addf %478, %487 : vector<32x16xf32>
      %c2_i32_210 = arith.constant 2 : i32
      %489 = tpu.dynamic_rotate %488 by %c2_i32_210 dim 0 : vector<32x16xf32>, i32 -> vector<32x16xf32>
      %490 = arith.addf %377, %489 : vector<32x16xf32>
      %cst_211 = arith.constant 0.000000e+00 : f32
      %491 = vector.broadcast %cst_211 : f32 to vector<32x16xf32>
      %c0_i32_212 = arith.constant 0 : i32
      %492 = arith.addi %arg12, %c0_i32_212 : i32
      %493 = arith.index_cast %492 : i32 to index
      %c0_213 = arith.constant 0 : index
      %c0_214 = arith.constant 0 : index
      %494 = vector.load %arg10[%493, %c0_213, %c0_214] : memref<26x32x16xf32, #tpu.memory_space<vmem>>, vector<1x32x16xf32>
      %495 = vector.shape_cast %494 : vector<1x32x16xf32> to vector<32x16xf32>
      %c4 = arith.constant 4 : index
      %c0_215 = arith.constant 0 : index
      %496 = vector.load %arg5[%c4, %c0_215] : memref<121x16xf32, #tpu.memory_space<vmem>>, vector<1x16xf32>
      %497 = vector.shape_cast %496 : vector<1x16xf32> to vector<16xf32>
      %498 = vector.shape_cast %497 : vector<16xf32> to vector<1x16xf32>
      %499 = vector.broadcast %498 : vector<1x16xf32> to vector<32x16xf32>
      %500 = arith.mulf %495, %499 : vector<32x16xf32>
      %501 = arith.addf %491, %500 : vector<32x16xf32>
      %c1_i32_216 = arith.constant 1 : i32
      %502 = arith.addi %arg12, %c1_i32_216 : i32
      %503 = arith.index_cast %502 : i32 to index
      %c0_217 = arith.constant 0 : index
      %c0_218 = arith.constant 0 : index
      %504 = vector.load %arg10[%503, %c0_217, %c0_218] : memref<26x32x16xf32, #tpu.memory_space<vmem>>, vector<1x32x16xf32>
      %505 = vector.shape_cast %504 : vector<1x32x16xf32> to vector<32x16xf32>
      %c15 = arith.constant 15 : index
      %c0_219 = arith.constant 0 : index
      %506 = vector.load %arg5[%c15, %c0_219] : memref<121x16xf32, #tpu.memory_space<vmem>>, vector<1x16xf32>
      %507 = vector.shape_cast %506 : vector<1x16xf32> to vector<16xf32>
      %508 = vector.shape_cast %507 : vector<16xf32> to vector<1x16xf32>
      %509 = vector.broadcast %508 : vector<1x16xf32> to vector<32x16xf32>
      %510 = arith.mulf %505, %509 : vector<32x16xf32>
      %511 = arith.addf %501, %510 : vector<32x16xf32>
      %c2_i32_220 = arith.constant 2 : i32
      %512 = arith.addi %arg12, %c2_i32_220 : i32
      %513 = arith.index_cast %512 : i32 to index
      %c0_221 = arith.constant 0 : index
      %c0_222 = arith.constant 0 : index
      %514 = vector.load %arg10[%513, %c0_221, %c0_222] : memref<26x32x16xf32, #tpu.memory_space<vmem>>, vector<1x32x16xf32>
      %515 = vector.shape_cast %514 : vector<1x32x16xf32> to vector<32x16xf32>
      %c26 = arith.constant 26 : index
      %c0_223 = arith.constant 0 : index
      %516 = vector.load %arg5[%c26, %c0_223] : memref<121x16xf32, #tpu.memory_space<vmem>>, vector<1x16xf32>
      %517 = vector.shape_cast %516 : vector<1x16xf32> to vector<16xf32>
      %518 = vector.shape_cast %517 : vector<16xf32> to vector<1x16xf32>
      %519 = vector.broadcast %518 : vector<1x16xf32> to vector<32x16xf32>
      %520 = arith.mulf %515, %519 : vector<32x16xf32>
      %521 = arith.addf %511, %520 : vector<32x16xf32>
      %c3_i32_224 = arith.constant 3 : i32
      %522 = arith.addi %arg12, %c3_i32_224 : i32
      %523 = arith.index_cast %522 : i32 to index
      %c0_225 = arith.constant 0 : index
      %c0_226 = arith.constant 0 : index
      %524 = vector.load %arg10[%523, %c0_225, %c0_226] : memref<26x32x16xf32, #tpu.memory_space<vmem>>, vector<1x32x16xf32>
      %525 = vector.shape_cast %524 : vector<1x32x16xf32> to vector<32x16xf32>
      %c37 = arith.constant 37 : index
      %c0_227 = arith.constant 0 : index
      %526 = vector.load %arg5[%c37, %c0_227] : memref<121x16xf32, #tpu.memory_space<vmem>>, vector<1x16xf32>
      %527 = vector.shape_cast %526 : vector<1x16xf32> to vector<16xf32>
      %528 = vector.shape_cast %527 : vector<16xf32> to vector<1x16xf32>
      %529 = vector.broadcast %528 : vector<1x16xf32> to vector<32x16xf32>
      %530 = arith.mulf %525, %529 : vector<32x16xf32>
      %531 = arith.addf %521, %530 : vector<32x16xf32>
      %c4_i32_228 = arith.constant 4 : i32
      %532 = arith.addi %arg12, %c4_i32_228 : i32
      %533 = arith.index_cast %532 : i32 to index
      %c0_229 = arith.constant 0 : index
      %c0_230 = arith.constant 0 : index
      %534 = vector.load %arg10[%533, %c0_229, %c0_230] : memref<26x32x16xf32, #tpu.memory_space<vmem>>, vector<1x32x16xf32>
      %535 = vector.shape_cast %534 : vector<1x32x16xf32> to vector<32x16xf32>
      %c48 = arith.constant 48 : index
      %c0_231 = arith.constant 0 : index
      %536 = vector.load %arg5[%c48, %c0_231] : memref<121x16xf32, #tpu.memory_space<vmem>>, vector<1x16xf32>
      %537 = vector.shape_cast %536 : vector<1x16xf32> to vector<16xf32>
      %538 = vector.shape_cast %537 : vector<16xf32> to vector<1x16xf32>
      %539 = vector.broadcast %538 : vector<1x16xf32> to vector<32x16xf32>
      %540 = arith.mulf %535, %539 : vector<32x16xf32>
      %541 = arith.addf %531, %540 : vector<32x16xf32>
      %c5_i32_232 = arith.constant 5 : i32
      %542 = arith.addi %arg12, %c5_i32_232 : i32
      %543 = arith.index_cast %542 : i32 to index
      %c0_233 = arith.constant 0 : index
      %c0_234 = arith.constant 0 : index
      %544 = vector.load %arg10[%543, %c0_233, %c0_234] : memref<26x32x16xf32, #tpu.memory_space<vmem>>, vector<1x32x16xf32>
      %545 = vector.shape_cast %544 : vector<1x32x16xf32> to vector<32x16xf32>
      %c59 = arith.constant 59 : index
      %c0_235 = arith.constant 0 : index
      %546 = vector.load %arg5[%c59, %c0_235] : memref<121x16xf32, #tpu.memory_space<vmem>>, vector<1x16xf32>
      %547 = vector.shape_cast %546 : vector<1x16xf32> to vector<16xf32>
      %548 = vector.shape_cast %547 : vector<16xf32> to vector<1x16xf32>
      %549 = vector.broadcast %548 : vector<1x16xf32> to vector<32x16xf32>
      %550 = arith.mulf %545, %549 : vector<32x16xf32>
      %551 = arith.addf %541, %550 : vector<32x16xf32>
      %c6_i32_236 = arith.constant 6 : i32
      %552 = arith.addi %arg12, %c6_i32_236 : i32
      %553 = arith.index_cast %552 : i32 to index
      %c0_237 = arith.constant 0 : index
      %c0_238 = arith.constant 0 : index
      %554 = vector.load %arg10[%553, %c0_237, %c0_238] : memref<26x32x16xf32, #tpu.memory_space<vmem>>, vector<1x32x16xf32>
      %555 = vector.shape_cast %554 : vector<1x32x16xf32> to vector<32x16xf32>
      %c70 = arith.constant 70 : index
      %c0_239 = arith.constant 0 : index
      %556 = vector.load %arg5[%c70, %c0_239] : memref<121x16xf32, #tpu.memory_space<vmem>>, vector<1x16xf32>
      %557 = vector.shape_cast %556 : vector<1x16xf32> to vector<16xf32>
      %558 = vector.shape_cast %557 : vector<16xf32> to vector<1x16xf32>
      %559 = vector.broadcast %558 : vector<1x16xf32> to vector<32x16xf32>
      %560 = arith.mulf %555, %559 : vector<32x16xf32>
      %561 = arith.addf %551, %560 : vector<32x16xf32>
      %c7_i32_240 = arith.constant 7 : i32
      %562 = arith.addi %arg12, %c7_i32_240 : i32
      %563 = arith.index_cast %562 : i32 to index
      %c0_241 = arith.constant 0 : index
      %c0_242 = arith.constant 0 : index
      %564 = vector.load %arg10[%563, %c0_241, %c0_242] : memref<26x32x16xf32, #tpu.memory_space<vmem>>, vector<1x32x16xf32>
      %565 = vector.shape_cast %564 : vector<1x32x16xf32> to vector<32x16xf32>
      %c81 = arith.constant 81 : index
      %c0_243 = arith.constant 0 : index
      %566 = vector.load %arg5[%c81, %c0_243] : memref<121x16xf32, #tpu.memory_space<vmem>>, vector<1x16xf32>
      %567 = vector.shape_cast %566 : vector<1x16xf32> to vector<16xf32>
      %568 = vector.shape_cast %567 : vector<16xf32> to vector<1x16xf32>
      %569 = vector.broadcast %568 : vector<1x16xf32> to vector<32x16xf32>
      %570 = arith.mulf %565, %569 : vector<32x16xf32>
      %571 = arith.addf %561, %570 : vector<32x16xf32>
      %c8_i32_244 = arith.constant 8 : i32
      %572 = arith.addi %arg12, %c8_i32_244 : i32
      %573 = arith.index_cast %572 : i32 to index
      %c0_245 = arith.constant 0 : index
      %c0_246 = arith.constant 0 : index
      %574 = vector.load %arg10[%573, %c0_245, %c0_246] : memref<26x32x16xf32, #tpu.memory_space<vmem>>, vector<1x32x16xf32>
      %575 = vector.shape_cast %574 : vector<1x32x16xf32> to vector<32x16xf32>
      %c92 = arith.constant 92 : index
      %c0_247 = arith.constant 0 : index
      %576 = vector.load %arg5[%c92, %c0_247] : memref<121x16xf32, #tpu.memory_space<vmem>>, vector<1x16xf32>
      %577 = vector.shape_cast %576 : vector<1x16xf32> to vector<16xf32>
      %578 = vector.shape_cast %577 : vector<16xf32> to vector<1x16xf32>
      %579 = vector.broadcast %578 : vector<1x16xf32> to vector<32x16xf32>
      %580 = arith.mulf %575, %579 : vector<32x16xf32>
      %581 = arith.addf %571, %580 : vector<32x16xf32>
      %c9_i32_248 = arith.constant 9 : i32
      %582 = arith.addi %arg12, %c9_i32_248 : i32
      %583 = arith.index_cast %582 : i32 to index
      %c0_249 = arith.constant 0 : index
      %c0_250 = arith.constant 0 : index
      %584 = vector.load %arg10[%583, %c0_249, %c0_250] : memref<26x32x16xf32, #tpu.memory_space<vmem>>, vector<1x32x16xf32>
      %585 = vector.shape_cast %584 : vector<1x32x16xf32> to vector<32x16xf32>
      %c103 = arith.constant 103 : index
      %c0_251 = arith.constant 0 : index
      %586 = vector.load %arg5[%c103, %c0_251] : memref<121x16xf32, #tpu.memory_space<vmem>>, vector<1x16xf32>
      %587 = vector.shape_cast %586 : vector<1x16xf32> to vector<16xf32>
      %588 = vector.shape_cast %587 : vector<16xf32> to vector<1x16xf32>
      %589 = vector.broadcast %588 : vector<1x16xf32> to vector<32x16xf32>
      %590 = arith.mulf %585, %589 : vector<32x16xf32>
      %591 = arith.addf %581, %590 : vector<32x16xf32>
      %c10_i32_252 = arith.constant 10 : i32
      %592 = arith.addi %arg12, %c10_i32_252 : i32
      %593 = arith.index_cast %592 : i32 to index
      %c0_253 = arith.constant 0 : index
      %c0_254 = arith.constant 0 : index
      %594 = vector.load %arg10[%593, %c0_253, %c0_254] : memref<26x32x16xf32, #tpu.memory_space<vmem>>, vector<1x32x16xf32>
      %595 = vector.shape_cast %594 : vector<1x32x16xf32> to vector<32x16xf32>
      %c114 = arith.constant 114 : index
      %c0_255 = arith.constant 0 : index
      %596 = vector.load %arg5[%c114, %c0_255] : memref<121x16xf32, #tpu.memory_space<vmem>>, vector<1x16xf32>
      %597 = vector.shape_cast %596 : vector<1x16xf32> to vector<16xf32>
      %598 = vector.shape_cast %597 : vector<16xf32> to vector<1x16xf32>
      %599 = vector.broadcast %598 : vector<1x16xf32> to vector<32x16xf32>
      %600 = arith.mulf %595, %599 : vector<32x16xf32>
      %601 = arith.addf %591, %600 : vector<32x16xf32>
      %c1_i32_256 = arith.constant 1 : i32
      %602 = tpu.dynamic_rotate %601 by %c1_i32_256 dim 0 : vector<32x16xf32>, i32 -> vector<32x16xf32>
      %603 = arith.addf %490, %602 : vector<32x16xf32>
      %cst_257 = arith.constant 0.000000e+00 : f32
      %604 = vector.broadcast %cst_257 : f32 to vector<32x16xf32>
      %c0_i32_258 = arith.constant 0 : i32
      %605 = arith.addi %arg12, %c0_i32_258 : i32
      %606 = arith.index_cast %605 : i32 to index
      %c0_259 = arith.constant 0 : index
      %c0_260 = arith.constant 0 : index
      %607 = vector.load %arg10[%606, %c0_259, %c0_260] : memref<26x32x16xf32, #tpu.memory_space<vmem>>, vector<1x32x16xf32>
      %608 = vector.shape_cast %607 : vector<1x32x16xf32> to vector<32x16xf32>
      %c5 = arith.constant 5 : index
      %c0_261 = arith.constant 0 : index
      %609 = vector.load %arg5[%c5, %c0_261] : memref<121x16xf32, #tpu.memory_space<vmem>>, vector<1x16xf32>
      %610 = vector.shape_cast %609 : vector<1x16xf32> to vector<16xf32>
      %611 = vector.shape_cast %610 : vector<16xf32> to vector<1x16xf32>
      %612 = vector.broadcast %611 : vector<1x16xf32> to vector<32x16xf32>
      %613 = arith.mulf %608, %612 : vector<32x16xf32>
      %614 = arith.addf %604, %613 : vector<32x16xf32>
      %c1_i32_262 = arith.constant 1 : i32
      %615 = arith.addi %arg12, %c1_i32_262 : i32
      %616 = arith.index_cast %615 : i32 to index
      %c0_263 = arith.constant 0 : index
      %c0_264 = arith.constant 0 : index
      %617 = vector.load %arg10[%616, %c0_263, %c0_264] : memref<26x32x16xf32, #tpu.memory_space<vmem>>, vector<1x32x16xf32>
      %618 = vector.shape_cast %617 : vector<1x32x16xf32> to vector<32x16xf32>
      %c16 = arith.constant 16 : index
      %c0_265 = arith.constant 0 : index
      %619 = vector.load %arg5[%c16, %c0_265] : memref<121x16xf32, #tpu.memory_space<vmem>>, vector<1x16xf32>
      %620 = vector.shape_cast %619 : vector<1x16xf32> to vector<16xf32>
      %621 = vector.shape_cast %620 : vector<16xf32> to vector<1x16xf32>
      %622 = vector.broadcast %621 : vector<1x16xf32> to vector<32x16xf32>
      %623 = arith.mulf %618, %622 : vector<32x16xf32>
      %624 = arith.addf %614, %623 : vector<32x16xf32>
      %c2_i32_266 = arith.constant 2 : i32
      %625 = arith.addi %arg12, %c2_i32_266 : i32
      %626 = arith.index_cast %625 : i32 to index
      %c0_267 = arith.constant 0 : index
      %c0_268 = arith.constant 0 : index
      %627 = vector.load %arg10[%626, %c0_267, %c0_268] : memref<26x32x16xf32, #tpu.memory_space<vmem>>, vector<1x32x16xf32>
      %628 = vector.shape_cast %627 : vector<1x32x16xf32> to vector<32x16xf32>
      %c27 = arith.constant 27 : index
      %c0_269 = arith.constant 0 : index
      %629 = vector.load %arg5[%c27, %c0_269] : memref<121x16xf32, #tpu.memory_space<vmem>>, vector<1x16xf32>
      %630 = vector.shape_cast %629 : vector<1x16xf32> to vector<16xf32>
      %631 = vector.shape_cast %630 : vector<16xf32> to vector<1x16xf32>
      %632 = vector.broadcast %631 : vector<1x16xf32> to vector<32x16xf32>
      %633 = arith.mulf %628, %632 : vector<32x16xf32>
      %634 = arith.addf %624, %633 : vector<32x16xf32>
      %c3_i32_270 = arith.constant 3 : i32
      %635 = arith.addi %arg12, %c3_i32_270 : i32
      %636 = arith.index_cast %635 : i32 to index
      %c0_271 = arith.constant 0 : index
      %c0_272 = arith.constant 0 : index
      %637 = vector.load %arg10[%636, %c0_271, %c0_272] : memref<26x32x16xf32, #tpu.memory_space<vmem>>, vector<1x32x16xf32>
      %638 = vector.shape_cast %637 : vector<1x32x16xf32> to vector<32x16xf32>
      %c38 = arith.constant 38 : index
      %c0_273 = arith.constant 0 : index
      %639 = vector.load %arg5[%c38, %c0_273] : memref<121x16xf32, #tpu.memory_space<vmem>>, vector<1x16xf32>
      %640 = vector.shape_cast %639 : vector<1x16xf32> to vector<16xf32>
      %641 = vector.shape_cast %640 : vector<16xf32> to vector<1x16xf32>
      %642 = vector.broadcast %641 : vector<1x16xf32> to vector<32x16xf32>
      %643 = arith.mulf %638, %642 : vector<32x16xf32>
      %644 = arith.addf %634, %643 : vector<32x16xf32>
      %c4_i32_274 = arith.constant 4 : i32
      %645 = arith.addi %arg12, %c4_i32_274 : i32
      %646 = arith.index_cast %645 : i32 to index
      %c0_275 = arith.constant 0 : index
      %c0_276 = arith.constant 0 : index
      %647 = vector.load %arg10[%646, %c0_275, %c0_276] : memref<26x32x16xf32, #tpu.memory_space<vmem>>, vector<1x32x16xf32>
      %648 = vector.shape_cast %647 : vector<1x32x16xf32> to vector<32x16xf32>
      %c49 = arith.constant 49 : index
      %c0_277 = arith.constant 0 : index
      %649 = vector.load %arg5[%c49, %c0_277] : memref<121x16xf32, #tpu.memory_space<vmem>>, vector<1x16xf32>
      %650 = vector.shape_cast %649 : vector<1x16xf32> to vector<16xf32>
      %651 = vector.shape_cast %650 : vector<16xf32> to vector<1x16xf32>
      %652 = vector.broadcast %651 : vector<1x16xf32> to vector<32x16xf32>
      %653 = arith.mulf %648, %652 : vector<32x16xf32>
      %654 = arith.addf %644, %653 : vector<32x16xf32>
      %c5_i32_278 = arith.constant 5 : i32
      %655 = arith.addi %arg12, %c5_i32_278 : i32
      %656 = arith.index_cast %655 : i32 to index
      %c0_279 = arith.constant 0 : index
      %c0_280 = arith.constant 0 : index
      %657 = vector.load %arg10[%656, %c0_279, %c0_280] : memref<26x32x16xf32, #tpu.memory_space<vmem>>, vector<1x32x16xf32>
      %658 = vector.shape_cast %657 : vector<1x32x16xf32> to vector<32x16xf32>
      %c60 = arith.constant 60 : index
      %c0_281 = arith.constant 0 : index
      %659 = vector.load %arg5[%c60, %c0_281] : memref<121x16xf32, #tpu.memory_space<vmem>>, vector<1x16xf32>
      %660 = vector.shape_cast %659 : vector<1x16xf32> to vector<16xf32>
      %661 = vector.shape_cast %660 : vector<16xf32> to vector<1x16xf32>
      %662 = vector.broadcast %661 : vector<1x16xf32> to vector<32x16xf32>
      %663 = arith.mulf %658, %662 : vector<32x16xf32>
      %664 = arith.addf %654, %663 : vector<32x16xf32>
      %c6_i32_282 = arith.constant 6 : i32
      %665 = arith.addi %arg12, %c6_i32_282 : i32
      %666 = arith.index_cast %665 : i32 to index
      %c0_283 = arith.constant 0 : index
      %c0_284 = arith.constant 0 : index
      %667 = vector.load %arg10[%666, %c0_283, %c0_284] : memref<26x32x16xf32, #tpu.memory_space<vmem>>, vector<1x32x16xf32>
      %668 = vector.shape_cast %667 : vector<1x32x16xf32> to vector<32x16xf32>
      %c71 = arith.constant 71 : index
      %c0_285 = arith.constant 0 : index
      %669 = vector.load %arg5[%c71, %c0_285] : memref<121x16xf32, #tpu.memory_space<vmem>>, vector<1x16xf32>
      %670 = vector.shape_cast %669 : vector<1x16xf32> to vector<16xf32>
      %671 = vector.shape_cast %670 : vector<16xf32> to vector<1x16xf32>
      %672 = vector.broadcast %671 : vector<1x16xf32> to vector<32x16xf32>
      %673 = arith.mulf %668, %672 : vector<32x16xf32>
      %674 = arith.addf %664, %673 : vector<32x16xf32>
      %c7_i32_286 = arith.constant 7 : i32
      %675 = arith.addi %arg12, %c7_i32_286 : i32
      %676 = arith.index_cast %675 : i32 to index
      %c0_287 = arith.constant 0 : index
      %c0_288 = arith.constant 0 : index
      %677 = vector.load %arg10[%676, %c0_287, %c0_288] : memref<26x32x16xf32, #tpu.memory_space<vmem>>, vector<1x32x16xf32>
      %678 = vector.shape_cast %677 : vector<1x32x16xf32> to vector<32x16xf32>
      %c82 = arith.constant 82 : index
      %c0_289 = arith.constant 0 : index
      %679 = vector.load %arg5[%c82, %c0_289] : memref<121x16xf32, #tpu.memory_space<vmem>>, vector<1x16xf32>
      %680 = vector.shape_cast %679 : vector<1x16xf32> to vector<16xf32>
      %681 = vector.shape_cast %680 : vector<16xf32> to vector<1x16xf32>
      %682 = vector.broadcast %681 : vector<1x16xf32> to vector<32x16xf32>
      %683 = arith.mulf %678, %682 : vector<32x16xf32>
      %684 = arith.addf %674, %683 : vector<32x16xf32>
      %c8_i32_290 = arith.constant 8 : i32
      %685 = arith.addi %arg12, %c8_i32_290 : i32
      %686 = arith.index_cast %685 : i32 to index
      %c0_291 = arith.constant 0 : index
      %c0_292 = arith.constant 0 : index
      %687 = vector.load %arg10[%686, %c0_291, %c0_292] : memref<26x32x16xf32, #tpu.memory_space<vmem>>, vector<1x32x16xf32>
      %688 = vector.shape_cast %687 : vector<1x32x16xf32> to vector<32x16xf32>
      %c93 = arith.constant 93 : index
      %c0_293 = arith.constant 0 : index
      %689 = vector.load %arg5[%c93, %c0_293] : memref<121x16xf32, #tpu.memory_space<vmem>>, vector<1x16xf32>
      %690 = vector.shape_cast %689 : vector<1x16xf32> to vector<16xf32>
      %691 = vector.shape_cast %690 : vector<16xf32> to vector<1x16xf32>
      %692 = vector.broadcast %691 : vector<1x16xf32> to vector<32x16xf32>
      %693 = arith.mulf %688, %692 : vector<32x16xf32>
      %694 = arith.addf %684, %693 : vector<32x16xf32>
      %c9_i32_294 = arith.constant 9 : i32
      %695 = arith.addi %arg12, %c9_i32_294 : i32
      %696 = arith.index_cast %695 : i32 to index
      %c0_295 = arith.constant 0 : index
      %c0_296 = arith.constant 0 : index
      %697 = vector.load %arg10[%696, %c0_295, %c0_296] : memref<26x32x16xf32, #tpu.memory_space<vmem>>, vector<1x32x16xf32>
      %698 = vector.shape_cast %697 : vector<1x32x16xf32> to vector<32x16xf32>
      %c104 = arith.constant 104 : index
      %c0_297 = arith.constant 0 : index
      %699 = vector.load %arg5[%c104, %c0_297] : memref<121x16xf32, #tpu.memory_space<vmem>>, vector<1x16xf32>
      %700 = vector.shape_cast %699 : vector<1x16xf32> to vector<16xf32>
      %701 = vector.shape_cast %700 : vector<16xf32> to vector<1x16xf32>
      %702 = vector.broadcast %701 : vector<1x16xf32> to vector<32x16xf32>
      %703 = arith.mulf %698, %702 : vector<32x16xf32>
      %704 = arith.addf %694, %703 : vector<32x16xf32>
      %c10_i32_298 = arith.constant 10 : i32
      %705 = arith.addi %arg12, %c10_i32_298 : i32
      %706 = arith.index_cast %705 : i32 to index
      %c0_299 = arith.constant 0 : index
      %c0_300 = arith.constant 0 : index
      %707 = vector.load %arg10[%706, %c0_299, %c0_300] : memref<26x32x16xf32, #tpu.memory_space<vmem>>, vector<1x32x16xf32>
      %708 = vector.shape_cast %707 : vector<1x32x16xf32> to vector<32x16xf32>
      %c115 = arith.constant 115 : index
      %c0_301 = arith.constant 0 : index
      %709 = vector.load %arg5[%c115, %c0_301] : memref<121x16xf32, #tpu.memory_space<vmem>>, vector<1x16xf32>
      %710 = vector.shape_cast %709 : vector<1x16xf32> to vector<16xf32>
      %711 = vector.shape_cast %710 : vector<16xf32> to vector<1x16xf32>
      %712 = vector.broadcast %711 : vector<1x16xf32> to vector<32x16xf32>
      %713 = arith.mulf %708, %712 : vector<32x16xf32>
      %714 = arith.addf %704, %713 : vector<32x16xf32>
      %715 = arith.addf %603, %714 : vector<32x16xf32>
      %cst_302 = arith.constant 0.000000e+00 : f32
      %716 = vector.broadcast %cst_302 : f32 to vector<32x16xf32>
      %c0_i32_303 = arith.constant 0 : i32
      %717 = arith.addi %arg12, %c0_i32_303 : i32
      %718 = arith.index_cast %717 : i32 to index
      %c0_304 = arith.constant 0 : index
      %c0_305 = arith.constant 0 : index
      %719 = vector.load %arg10[%718, %c0_304, %c0_305] : memref<26x32x16xf32, #tpu.memory_space<vmem>>, vector<1x32x16xf32>
      %720 = vector.shape_cast %719 : vector<1x32x16xf32> to vector<32x16xf32>
      %c6 = arith.constant 6 : index
      %c0_306 = arith.constant 0 : index
      %721 = vector.load %arg5[%c6, %c0_306] : memref<121x16xf32, #tpu.memory_space<vmem>>, vector<1x16xf32>
      %722 = vector.shape_cast %721 : vector<1x16xf32> to vector<16xf32>
      %723 = vector.shape_cast %722 : vector<16xf32> to vector<1x16xf32>
      %724 = vector.broadcast %723 : vector<1x16xf32> to vector<32x16xf32>
      %725 = arith.mulf %720, %724 : vector<32x16xf32>
      %726 = arith.addf %716, %725 : vector<32x16xf32>
      %c1_i32_307 = arith.constant 1 : i32
      %727 = arith.addi %arg12, %c1_i32_307 : i32
      %728 = arith.index_cast %727 : i32 to index
      %c0_308 = arith.constant 0 : index
      %c0_309 = arith.constant 0 : index
      %729 = vector.load %arg10[%728, %c0_308, %c0_309] : memref<26x32x16xf32, #tpu.memory_space<vmem>>, vector<1x32x16xf32>
      %730 = vector.shape_cast %729 : vector<1x32x16xf32> to vector<32x16xf32>
      %c17 = arith.constant 17 : index
      %c0_310 = arith.constant 0 : index
      %731 = vector.load %arg5[%c17, %c0_310] : memref<121x16xf32, #tpu.memory_space<vmem>>, vector<1x16xf32>
      %732 = vector.shape_cast %731 : vector<1x16xf32> to vector<16xf32>
      %733 = vector.shape_cast %732 : vector<16xf32> to vector<1x16xf32>
      %734 = vector.broadcast %733 : vector<1x16xf32> to vector<32x16xf32>
      %735 = arith.mulf %730, %734 : vector<32x16xf32>
      %736 = arith.addf %726, %735 : vector<32x16xf32>
      %c2_i32_311 = arith.constant 2 : i32
      %737 = arith.addi %arg12, %c2_i32_311 : i32
      %738 = arith.index_cast %737 : i32 to index
      %c0_312 = arith.constant 0 : index
      %c0_313 = arith.constant 0 : index
      %739 = vector.load %arg10[%738, %c0_312, %c0_313] : memref<26x32x16xf32, #tpu.memory_space<vmem>>, vector<1x32x16xf32>
      %740 = vector.shape_cast %739 : vector<1x32x16xf32> to vector<32x16xf32>
      %c28 = arith.constant 28 : index
      %c0_314 = arith.constant 0 : index
      %741 = vector.load %arg5[%c28, %c0_314] : memref<121x16xf32, #tpu.memory_space<vmem>>, vector<1x16xf32>
      %742 = vector.shape_cast %741 : vector<1x16xf32> to vector<16xf32>
      %743 = vector.shape_cast %742 : vector<16xf32> to vector<1x16xf32>
      %744 = vector.broadcast %743 : vector<1x16xf32> to vector<32x16xf32>
      %745 = arith.mulf %740, %744 : vector<32x16xf32>
      %746 = arith.addf %736, %745 : vector<32x16xf32>
      %c3_i32_315 = arith.constant 3 : i32
      %747 = arith.addi %arg12, %c3_i32_315 : i32
      %748 = arith.index_cast %747 : i32 to index
      %c0_316 = arith.constant 0 : index
      %c0_317 = arith.constant 0 : index
      %749 = vector.load %arg10[%748, %c0_316, %c0_317] : memref<26x32x16xf32, #tpu.memory_space<vmem>>, vector<1x32x16xf32>
      %750 = vector.shape_cast %749 : vector<1x32x16xf32> to vector<32x16xf32>
      %c39 = arith.constant 39 : index
      %c0_318 = arith.constant 0 : index
      %751 = vector.load %arg5[%c39, %c0_318] : memref<121x16xf32, #tpu.memory_space<vmem>>, vector<1x16xf32>
      %752 = vector.shape_cast %751 : vector<1x16xf32> to vector<16xf32>
      %753 = vector.shape_cast %752 : vector<16xf32> to vector<1x16xf32>
      %754 = vector.broadcast %753 : vector<1x16xf32> to vector<32x16xf32>
      %755 = arith.mulf %750, %754 : vector<32x16xf32>
      %756 = arith.addf %746, %755 : vector<32x16xf32>
      %c4_i32_319 = arith.constant 4 : i32
      %757 = arith.addi %arg12, %c4_i32_319 : i32
      %758 = arith.index_cast %757 : i32 to index
      %c0_320 = arith.constant 0 : index
      %c0_321 = arith.constant 0 : index
      %759 = vector.load %arg10[%758, %c0_320, %c0_321] : memref<26x32x16xf32, #tpu.memory_space<vmem>>, vector<1x32x16xf32>
      %760 = vector.shape_cast %759 : vector<1x32x16xf32> to vector<32x16xf32>
      %c50 = arith.constant 50 : index
      %c0_322 = arith.constant 0 : index
      %761 = vector.load %arg5[%c50, %c0_322] : memref<121x16xf32, #tpu.memory_space<vmem>>, vector<1x16xf32>
      %762 = vector.shape_cast %761 : vector<1x16xf32> to vector<16xf32>
      %763 = vector.shape_cast %762 : vector<16xf32> to vector<1x16xf32>
      %764 = vector.broadcast %763 : vector<1x16xf32> to vector<32x16xf32>
      %765 = arith.mulf %760, %764 : vector<32x16xf32>
      %766 = arith.addf %756, %765 : vector<32x16xf32>
      %c5_i32_323 = arith.constant 5 : i32
      %767 = arith.addi %arg12, %c5_i32_323 : i32
      %768 = arith.index_cast %767 : i32 to index
      %c0_324 = arith.constant 0 : index
      %c0_325 = arith.constant 0 : index
      %769 = vector.load %arg10[%768, %c0_324, %c0_325] : memref<26x32x16xf32, #tpu.memory_space<vmem>>, vector<1x32x16xf32>
      %770 = vector.shape_cast %769 : vector<1x32x16xf32> to vector<32x16xf32>
      %c61 = arith.constant 61 : index
      %c0_326 = arith.constant 0 : index
      %771 = vector.load %arg5[%c61, %c0_326] : memref<121x16xf32, #tpu.memory_space<vmem>>, vector<1x16xf32>
      %772 = vector.shape_cast %771 : vector<1x16xf32> to vector<16xf32>
      %773 = vector.shape_cast %772 : vector<16xf32> to vector<1x16xf32>
      %774 = vector.broadcast %773 : vector<1x16xf32> to vector<32x16xf32>
      %775 = arith.mulf %770, %774 : vector<32x16xf32>
      %776 = arith.addf %766, %775 : vector<32x16xf32>
      %c6_i32_327 = arith.constant 6 : i32
      %777 = arith.addi %arg12, %c6_i32_327 : i32
      %778 = arith.index_cast %777 : i32 to index
      %c0_328 = arith.constant 0 : index
      %c0_329 = arith.constant 0 : index
      %779 = vector.load %arg10[%778, %c0_328, %c0_329] : memref<26x32x16xf32, #tpu.memory_space<vmem>>, vector<1x32x16xf32>
      %780 = vector.shape_cast %779 : vector<1x32x16xf32> to vector<32x16xf32>
      %c72 = arith.constant 72 : index
      %c0_330 = arith.constant 0 : index
      %781 = vector.load %arg5[%c72, %c0_330] : memref<121x16xf32, #tpu.memory_space<vmem>>, vector<1x16xf32>
      %782 = vector.shape_cast %781 : vector<1x16xf32> to vector<16xf32>
      %783 = vector.shape_cast %782 : vector<16xf32> to vector<1x16xf32>
      %784 = vector.broadcast %783 : vector<1x16xf32> to vector<32x16xf32>
      %785 = arith.mulf %780, %784 : vector<32x16xf32>
      %786 = arith.addf %776, %785 : vector<32x16xf32>
      %c7_i32_331 = arith.constant 7 : i32
      %787 = arith.addi %arg12, %c7_i32_331 : i32
      %788 = arith.index_cast %787 : i32 to index
      %c0_332 = arith.constant 0 : index
      %c0_333 = arith.constant 0 : index
      %789 = vector.load %arg10[%788, %c0_332, %c0_333] : memref<26x32x16xf32, #tpu.memory_space<vmem>>, vector<1x32x16xf32>
      %790 = vector.shape_cast %789 : vector<1x32x16xf32> to vector<32x16xf32>
      %c83 = arith.constant 83 : index
      %c0_334 = arith.constant 0 : index
      %791 = vector.load %arg5[%c83, %c0_334] : memref<121x16xf32, #tpu.memory_space<vmem>>, vector<1x16xf32>
      %792 = vector.shape_cast %791 : vector<1x16xf32> to vector<16xf32>
      %793 = vector.shape_cast %792 : vector<16xf32> to vector<1x16xf32>
      %794 = vector.broadcast %793 : vector<1x16xf32> to vector<32x16xf32>
      %795 = arith.mulf %790, %794 : vector<32x16xf32>
      %796 = arith.addf %786, %795 : vector<32x16xf32>
      %c8_i32_335 = arith.constant 8 : i32
      %797 = arith.addi %arg12, %c8_i32_335 : i32
      %798 = arith.index_cast %797 : i32 to index
      %c0_336 = arith.constant 0 : index
      %c0_337 = arith.constant 0 : index
      %799 = vector.load %arg10[%798, %c0_336, %c0_337] : memref<26x32x16xf32, #tpu.memory_space<vmem>>, vector<1x32x16xf32>
      %800 = vector.shape_cast %799 : vector<1x32x16xf32> to vector<32x16xf32>
      %c94 = arith.constant 94 : index
      %c0_338 = arith.constant 0 : index
      %801 = vector.load %arg5[%c94, %c0_338] : memref<121x16xf32, #tpu.memory_space<vmem>>, vector<1x16xf32>
      %802 = vector.shape_cast %801 : vector<1x16xf32> to vector<16xf32>
      %803 = vector.shape_cast %802 : vector<16xf32> to vector<1x16xf32>
      %804 = vector.broadcast %803 : vector<1x16xf32> to vector<32x16xf32>
      %805 = arith.mulf %800, %804 : vector<32x16xf32>
      %806 = arith.addf %796, %805 : vector<32x16xf32>
      %c9_i32_339 = arith.constant 9 : i32
      %807 = arith.addi %arg12, %c9_i32_339 : i32
      %808 = arith.index_cast %807 : i32 to index
      %c0_340 = arith.constant 0 : index
      %c0_341 = arith.constant 0 : index
      %809 = vector.load %arg10[%808, %c0_340, %c0_341] : memref<26x32x16xf32, #tpu.memory_space<vmem>>, vector<1x32x16xf32>
      %810 = vector.shape_cast %809 : vector<1x32x16xf32> to vector<32x16xf32>
      %c105 = arith.constant 105 : index
      %c0_342 = arith.constant 0 : index
      %811 = vector.load %arg5[%c105, %c0_342] : memref<121x16xf32, #tpu.memory_space<vmem>>, vector<1x16xf32>
      %812 = vector.shape_cast %811 : vector<1x16xf32> to vector<16xf32>
      %813 = vector.shape_cast %812 : vector<16xf32> to vector<1x16xf32>
      %814 = vector.broadcast %813 : vector<1x16xf32> to vector<32x16xf32>
      %815 = arith.mulf %810, %814 : vector<32x16xf32>
      %816 = arith.addf %806, %815 : vector<32x16xf32>
      %c10_i32_343 = arith.constant 10 : i32
      %817 = arith.addi %arg12, %c10_i32_343 : i32
      %818 = arith.index_cast %817 : i32 to index
      %c0_344 = arith.constant 0 : index
      %c0_345 = arith.constant 0 : index
      %819 = vector.load %arg10[%818, %c0_344, %c0_345] : memref<26x32x16xf32, #tpu.memory_space<vmem>>, vector<1x32x16xf32>
      %820 = vector.shape_cast %819 : vector<1x32x16xf32> to vector<32x16xf32>
      %c116 = arith.constant 116 : index
      %c0_346 = arith.constant 0 : index
      %821 = vector.load %arg5[%c116, %c0_346] : memref<121x16xf32, #tpu.memory_space<vmem>>, vector<1x16xf32>
      %822 = vector.shape_cast %821 : vector<1x16xf32> to vector<16xf32>
      %823 = vector.shape_cast %822 : vector<16xf32> to vector<1x16xf32>
      %824 = vector.broadcast %823 : vector<1x16xf32> to vector<32x16xf32>
      %825 = arith.mulf %820, %824 : vector<32x16xf32>
      %826 = arith.addf %816, %825 : vector<32x16xf32>
      %c31_i32 = arith.constant 31 : i32
      %827 = tpu.dynamic_rotate %826 by %c31_i32 dim 0 : vector<32x16xf32>, i32 -> vector<32x16xf32>
      %828 = arith.addf %715, %827 : vector<32x16xf32>
      %cst_347 = arith.constant 0.000000e+00 : f32
      %829 = vector.broadcast %cst_347 : f32 to vector<32x16xf32>
      %c0_i32_348 = arith.constant 0 : i32
      %830 = arith.addi %arg12, %c0_i32_348 : i32
      %831 = arith.index_cast %830 : i32 to index
      %c0_349 = arith.constant 0 : index
      %c0_350 = arith.constant 0 : index
      %832 = vector.load %arg10[%831, %c0_349, %c0_350] : memref<26x32x16xf32, #tpu.memory_space<vmem>>, vector<1x32x16xf32>
      %833 = vector.shape_cast %832 : vector<1x32x16xf32> to vector<32x16xf32>
      %c7 = arith.constant 7 : index
      %c0_351 = arith.constant 0 : index
      %834 = vector.load %arg5[%c7, %c0_351] : memref<121x16xf32, #tpu.memory_space<vmem>>, vector<1x16xf32>
      %835 = vector.shape_cast %834 : vector<1x16xf32> to vector<16xf32>
      %836 = vector.shape_cast %835 : vector<16xf32> to vector<1x16xf32>
      %837 = vector.broadcast %836 : vector<1x16xf32> to vector<32x16xf32>
      %838 = arith.mulf %833, %837 : vector<32x16xf32>
      %839 = arith.addf %829, %838 : vector<32x16xf32>
      %c1_i32_352 = arith.constant 1 : i32
      %840 = arith.addi %arg12, %c1_i32_352 : i32
      %841 = arith.index_cast %840 : i32 to index
      %c0_353 = arith.constant 0 : index
      %c0_354 = arith.constant 0 : index
      %842 = vector.load %arg10[%841, %c0_353, %c0_354] : memref<26x32x16xf32, #tpu.memory_space<vmem>>, vector<1x32x16xf32>
      %843 = vector.shape_cast %842 : vector<1x32x16xf32> to vector<32x16xf32>
      %c18 = arith.constant 18 : index
      %c0_355 = arith.constant 0 : index
      %844 = vector.load %arg5[%c18, %c0_355] : memref<121x16xf32, #tpu.memory_space<vmem>>, vector<1x16xf32>
      %845 = vector.shape_cast %844 : vector<1x16xf32> to vector<16xf32>
      %846 = vector.shape_cast %845 : vector<16xf32> to vector<1x16xf32>
      %847 = vector.broadcast %846 : vector<1x16xf32> to vector<32x16xf32>
      %848 = arith.mulf %843, %847 : vector<32x16xf32>
      %849 = arith.addf %839, %848 : vector<32x16xf32>
      %c2_i32_356 = arith.constant 2 : i32
      %850 = arith.addi %arg12, %c2_i32_356 : i32
      %851 = arith.index_cast %850 : i32 to index
      %c0_357 = arith.constant 0 : index
      %c0_358 = arith.constant 0 : index
      %852 = vector.load %arg10[%851, %c0_357, %c0_358] : memref<26x32x16xf32, #tpu.memory_space<vmem>>, vector<1x32x16xf32>
      %853 = vector.shape_cast %852 : vector<1x32x16xf32> to vector<32x16xf32>
      %c29 = arith.constant 29 : index
      %c0_359 = arith.constant 0 : index
      %854 = vector.load %arg5[%c29, %c0_359] : memref<121x16xf32, #tpu.memory_space<vmem>>, vector<1x16xf32>
      %855 = vector.shape_cast %854 : vector<1x16xf32> to vector<16xf32>
      %856 = vector.shape_cast %855 : vector<16xf32> to vector<1x16xf32>
      %857 = vector.broadcast %856 : vector<1x16xf32> to vector<32x16xf32>
      %858 = arith.mulf %853, %857 : vector<32x16xf32>
      %859 = arith.addf %849, %858 : vector<32x16xf32>
      %c3_i32_360 = arith.constant 3 : i32
      %860 = arith.addi %arg12, %c3_i32_360 : i32
      %861 = arith.index_cast %860 : i32 to index
      %c0_361 = arith.constant 0 : index
      %c0_362 = arith.constant 0 : index
      %862 = vector.load %arg10[%861, %c0_361, %c0_362] : memref<26x32x16xf32, #tpu.memory_space<vmem>>, vector<1x32x16xf32>
      %863 = vector.shape_cast %862 : vector<1x32x16xf32> to vector<32x16xf32>
      %c40 = arith.constant 40 : index
      %c0_363 = arith.constant 0 : index
      %864 = vector.load %arg5[%c40, %c0_363] : memref<121x16xf32, #tpu.memory_space<vmem>>, vector<1x16xf32>
      %865 = vector.shape_cast %864 : vector<1x16xf32> to vector<16xf32>
      %866 = vector.shape_cast %865 : vector<16xf32> to vector<1x16xf32>
      %867 = vector.broadcast %866 : vector<1x16xf32> to vector<32x16xf32>
      %868 = arith.mulf %863, %867 : vector<32x16xf32>
      %869 = arith.addf %859, %868 : vector<32x16xf32>
      %c4_i32_364 = arith.constant 4 : i32
      %870 = arith.addi %arg12, %c4_i32_364 : i32
      %871 = arith.index_cast %870 : i32 to index
      %c0_365 = arith.constant 0 : index
      %c0_366 = arith.constant 0 : index
      %872 = vector.load %arg10[%871, %c0_365, %c0_366] : memref<26x32x16xf32, #tpu.memory_space<vmem>>, vector<1x32x16xf32>
      %873 = vector.shape_cast %872 : vector<1x32x16xf32> to vector<32x16xf32>
      %c51 = arith.constant 51 : index
      %c0_367 = arith.constant 0 : index
      %874 = vector.load %arg5[%c51, %c0_367] : memref<121x16xf32, #tpu.memory_space<vmem>>, vector<1x16xf32>
      %875 = vector.shape_cast %874 : vector<1x16xf32> to vector<16xf32>
      %876 = vector.shape_cast %875 : vector<16xf32> to vector<1x16xf32>
      %877 = vector.broadcast %876 : vector<1x16xf32> to vector<32x16xf32>
      %878 = arith.mulf %873, %877 : vector<32x16xf32>
      %879 = arith.addf %869, %878 : vector<32x16xf32>
      %c5_i32_368 = arith.constant 5 : i32
      %880 = arith.addi %arg12, %c5_i32_368 : i32
      %881 = arith.index_cast %880 : i32 to index
      %c0_369 = arith.constant 0 : index
      %c0_370 = arith.constant 0 : index
      %882 = vector.load %arg10[%881, %c0_369, %c0_370] : memref<26x32x16xf32, #tpu.memory_space<vmem>>, vector<1x32x16xf32>
      %883 = vector.shape_cast %882 : vector<1x32x16xf32> to vector<32x16xf32>
      %c62 = arith.constant 62 : index
      %c0_371 = arith.constant 0 : index
      %884 = vector.load %arg5[%c62, %c0_371] : memref<121x16xf32, #tpu.memory_space<vmem>>, vector<1x16xf32>
      %885 = vector.shape_cast %884 : vector<1x16xf32> to vector<16xf32>
      %886 = vector.shape_cast %885 : vector<16xf32> to vector<1x16xf32>
      %887 = vector.broadcast %886 : vector<1x16xf32> to vector<32x16xf32>
      %888 = arith.mulf %883, %887 : vector<32x16xf32>
      %889 = arith.addf %879, %888 : vector<32x16xf32>
      %c6_i32_372 = arith.constant 6 : i32
      %890 = arith.addi %arg12, %c6_i32_372 : i32
      %891 = arith.index_cast %890 : i32 to index
      %c0_373 = arith.constant 0 : index
      %c0_374 = arith.constant 0 : index
      %892 = vector.load %arg10[%891, %c0_373, %c0_374] : memref<26x32x16xf32, #tpu.memory_space<vmem>>, vector<1x32x16xf32>
      %893 = vector.shape_cast %892 : vector<1x32x16xf32> to vector<32x16xf32>
      %c73 = arith.constant 73 : index
      %c0_375 = arith.constant 0 : index
      %894 = vector.load %arg5[%c73, %c0_375] : memref<121x16xf32, #tpu.memory_space<vmem>>, vector<1x16xf32>
      %895 = vector.shape_cast %894 : vector<1x16xf32> to vector<16xf32>
      %896 = vector.shape_cast %895 : vector<16xf32> to vector<1x16xf32>
      %897 = vector.broadcast %896 : vector<1x16xf32> to vector<32x16xf32>
      %898 = arith.mulf %893, %897 : vector<32x16xf32>
      %899 = arith.addf %889, %898 : vector<32x16xf32>
      %c7_i32_376 = arith.constant 7 : i32
      %900 = arith.addi %arg12, %c7_i32_376 : i32
      %901 = arith.index_cast %900 : i32 to index
      %c0_377 = arith.constant 0 : index
      %c0_378 = arith.constant 0 : index
      %902 = vector.load %arg10[%901, %c0_377, %c0_378] : memref<26x32x16xf32, #tpu.memory_space<vmem>>, vector<1x32x16xf32>
      %903 = vector.shape_cast %902 : vector<1x32x16xf32> to vector<32x16xf32>
      %c84 = arith.constant 84 : index
      %c0_379 = arith.constant 0 : index
      %904 = vector.load %arg5[%c84, %c0_379] : memref<121x16xf32, #tpu.memory_space<vmem>>, vector<1x16xf32>
      %905 = vector.shape_cast %904 : vector<1x16xf32> to vector<16xf32>
      %906 = vector.shape_cast %905 : vector<16xf32> to vector<1x16xf32>
      %907 = vector.broadcast %906 : vector<1x16xf32> to vector<32x16xf32>
      %908 = arith.mulf %903, %907 : vector<32x16xf32>
      %909 = arith.addf %899, %908 : vector<32x16xf32>
      %c8_i32_380 = arith.constant 8 : i32
      %910 = arith.addi %arg12, %c8_i32_380 : i32
      %911 = arith.index_cast %910 : i32 to index
      %c0_381 = arith.constant 0 : index
      %c0_382 = arith.constant 0 : index
      %912 = vector.load %arg10[%911, %c0_381, %c0_382] : memref<26x32x16xf32, #tpu.memory_space<vmem>>, vector<1x32x16xf32>
      %913 = vector.shape_cast %912 : vector<1x32x16xf32> to vector<32x16xf32>
      %c95 = arith.constant 95 : index
      %c0_383 = arith.constant 0 : index
      %914 = vector.load %arg5[%c95, %c0_383] : memref<121x16xf32, #tpu.memory_space<vmem>>, vector<1x16xf32>
      %915 = vector.shape_cast %914 : vector<1x16xf32> to vector<16xf32>
      %916 = vector.shape_cast %915 : vector<16xf32> to vector<1x16xf32>
      %917 = vector.broadcast %916 : vector<1x16xf32> to vector<32x16xf32>
      %918 = arith.mulf %913, %917 : vector<32x16xf32>
      %919 = arith.addf %909, %918 : vector<32x16xf32>
      %c9_i32_384 = arith.constant 9 : i32
      %920 = arith.addi %arg12, %c9_i32_384 : i32
      %921 = arith.index_cast %920 : i32 to index
      %c0_385 = arith.constant 0 : index
      %c0_386 = arith.constant 0 : index
      %922 = vector.load %arg10[%921, %c0_385, %c0_386] : memref<26x32x16xf32, #tpu.memory_space<vmem>>, vector<1x32x16xf32>
      %923 = vector.shape_cast %922 : vector<1x32x16xf32> to vector<32x16xf32>
      %c106 = arith.constant 106 : index
      %c0_387 = arith.constant 0 : index
      %924 = vector.load %arg5[%c106, %c0_387] : memref<121x16xf32, #tpu.memory_space<vmem>>, vector<1x16xf32>
      %925 = vector.shape_cast %924 : vector<1x16xf32> to vector<16xf32>
      %926 = vector.shape_cast %925 : vector<16xf32> to vector<1x16xf32>
      %927 = vector.broadcast %926 : vector<1x16xf32> to vector<32x16xf32>
      %928 = arith.mulf %923, %927 : vector<32x16xf32>
      %929 = arith.addf %919, %928 : vector<32x16xf32>
      %c10_i32_388 = arith.constant 10 : i32
      %930 = arith.addi %arg12, %c10_i32_388 : i32
      %931 = arith.index_cast %930 : i32 to index
      %c0_389 = arith.constant 0 : index
      %c0_390 = arith.constant 0 : index
      %932 = vector.load %arg10[%931, %c0_389, %c0_390] : memref<26x32x16xf32, #tpu.memory_space<vmem>>, vector<1x32x16xf32>
      %933 = vector.shape_cast %932 : vector<1x32x16xf32> to vector<32x16xf32>
      %c117 = arith.constant 117 : index
      %c0_391 = arith.constant 0 : index
      %934 = vector.load %arg5[%c117, %c0_391] : memref<121x16xf32, #tpu.memory_space<vmem>>, vector<1x16xf32>
      %935 = vector.shape_cast %934 : vector<1x16xf32> to vector<16xf32>
      %936 = vector.shape_cast %935 : vector<16xf32> to vector<1x16xf32>
      %937 = vector.broadcast %936 : vector<1x16xf32> to vector<32x16xf32>
      %938 = arith.mulf %933, %937 : vector<32x16xf32>
      %939 = arith.addf %929, %938 : vector<32x16xf32>
      %c30_i32 = arith.constant 30 : i32
      %940 = tpu.dynamic_rotate %939 by %c30_i32 dim 0 : vector<32x16xf32>, i32 -> vector<32x16xf32>
      %941 = arith.addf %828, %940 : vector<32x16xf32>
      %cst_392 = arith.constant 0.000000e+00 : f32
      %942 = vector.broadcast %cst_392 : f32 to vector<32x16xf32>
      %c0_i32_393 = arith.constant 0 : i32
      %943 = arith.addi %arg12, %c0_i32_393 : i32
      %944 = arith.index_cast %943 : i32 to index
      %c0_394 = arith.constant 0 : index
      %c0_395 = arith.constant 0 : index
      %945 = vector.load %arg10[%944, %c0_394, %c0_395] : memref<26x32x16xf32, #tpu.memory_space<vmem>>, vector<1x32x16xf32>
      %946 = vector.shape_cast %945 : vector<1x32x16xf32> to vector<32x16xf32>
      %c8_396 = arith.constant 8 : index
      %c0_397 = arith.constant 0 : index
      %947 = vector.load %arg5[%c8_396, %c0_397] : memref<121x16xf32, #tpu.memory_space<vmem>>, vector<1x16xf32>
      %948 = vector.shape_cast %947 : vector<1x16xf32> to vector<16xf32>
      %949 = vector.shape_cast %948 : vector<16xf32> to vector<1x16xf32>
      %950 = vector.broadcast %949 : vector<1x16xf32> to vector<32x16xf32>
      %951 = arith.mulf %946, %950 : vector<32x16xf32>
      %952 = arith.addf %942, %951 : vector<32x16xf32>
      %c1_i32_398 = arith.constant 1 : i32
      %953 = arith.addi %arg12, %c1_i32_398 : i32
      %954 = arith.index_cast %953 : i32 to index
      %c0_399 = arith.constant 0 : index
      %c0_400 = arith.constant 0 : index
      %955 = vector.load %arg10[%954, %c0_399, %c0_400] : memref<26x32x16xf32, #tpu.memory_space<vmem>>, vector<1x32x16xf32>
      %956 = vector.shape_cast %955 : vector<1x32x16xf32> to vector<32x16xf32>
      %c19 = arith.constant 19 : index
      %c0_401 = arith.constant 0 : index
      %957 = vector.load %arg5[%c19, %c0_401] : memref<121x16xf32, #tpu.memory_space<vmem>>, vector<1x16xf32>
      %958 = vector.shape_cast %957 : vector<1x16xf32> to vector<16xf32>
      %959 = vector.shape_cast %958 : vector<16xf32> to vector<1x16xf32>
      %960 = vector.broadcast %959 : vector<1x16xf32> to vector<32x16xf32>
      %961 = arith.mulf %956, %960 : vector<32x16xf32>
      %962 = arith.addf %952, %961 : vector<32x16xf32>
      %c2_i32_402 = arith.constant 2 : i32
      %963 = arith.addi %arg12, %c2_i32_402 : i32
      %964 = arith.index_cast %963 : i32 to index
      %c0_403 = arith.constant 0 : index
      %c0_404 = arith.constant 0 : index
      %965 = vector.load %arg10[%964, %c0_403, %c0_404] : memref<26x32x16xf32, #tpu.memory_space<vmem>>, vector<1x32x16xf32>
      %966 = vector.shape_cast %965 : vector<1x32x16xf32> to vector<32x16xf32>
      %c30 = arith.constant 30 : index
      %c0_405 = arith.constant 0 : index
      %967 = vector.load %arg5[%c30, %c0_405] : memref<121x16xf32, #tpu.memory_space<vmem>>, vector<1x16xf32>
      %968 = vector.shape_cast %967 : vector<1x16xf32> to vector<16xf32>
      %969 = vector.shape_cast %968 : vector<16xf32> to vector<1x16xf32>
      %970 = vector.broadcast %969 : vector<1x16xf32> to vector<32x16xf32>
      %971 = arith.mulf %966, %970 : vector<32x16xf32>
      %972 = arith.addf %962, %971 : vector<32x16xf32>
      %c3_i32_406 = arith.constant 3 : i32
      %973 = arith.addi %arg12, %c3_i32_406 : i32
      %974 = arith.index_cast %973 : i32 to index
      %c0_407 = arith.constant 0 : index
      %c0_408 = arith.constant 0 : index
      %975 = vector.load %arg10[%974, %c0_407, %c0_408] : memref<26x32x16xf32, #tpu.memory_space<vmem>>, vector<1x32x16xf32>
      %976 = vector.shape_cast %975 : vector<1x32x16xf32> to vector<32x16xf32>
      %c41 = arith.constant 41 : index
      %c0_409 = arith.constant 0 : index
      %977 = vector.load %arg5[%c41, %c0_409] : memref<121x16xf32, #tpu.memory_space<vmem>>, vector<1x16xf32>
      %978 = vector.shape_cast %977 : vector<1x16xf32> to vector<16xf32>
      %979 = vector.shape_cast %978 : vector<16xf32> to vector<1x16xf32>
      %980 = vector.broadcast %979 : vector<1x16xf32> to vector<32x16xf32>
      %981 = arith.mulf %976, %980 : vector<32x16xf32>
      %982 = arith.addf %972, %981 : vector<32x16xf32>
      %c4_i32_410 = arith.constant 4 : i32
      %983 = arith.addi %arg12, %c4_i32_410 : i32
      %984 = arith.index_cast %983 : i32 to index
      %c0_411 = arith.constant 0 : index
      %c0_412 = arith.constant 0 : index
      %985 = vector.load %arg10[%984, %c0_411, %c0_412] : memref<26x32x16xf32, #tpu.memory_space<vmem>>, vector<1x32x16xf32>
      %986 = vector.shape_cast %985 : vector<1x32x16xf32> to vector<32x16xf32>
      %c52 = arith.constant 52 : index
      %c0_413 = arith.constant 0 : index
      %987 = vector.load %arg5[%c52, %c0_413] : memref<121x16xf32, #tpu.memory_space<vmem>>, vector<1x16xf32>
      %988 = vector.shape_cast %987 : vector<1x16xf32> to vector<16xf32>
      %989 = vector.shape_cast %988 : vector<16xf32> to vector<1x16xf32>
      %990 = vector.broadcast %989 : vector<1x16xf32> to vector<32x16xf32>
      %991 = arith.mulf %986, %990 : vector<32x16xf32>
      %992 = arith.addf %982, %991 : vector<32x16xf32>
      %c5_i32_414 = arith.constant 5 : i32
      %993 = arith.addi %arg12, %c5_i32_414 : i32
      %994 = arith.index_cast %993 : i32 to index
      %c0_415 = arith.constant 0 : index
      %c0_416 = arith.constant 0 : index
      %995 = vector.load %arg10[%994, %c0_415, %c0_416] : memref<26x32x16xf32, #tpu.memory_space<vmem>>, vector<1x32x16xf32>
      %996 = vector.shape_cast %995 : vector<1x32x16xf32> to vector<32x16xf32>
      %c63 = arith.constant 63 : index
      %c0_417 = arith.constant 0 : index
      %997 = vector.load %arg5[%c63, %c0_417] : memref<121x16xf32, #tpu.memory_space<vmem>>, vector<1x16xf32>
      %998 = vector.shape_cast %997 : vector<1x16xf32> to vector<16xf32>
      %999 = vector.shape_cast %998 : vector<16xf32> to vector<1x16xf32>
      %1000 = vector.broadcast %999 : vector<1x16xf32> to vector<32x16xf32>
      %1001 = arith.mulf %996, %1000 : vector<32x16xf32>
      %1002 = arith.addf %992, %1001 : vector<32x16xf32>
      %c6_i32_418 = arith.constant 6 : i32
      %1003 = arith.addi %arg12, %c6_i32_418 : i32
      %1004 = arith.index_cast %1003 : i32 to index
      %c0_419 = arith.constant 0 : index
      %c0_420 = arith.constant 0 : index
      %1005 = vector.load %arg10[%1004, %c0_419, %c0_420] : memref<26x32x16xf32, #tpu.memory_space<vmem>>, vector<1x32x16xf32>
      %1006 = vector.shape_cast %1005 : vector<1x32x16xf32> to vector<32x16xf32>
      %c74 = arith.constant 74 : index
      %c0_421 = arith.constant 0 : index
      %1007 = vector.load %arg5[%c74, %c0_421] : memref<121x16xf32, #tpu.memory_space<vmem>>, vector<1x16xf32>
      %1008 = vector.shape_cast %1007 : vector<1x16xf32> to vector<16xf32>
      %1009 = vector.shape_cast %1008 : vector<16xf32> to vector<1x16xf32>
      %1010 = vector.broadcast %1009 : vector<1x16xf32> to vector<32x16xf32>
      %1011 = arith.mulf %1006, %1010 : vector<32x16xf32>
      %1012 = arith.addf %1002, %1011 : vector<32x16xf32>
      %c7_i32_422 = arith.constant 7 : i32
      %1013 = arith.addi %arg12, %c7_i32_422 : i32
      %1014 = arith.index_cast %1013 : i32 to index
      %c0_423 = arith.constant 0 : index
      %c0_424 = arith.constant 0 : index
      %1015 = vector.load %arg10[%1014, %c0_423, %c0_424] : memref<26x32x16xf32, #tpu.memory_space<vmem>>, vector<1x32x16xf32>
      %1016 = vector.shape_cast %1015 : vector<1x32x16xf32> to vector<32x16xf32>
      %c85 = arith.constant 85 : index
      %c0_425 = arith.constant 0 : index
      %1017 = vector.load %arg5[%c85, %c0_425] : memref<121x16xf32, #tpu.memory_space<vmem>>, vector<1x16xf32>
      %1018 = vector.shape_cast %1017 : vector<1x16xf32> to vector<16xf32>
      %1019 = vector.shape_cast %1018 : vector<16xf32> to vector<1x16xf32>
      %1020 = vector.broadcast %1019 : vector<1x16xf32> to vector<32x16xf32>
      %1021 = arith.mulf %1016, %1020 : vector<32x16xf32>
      %1022 = arith.addf %1012, %1021 : vector<32x16xf32>
      %c8_i32_426 = arith.constant 8 : i32
      %1023 = arith.addi %arg12, %c8_i32_426 : i32
      %1024 = arith.index_cast %1023 : i32 to index
      %c0_427 = arith.constant 0 : index
      %c0_428 = arith.constant 0 : index
      %1025 = vector.load %arg10[%1024, %c0_427, %c0_428] : memref<26x32x16xf32, #tpu.memory_space<vmem>>, vector<1x32x16xf32>
      %1026 = vector.shape_cast %1025 : vector<1x32x16xf32> to vector<32x16xf32>
      %c96 = arith.constant 96 : index
      %c0_429 = arith.constant 0 : index
      %1027 = vector.load %arg5[%c96, %c0_429] : memref<121x16xf32, #tpu.memory_space<vmem>>, vector<1x16xf32>
      %1028 = vector.shape_cast %1027 : vector<1x16xf32> to vector<16xf32>
      %1029 = vector.shape_cast %1028 : vector<16xf32> to vector<1x16xf32>
      %1030 = vector.broadcast %1029 : vector<1x16xf32> to vector<32x16xf32>
      %1031 = arith.mulf %1026, %1030 : vector<32x16xf32>
      %1032 = arith.addf %1022, %1031 : vector<32x16xf32>
      %c9_i32_430 = arith.constant 9 : i32
      %1033 = arith.addi %arg12, %c9_i32_430 : i32
      %1034 = arith.index_cast %1033 : i32 to index
      %c0_431 = arith.constant 0 : index
      %c0_432 = arith.constant 0 : index
      %1035 = vector.load %arg10[%1034, %c0_431, %c0_432] : memref<26x32x16xf32, #tpu.memory_space<vmem>>, vector<1x32x16xf32>
      %1036 = vector.shape_cast %1035 : vector<1x32x16xf32> to vector<32x16xf32>
      %c107 = arith.constant 107 : index
      %c0_433 = arith.constant 0 : index
      %1037 = vector.load %arg5[%c107, %c0_433] : memref<121x16xf32, #tpu.memory_space<vmem>>, vector<1x16xf32>
      %1038 = vector.shape_cast %1037 : vector<1x16xf32> to vector<16xf32>
      %1039 = vector.shape_cast %1038 : vector<16xf32> to vector<1x16xf32>
      %1040 = vector.broadcast %1039 : vector<1x16xf32> to vector<32x16xf32>
      %1041 = arith.mulf %1036, %1040 : vector<32x16xf32>
      %1042 = arith.addf %1032, %1041 : vector<32x16xf32>
      %c10_i32_434 = arith.constant 10 : i32
      %1043 = arith.addi %arg12, %c10_i32_434 : i32
      %1044 = arith.index_cast %1043 : i32 to index
      %c0_435 = arith.constant 0 : index
      %c0_436 = arith.constant 0 : index
      %1045 = vector.load %arg10[%1044, %c0_435, %c0_436] : memref<26x32x16xf32, #tpu.memory_space<vmem>>, vector<1x32x16xf32>
      %1046 = vector.shape_cast %1045 : vector<1x32x16xf32> to vector<32x16xf32>
      %c118 = arith.constant 118 : index
      %c0_437 = arith.constant 0 : index
      %1047 = vector.load %arg5[%c118, %c0_437] : memref<121x16xf32, #tpu.memory_space<vmem>>, vector<1x16xf32>
      %1048 = vector.shape_cast %1047 : vector<1x16xf32> to vector<16xf32>
      %1049 = vector.shape_cast %1048 : vector<16xf32> to vector<1x16xf32>
      %1050 = vector.broadcast %1049 : vector<1x16xf32> to vector<32x16xf32>
      %1051 = arith.mulf %1046, %1050 : vector<32x16xf32>
      %1052 = arith.addf %1042, %1051 : vector<32x16xf32>
      %c29_i32 = arith.constant 29 : i32
      %1053 = tpu.dynamic_rotate %1052 by %c29_i32 dim 0 : vector<32x16xf32>, i32 -> vector<32x16xf32>
      %1054 = arith.addf %941, %1053 : vector<32x16xf32>
      %cst_438 = arith.constant 0.000000e+00 : f32
      %1055 = vector.broadcast %cst_438 : f32 to vector<32x16xf32>
      %c0_i32_439 = arith.constant 0 : i32
      %1056 = arith.addi %arg12, %c0_i32_439 : i32
      %1057 = arith.index_cast %1056 : i32 to index
      %c0_440 = arith.constant 0 : index
      %c0_441 = arith.constant 0 : index
      %1058 = vector.load %arg10[%1057, %c0_440, %c0_441] : memref<26x32x16xf32, #tpu.memory_space<vmem>>, vector<1x32x16xf32>
      %1059 = vector.shape_cast %1058 : vector<1x32x16xf32> to vector<32x16xf32>
      %c9 = arith.constant 9 : index
      %c0_442 = arith.constant 0 : index
      %1060 = vector.load %arg5[%c9, %c0_442] : memref<121x16xf32, #tpu.memory_space<vmem>>, vector<1x16xf32>
      %1061 = vector.shape_cast %1060 : vector<1x16xf32> to vector<16xf32>
      %1062 = vector.shape_cast %1061 : vector<16xf32> to vector<1x16xf32>
      %1063 = vector.broadcast %1062 : vector<1x16xf32> to vector<32x16xf32>
      %1064 = arith.mulf %1059, %1063 : vector<32x16xf32>
      %1065 = arith.addf %1055, %1064 : vector<32x16xf32>
      %c1_i32_443 = arith.constant 1 : i32
      %1066 = arith.addi %arg12, %c1_i32_443 : i32
      %1067 = arith.index_cast %1066 : i32 to index
      %c0_444 = arith.constant 0 : index
      %c0_445 = arith.constant 0 : index
      %1068 = vector.load %arg10[%1067, %c0_444, %c0_445] : memref<26x32x16xf32, #tpu.memory_space<vmem>>, vector<1x32x16xf32>
      %1069 = vector.shape_cast %1068 : vector<1x32x16xf32> to vector<32x16xf32>
      %c20 = arith.constant 20 : index
      %c0_446 = arith.constant 0 : index
      %1070 = vector.load %arg5[%c20, %c0_446] : memref<121x16xf32, #tpu.memory_space<vmem>>, vector<1x16xf32>
      %1071 = vector.shape_cast %1070 : vector<1x16xf32> to vector<16xf32>
      %1072 = vector.shape_cast %1071 : vector<16xf32> to vector<1x16xf32>
      %1073 = vector.broadcast %1072 : vector<1x16xf32> to vector<32x16xf32>
      %1074 = arith.mulf %1069, %1073 : vector<32x16xf32>
      %1075 = arith.addf %1065, %1074 : vector<32x16xf32>
      %c2_i32_447 = arith.constant 2 : i32
      %1076 = arith.addi %arg12, %c2_i32_447 : i32
      %1077 = arith.index_cast %1076 : i32 to index
      %c0_448 = arith.constant 0 : index
      %c0_449 = arith.constant 0 : index
      %1078 = vector.load %arg10[%1077, %c0_448, %c0_449] : memref<26x32x16xf32, #tpu.memory_space<vmem>>, vector<1x32x16xf32>
      %1079 = vector.shape_cast %1078 : vector<1x32x16xf32> to vector<32x16xf32>
      %c31 = arith.constant 31 : index
      %c0_450 = arith.constant 0 : index
      %1080 = vector.load %arg5[%c31, %c0_450] : memref<121x16xf32, #tpu.memory_space<vmem>>, vector<1x16xf32>
      %1081 = vector.shape_cast %1080 : vector<1x16xf32> to vector<16xf32>
      %1082 = vector.shape_cast %1081 : vector<16xf32> to vector<1x16xf32>
      %1083 = vector.broadcast %1082 : vector<1x16xf32> to vector<32x16xf32>
      %1084 = arith.mulf %1079, %1083 : vector<32x16xf32>
      %1085 = arith.addf %1075, %1084 : vector<32x16xf32>
      %c3_i32_451 = arith.constant 3 : i32
      %1086 = arith.addi %arg12, %c3_i32_451 : i32
      %1087 = arith.index_cast %1086 : i32 to index
      %c0_452 = arith.constant 0 : index
      %c0_453 = arith.constant 0 : index
      %1088 = vector.load %arg10[%1087, %c0_452, %c0_453] : memref<26x32x16xf32, #tpu.memory_space<vmem>>, vector<1x32x16xf32>
      %1089 = vector.shape_cast %1088 : vector<1x32x16xf32> to vector<32x16xf32>
      %c42 = arith.constant 42 : index
      %c0_454 = arith.constant 0 : index
      %1090 = vector.load %arg5[%c42, %c0_454] : memref<121x16xf32, #tpu.memory_space<vmem>>, vector<1x16xf32>
      %1091 = vector.shape_cast %1090 : vector<1x16xf32> to vector<16xf32>
      %1092 = vector.shape_cast %1091 : vector<16xf32> to vector<1x16xf32>
      %1093 = vector.broadcast %1092 : vector<1x16xf32> to vector<32x16xf32>
      %1094 = arith.mulf %1089, %1093 : vector<32x16xf32>
      %1095 = arith.addf %1085, %1094 : vector<32x16xf32>
      %c4_i32_455 = arith.constant 4 : i32
      %1096 = arith.addi %arg12, %c4_i32_455 : i32
      %1097 = arith.index_cast %1096 : i32 to index
      %c0_456 = arith.constant 0 : index
      %c0_457 = arith.constant 0 : index
      %1098 = vector.load %arg10[%1097, %c0_456, %c0_457] : memref<26x32x16xf32, #tpu.memory_space<vmem>>, vector<1x32x16xf32>
      %1099 = vector.shape_cast %1098 : vector<1x32x16xf32> to vector<32x16xf32>
      %c53 = arith.constant 53 : index
      %c0_458 = arith.constant 0 : index
      %1100 = vector.load %arg5[%c53, %c0_458] : memref<121x16xf32, #tpu.memory_space<vmem>>, vector<1x16xf32>
      %1101 = vector.shape_cast %1100 : vector<1x16xf32> to vector<16xf32>
      %1102 = vector.shape_cast %1101 : vector<16xf32> to vector<1x16xf32>
      %1103 = vector.broadcast %1102 : vector<1x16xf32> to vector<32x16xf32>
      %1104 = arith.mulf %1099, %1103 : vector<32x16xf32>
      %1105 = arith.addf %1095, %1104 : vector<32x16xf32>
      %c5_i32_459 = arith.constant 5 : i32
      %1106 = arith.addi %arg12, %c5_i32_459 : i32
      %1107 = arith.index_cast %1106 : i32 to index
      %c0_460 = arith.constant 0 : index
      %c0_461 = arith.constant 0 : index
      %1108 = vector.load %arg10[%1107, %c0_460, %c0_461] : memref<26x32x16xf32, #tpu.memory_space<vmem>>, vector<1x32x16xf32>
      %1109 = vector.shape_cast %1108 : vector<1x32x16xf32> to vector<32x16xf32>
      %c64 = arith.constant 64 : index
      %c0_462 = arith.constant 0 : index
      %1110 = vector.load %arg5[%c64, %c0_462] : memref<121x16xf32, #tpu.memory_space<vmem>>, vector<1x16xf32>
      %1111 = vector.shape_cast %1110 : vector<1x16xf32> to vector<16xf32>
      %1112 = vector.shape_cast %1111 : vector<16xf32> to vector<1x16xf32>
      %1113 = vector.broadcast %1112 : vector<1x16xf32> to vector<32x16xf32>
      %1114 = arith.mulf %1109, %1113 : vector<32x16xf32>
      %1115 = arith.addf %1105, %1114 : vector<32x16xf32>
      %c6_i32_463 = arith.constant 6 : i32
      %1116 = arith.addi %arg12, %c6_i32_463 : i32
      %1117 = arith.index_cast %1116 : i32 to index
      %c0_464 = arith.constant 0 : index
      %c0_465 = arith.constant 0 : index
      %1118 = vector.load %arg10[%1117, %c0_464, %c0_465] : memref<26x32x16xf32, #tpu.memory_space<vmem>>, vector<1x32x16xf32>
      %1119 = vector.shape_cast %1118 : vector<1x32x16xf32> to vector<32x16xf32>
      %c75 = arith.constant 75 : index
      %c0_466 = arith.constant 0 : index
      %1120 = vector.load %arg5[%c75, %c0_466] : memref<121x16xf32, #tpu.memory_space<vmem>>, vector<1x16xf32>
      %1121 = vector.shape_cast %1120 : vector<1x16xf32> to vector<16xf32>
      %1122 = vector.shape_cast %1121 : vector<16xf32> to vector<1x16xf32>
      %1123 = vector.broadcast %1122 : vector<1x16xf32> to vector<32x16xf32>
      %1124 = arith.mulf %1119, %1123 : vector<32x16xf32>
      %1125 = arith.addf %1115, %1124 : vector<32x16xf32>
      %c7_i32_467 = arith.constant 7 : i32
      %1126 = arith.addi %arg12, %c7_i32_467 : i32
      %1127 = arith.index_cast %1126 : i32 to index
      %c0_468 = arith.constant 0 : index
      %c0_469 = arith.constant 0 : index
      %1128 = vector.load %arg10[%1127, %c0_468, %c0_469] : memref<26x32x16xf32, #tpu.memory_space<vmem>>, vector<1x32x16xf32>
      %1129 = vector.shape_cast %1128 : vector<1x32x16xf32> to vector<32x16xf32>
      %c86 = arith.constant 86 : index
      %c0_470 = arith.constant 0 : index
      %1130 = vector.load %arg5[%c86, %c0_470] : memref<121x16xf32, #tpu.memory_space<vmem>>, vector<1x16xf32>
      %1131 = vector.shape_cast %1130 : vector<1x16xf32> to vector<16xf32>
      %1132 = vector.shape_cast %1131 : vector<16xf32> to vector<1x16xf32>
      %1133 = vector.broadcast %1132 : vector<1x16xf32> to vector<32x16xf32>
      %1134 = arith.mulf %1129, %1133 : vector<32x16xf32>
      %1135 = arith.addf %1125, %1134 : vector<32x16xf32>
      %c8_i32_471 = arith.constant 8 : i32
      %1136 = arith.addi %arg12, %c8_i32_471 : i32
      %1137 = arith.index_cast %1136 : i32 to index
      %c0_472 = arith.constant 0 : index
      %c0_473 = arith.constant 0 : index
      %1138 = vector.load %arg10[%1137, %c0_472, %c0_473] : memref<26x32x16xf32, #tpu.memory_space<vmem>>, vector<1x32x16xf32>
      %1139 = vector.shape_cast %1138 : vector<1x32x16xf32> to vector<32x16xf32>
      %c97 = arith.constant 97 : index
      %c0_474 = arith.constant 0 : index
      %1140 = vector.load %arg5[%c97, %c0_474] : memref<121x16xf32, #tpu.memory_space<vmem>>, vector<1x16xf32>
      %1141 = vector.shape_cast %1140 : vector<1x16xf32> to vector<16xf32>
      %1142 = vector.shape_cast %1141 : vector<16xf32> to vector<1x16xf32>
      %1143 = vector.broadcast %1142 : vector<1x16xf32> to vector<32x16xf32>
      %1144 = arith.mulf %1139, %1143 : vector<32x16xf32>
      %1145 = arith.addf %1135, %1144 : vector<32x16xf32>
      %c9_i32_475 = arith.constant 9 : i32
      %1146 = arith.addi %arg12, %c9_i32_475 : i32
      %1147 = arith.index_cast %1146 : i32 to index
      %c0_476 = arith.constant 0 : index
      %c0_477 = arith.constant 0 : index
      %1148 = vector.load %arg10[%1147, %c0_476, %c0_477] : memref<26x32x16xf32, #tpu.memory_space<vmem>>, vector<1x32x16xf32>
      %1149 = vector.shape_cast %1148 : vector<1x32x16xf32> to vector<32x16xf32>
      %c108 = arith.constant 108 : index
      %c0_478 = arith.constant 0 : index
      %1150 = vector.load %arg5[%c108, %c0_478] : memref<121x16xf32, #tpu.memory_space<vmem>>, vector<1x16xf32>
      %1151 = vector.shape_cast %1150 : vector<1x16xf32> to vector<16xf32>
      %1152 = vector.shape_cast %1151 : vector<16xf32> to vector<1x16xf32>
      %1153 = vector.broadcast %1152 : vector<1x16xf32> to vector<32x16xf32>
      %1154 = arith.mulf %1149, %1153 : vector<32x16xf32>
      %1155 = arith.addf %1145, %1154 : vector<32x16xf32>
      %c10_i32_479 = arith.constant 10 : i32
      %1156 = arith.addi %arg12, %c10_i32_479 : i32
      %1157 = arith.index_cast %1156 : i32 to index
      %c0_480 = arith.constant 0 : index
      %c0_481 = arith.constant 0 : index
      %1158 = vector.load %arg10[%1157, %c0_480, %c0_481] : memref<26x32x16xf32, #tpu.memory_space<vmem>>, vector<1x32x16xf32>
      %1159 = vector.shape_cast %1158 : vector<1x32x16xf32> to vector<32x16xf32>
      %c119 = arith.constant 119 : index
      %c0_482 = arith.constant 0 : index
      %1160 = vector.load %arg5[%c119, %c0_482] : memref<121x16xf32, #tpu.memory_space<vmem>>, vector<1x16xf32>
      %1161 = vector.shape_cast %1160 : vector<1x16xf32> to vector<16xf32>
      %1162 = vector.shape_cast %1161 : vector<16xf32> to vector<1x16xf32>
      %1163 = vector.broadcast %1162 : vector<1x16xf32> to vector<32x16xf32>
      %1164 = arith.mulf %1159, %1163 : vector<32x16xf32>
      %1165 = arith.addf %1155, %1164 : vector<32x16xf32>
      %c28_i32 = arith.constant 28 : i32
      %1166 = tpu.dynamic_rotate %1165 by %c28_i32 dim 0 : vector<32x16xf32>, i32 -> vector<32x16xf32>
      %1167 = arith.addf %1054, %1166 : vector<32x16xf32>
      %cst_483 = arith.constant 0.000000e+00 : f32
      %1168 = vector.broadcast %cst_483 : f32 to vector<32x16xf32>
      %c0_i32_484 = arith.constant 0 : i32
      %1169 = arith.addi %arg12, %c0_i32_484 : i32
      %1170 = arith.index_cast %1169 : i32 to index
      %c0_485 = arith.constant 0 : index
      %c0_486 = arith.constant 0 : index
      %1171 = vector.load %arg10[%1170, %c0_485, %c0_486] : memref<26x32x16xf32, #tpu.memory_space<vmem>>, vector<1x32x16xf32>
      %1172 = vector.shape_cast %1171 : vector<1x32x16xf32> to vector<32x16xf32>
      %c10 = arith.constant 10 : index
      %c0_487 = arith.constant 0 : index
      %1173 = vector.load %arg5[%c10, %c0_487] : memref<121x16xf32, #tpu.memory_space<vmem>>, vector<1x16xf32>
      %1174 = vector.shape_cast %1173 : vector<1x16xf32> to vector<16xf32>
      %1175 = vector.shape_cast %1174 : vector<16xf32> to vector<1x16xf32>
      %1176 = vector.broadcast %1175 : vector<1x16xf32> to vector<32x16xf32>
      %1177 = arith.mulf %1172, %1176 : vector<32x16xf32>
      %1178 = arith.addf %1168, %1177 : vector<32x16xf32>
      %c1_i32_488 = arith.constant 1 : i32
      %1179 = arith.addi %arg12, %c1_i32_488 : i32
      %1180 = arith.index_cast %1179 : i32 to index
      %c0_489 = arith.constant 0 : index
      %c0_490 = arith.constant 0 : index
      %1181 = vector.load %arg10[%1180, %c0_489, %c0_490] : memref<26x32x16xf32, #tpu.memory_space<vmem>>, vector<1x32x16xf32>
      %1182 = vector.shape_cast %1181 : vector<1x32x16xf32> to vector<32x16xf32>
      %c21 = arith.constant 21 : index
      %c0_491 = arith.constant 0 : index
      %1183 = vector.load %arg5[%c21, %c0_491] : memref<121x16xf32, #tpu.memory_space<vmem>>, vector<1x16xf32>
      %1184 = vector.shape_cast %1183 : vector<1x16xf32> to vector<16xf32>
      %1185 = vector.shape_cast %1184 : vector<16xf32> to vector<1x16xf32>
      %1186 = vector.broadcast %1185 : vector<1x16xf32> to vector<32x16xf32>
      %1187 = arith.mulf %1182, %1186 : vector<32x16xf32>
      %1188 = arith.addf %1178, %1187 : vector<32x16xf32>
      %c2_i32_492 = arith.constant 2 : i32
      %1189 = arith.addi %arg12, %c2_i32_492 : i32
      %1190 = arith.index_cast %1189 : i32 to index
      %c0_493 = arith.constant 0 : index
      %c0_494 = arith.constant 0 : index
      %1191 = vector.load %arg10[%1190, %c0_493, %c0_494] : memref<26x32x16xf32, #tpu.memory_space<vmem>>, vector<1x32x16xf32>
      %1192 = vector.shape_cast %1191 : vector<1x32x16xf32> to vector<32x16xf32>
      %c32 = arith.constant 32 : index
      %c0_495 = arith.constant 0 : index
      %1193 = vector.load %arg5[%c32, %c0_495] : memref<121x16xf32, #tpu.memory_space<vmem>>, vector<1x16xf32>
      %1194 = vector.shape_cast %1193 : vector<1x16xf32> to vector<16xf32>
      %1195 = vector.shape_cast %1194 : vector<16xf32> to vector<1x16xf32>
      %1196 = vector.broadcast %1195 : vector<1x16xf32> to vector<32x16xf32>
      %1197 = arith.mulf %1192, %1196 : vector<32x16xf32>
      %1198 = arith.addf %1188, %1197 : vector<32x16xf32>
      %c3_i32_496 = arith.constant 3 : i32
      %1199 = arith.addi %arg12, %c3_i32_496 : i32
      %1200 = arith.index_cast %1199 : i32 to index
      %c0_497 = arith.constant 0 : index
      %c0_498 = arith.constant 0 : index
      %1201 = vector.load %arg10[%1200, %c0_497, %c0_498] : memref<26x32x16xf32, #tpu.memory_space<vmem>>, vector<1x32x16xf32>
      %1202 = vector.shape_cast %1201 : vector<1x32x16xf32> to vector<32x16xf32>
      %c43 = arith.constant 43 : index
      %c0_499 = arith.constant 0 : index
      %1203 = vector.load %arg5[%c43, %c0_499] : memref<121x16xf32, #tpu.memory_space<vmem>>, vector<1x16xf32>
      %1204 = vector.shape_cast %1203 : vector<1x16xf32> to vector<16xf32>
      %1205 = vector.shape_cast %1204 : vector<16xf32> to vector<1x16xf32>
      %1206 = vector.broadcast %1205 : vector<1x16xf32> to vector<32x16xf32>
      %1207 = arith.mulf %1202, %1206 : vector<32x16xf32>
      %1208 = arith.addf %1198, %1207 : vector<32x16xf32>
      %c4_i32_500 = arith.constant 4 : i32
      %1209 = arith.addi %arg12, %c4_i32_500 : i32
      %1210 = arith.index_cast %1209 : i32 to index
      %c0_501 = arith.constant 0 : index
      %c0_502 = arith.constant 0 : index
      %1211 = vector.load %arg10[%1210, %c0_501, %c0_502] : memref<26x32x16xf32, #tpu.memory_space<vmem>>, vector<1x32x16xf32>
      %1212 = vector.shape_cast %1211 : vector<1x32x16xf32> to vector<32x16xf32>
      %c54 = arith.constant 54 : index
      %c0_503 = arith.constant 0 : index
      %1213 = vector.load %arg5[%c54, %c0_503] : memref<121x16xf32, #tpu.memory_space<vmem>>, vector<1x16xf32>
      %1214 = vector.shape_cast %1213 : vector<1x16xf32> to vector<16xf32>
      %1215 = vector.shape_cast %1214 : vector<16xf32> to vector<1x16xf32>
      %1216 = vector.broadcast %1215 : vector<1x16xf32> to vector<32x16xf32>
      %1217 = arith.mulf %1212, %1216 : vector<32x16xf32>
      %1218 = arith.addf %1208, %1217 : vector<32x16xf32>
      %c5_i32_504 = arith.constant 5 : i32
      %1219 = arith.addi %arg12, %c5_i32_504 : i32
      %1220 = arith.index_cast %1219 : i32 to index
      %c0_505 = arith.constant 0 : index
      %c0_506 = arith.constant 0 : index
      %1221 = vector.load %arg10[%1220, %c0_505, %c0_506] : memref<26x32x16xf32, #tpu.memory_space<vmem>>, vector<1x32x16xf32>
      %1222 = vector.shape_cast %1221 : vector<1x32x16xf32> to vector<32x16xf32>
      %c65 = arith.constant 65 : index
      %c0_507 = arith.constant 0 : index
      %1223 = vector.load %arg5[%c65, %c0_507] : memref<121x16xf32, #tpu.memory_space<vmem>>, vector<1x16xf32>
      %1224 = vector.shape_cast %1223 : vector<1x16xf32> to vector<16xf32>
      %1225 = vector.shape_cast %1224 : vector<16xf32> to vector<1x16xf32>
      %1226 = vector.broadcast %1225 : vector<1x16xf32> to vector<32x16xf32>
      %1227 = arith.mulf %1222, %1226 : vector<32x16xf32>
      %1228 = arith.addf %1218, %1227 : vector<32x16xf32>
      %c6_i32_508 = arith.constant 6 : i32
      %1229 = arith.addi %arg12, %c6_i32_508 : i32
      %1230 = arith.index_cast %1229 : i32 to index
      %c0_509 = arith.constant 0 : index
      %c0_510 = arith.constant 0 : index
      %1231 = vector.load %arg10[%1230, %c0_509, %c0_510] : memref<26x32x16xf32, #tpu.memory_space<vmem>>, vector<1x32x16xf32>
      %1232 = vector.shape_cast %1231 : vector<1x32x16xf32> to vector<32x16xf32>
      %c76 = arith.constant 76 : index
      %c0_511 = arith.constant 0 : index
      %1233 = vector.load %arg5[%c76, %c0_511] : memref<121x16xf32, #tpu.memory_space<vmem>>, vector<1x16xf32>
      %1234 = vector.shape_cast %1233 : vector<1x16xf32> to vector<16xf32>
      %1235 = vector.shape_cast %1234 : vector<16xf32> to vector<1x16xf32>
      %1236 = vector.broadcast %1235 : vector<1x16xf32> to vector<32x16xf32>
      %1237 = arith.mulf %1232, %1236 : vector<32x16xf32>
      %1238 = arith.addf %1228, %1237 : vector<32x16xf32>
      %c7_i32_512 = arith.constant 7 : i32
      %1239 = arith.addi %arg12, %c7_i32_512 : i32
      %1240 = arith.index_cast %1239 : i32 to index
      %c0_513 = arith.constant 0 : index
      %c0_514 = arith.constant 0 : index
      %1241 = vector.load %arg10[%1240, %c0_513, %c0_514] : memref<26x32x16xf32, #tpu.memory_space<vmem>>, vector<1x32x16xf32>
      %1242 = vector.shape_cast %1241 : vector<1x32x16xf32> to vector<32x16xf32>
      %c87 = arith.constant 87 : index
      %c0_515 = arith.constant 0 : index
      %1243 = vector.load %arg5[%c87, %c0_515] : memref<121x16xf32, #tpu.memory_space<vmem>>, vector<1x16xf32>
      %1244 = vector.shape_cast %1243 : vector<1x16xf32> to vector<16xf32>
      %1245 = vector.shape_cast %1244 : vector<16xf32> to vector<1x16xf32>
      %1246 = vector.broadcast %1245 : vector<1x16xf32> to vector<32x16xf32>
      %1247 = arith.mulf %1242, %1246 : vector<32x16xf32>
      %1248 = arith.addf %1238, %1247 : vector<32x16xf32>
      %c8_i32_516 = arith.constant 8 : i32
      %1249 = arith.addi %arg12, %c8_i32_516 : i32
      %1250 = arith.index_cast %1249 : i32 to index
      %c0_517 = arith.constant 0 : index
      %c0_518 = arith.constant 0 : index
      %1251 = vector.load %arg10[%1250, %c0_517, %c0_518] : memref<26x32x16xf32, #tpu.memory_space<vmem>>, vector<1x32x16xf32>
      %1252 = vector.shape_cast %1251 : vector<1x32x16xf32> to vector<32x16xf32>
      %c98 = arith.constant 98 : index
      %c0_519 = arith.constant 0 : index
      %1253 = vector.load %arg5[%c98, %c0_519] : memref<121x16xf32, #tpu.memory_space<vmem>>, vector<1x16xf32>
      %1254 = vector.shape_cast %1253 : vector<1x16xf32> to vector<16xf32>
      %1255 = vector.shape_cast %1254 : vector<16xf32> to vector<1x16xf32>
      %1256 = vector.broadcast %1255 : vector<1x16xf32> to vector<32x16xf32>
      %1257 = arith.mulf %1252, %1256 : vector<32x16xf32>
      %1258 = arith.addf %1248, %1257 : vector<32x16xf32>
      %c9_i32_520 = arith.constant 9 : i32
      %1259 = arith.addi %arg12, %c9_i32_520 : i32
      %1260 = arith.index_cast %1259 : i32 to index
      %c0_521 = arith.constant 0 : index
      %c0_522 = arith.constant 0 : index
      %1261 = vector.load %arg10[%1260, %c0_521, %c0_522] : memref<26x32x16xf32, #tpu.memory_space<vmem>>, vector<1x32x16xf32>
      %1262 = vector.shape_cast %1261 : vector<1x32x16xf32> to vector<32x16xf32>
      %c109 = arith.constant 109 : index
      %c0_523 = arith.constant 0 : index
      %1263 = vector.load %arg5[%c109, %c0_523] : memref<121x16xf32, #tpu.memory_space<vmem>>, vector<1x16xf32>
      %1264 = vector.shape_cast %1263 : vector<1x16xf32> to vector<16xf32>
      %1265 = vector.shape_cast %1264 : vector<16xf32> to vector<1x16xf32>
      %1266 = vector.broadcast %1265 : vector<1x16xf32> to vector<32x16xf32>
      %1267 = arith.mulf %1262, %1266 : vector<32x16xf32>
      %1268 = arith.addf %1258, %1267 : vector<32x16xf32>
      %c10_i32_524 = arith.constant 10 : i32
      %1269 = arith.addi %arg12, %c10_i32_524 : i32
      %1270 = arith.index_cast %1269 : i32 to index
      %c0_525 = arith.constant 0 : index
      %c0_526 = arith.constant 0 : index
      %1271 = vector.load %arg10[%1270, %c0_525, %c0_526] : memref<26x32x16xf32, #tpu.memory_space<vmem>>, vector<1x32x16xf32>
      %1272 = vector.shape_cast %1271 : vector<1x32x16xf32> to vector<32x16xf32>
      %c120 = arith.constant 120 : index
      %c0_527 = arith.constant 0 : index
      %1273 = vector.load %arg5[%c120, %c0_527] : memref<121x16xf32, #tpu.memory_space<vmem>>, vector<1x16xf32>
      %1274 = vector.shape_cast %1273 : vector<1x16xf32> to vector<16xf32>
      %1275 = vector.shape_cast %1274 : vector<16xf32> to vector<1x16xf32>
      %1276 = vector.broadcast %1275 : vector<1x16xf32> to vector<32x16xf32>
      %1277 = arith.mulf %1272, %1276 : vector<32x16xf32>
      %1278 = arith.addf %1268, %1277 : vector<32x16xf32>
      %c27_i32 = arith.constant 27 : i32
      %1279 = tpu.dynamic_rotate %1278 by %c27_i32 dim 0 : vector<32x16xf32>, i32 -> vector<32x16xf32>
      %1280 = arith.addf %1167, %1279 : vector<32x16xf32>
      %c16_i32_528 = arith.constant 16 : i32
      %1281 = arith.muli %arg12, %c16_i32_528 : i32
      %1282 = tpu.assume_multiple %1281, 8 : i32
      %1283 = vector.extract_strided_slice %1280 {offsets = [8, 0], sizes = [16, 16], strides = [1, 1]} : vector<32x16xf32> to vector<16x16xf32>
      %1284 = arith.index_cast %1282 : i32 to index
      %c0_529 = arith.constant 0 : index
      %1285 = vector.load %arg11[%1284, %c0_529] : memref<256x16xf32, #tpu.memory_space<vmem>>, vector<16x16xf32>
      tpu.vector_store %arg11[%1284, %c0_529], %1283 {strides = array<i32>} : memref<256x16xf32, #tpu.memory_space<vmem>>, vector<16x16xf32>,
    }
    %c16_i32_16 = arith.constant 16 : i32
    %c0_17 = arith.constant 0 : index
    %c0_18 = arith.constant 0 : index
    %22 = vector.load %arg11[%c0_17, %c0_18] : memref<256x16xf32, #tpu.memory_space<vmem>>, vector<256x16xf32>
    %23 = arith.truncf %22 : vector<256x16xf32> to vector<256x16xbf16>
    %c0_19 = arith.constant 0 : index
    %c0_20 = arith.constant 0 : index
    %24 = vector.load %arg6[%c0_19, %c0_20] : memref<16x4xbf16, #tpu.memory_space<vmem>>, vector<16x4xbf16>
    %cst_21 = arith.constant dense<0.000000e+00> : vector<256x4xf32>
    %25 = tpu.matmul %23, %24, %cst_21 {dimension_numbers = #tpu.dot_dimension_numbers<[1], [0], [0], [1], [0, 0, 1, 1], [], []>} : vector<256x16xbf16>, vector<16x4xbf16>, vector<256x4xf32> -> vector<256x4xf32>
    %c0_22 = arith.constant 0 : index
    %c0_23 = arith.constant 0 : index
    %26 = vector.load %arg7[%c0_22, %c0_23] : memref<1x4xf32, #tpu.memory_space<vmem>>, vector<1x4xf32>
    %27 = vector.broadcast %26 : vector<1x4xf32> to vector<256x4xf32>
    %28 = arith.addf %25, %27 : vector<256x4xf32>
    %c0_24 = arith.constant 0 : index
    %c0_25 = arith.constant 0 : index
    %29 = vector.load %arg8[%c0_24, %c0_25] : memref<1x4xf32, #tpu.memory_space<vmem>>, vector<1x4xf32>
    %30 = vector.broadcast %29 : vector<1x4xf32> to vector<256x4xf32>
    %31 = arith.mulf %28, %30 : vector<256x4xf32>
    %c0_26 = arith.constant 0 : index
    %c0_27 = arith.constant 0 : index
    %c80 = arith.constant 80 : index
    %c0_28 = arith.constant 0 : index
    %32 = vector.load %arg2[%c0_26, %c0_27, %c80, %c0_28] : memref<1x1x416x4xf32, #tpu.memory_space<vmem>>, vector<1x1x256x4xf32>
    %33 = vector.shape_cast %32 : vector<1x1x256x4xf32> to vector<256x4xf32>
    %34 = arith.addf %31, %33 : vector<256x4xf32>
    %c0_29 = arith.constant 0 : index
    %c0_30 = arith.constant 0 : index
    %c0_31 = arith.constant 0 : index
    %c0_32 = arith.constant 0 : index
    %35 = vector.load %arg9[%c0_29, %c0_30, %c0_31, %c0_32] : memref<1x1x256x4xf32, #tpu.memory_space<vmem>>, vector<1x1x256x4xf32>
    %36 = vector.shape_cast %35 : vector<1x1x256x4xf32> to vector<256x4xf32>
    %37 = vector.shape_cast %34 : vector<256x4xf32> to vector<1x1x256x4xf32>
    tpu.vector_store %arg9[%c0_29, %c0_30, %c0_31, %c0_32], %37 {strides = array<i32>} : memref<1x1x256x4xf32, #tpu.memory_space<vmem>>, vector<1x1x256x4xf32>,
    return
  }
  func.func @transform_0(%arg0: i32, %arg1: i32) -> (i32, i32, i32, i32) {
    %c0_i32 = arith.constant 0 : i32
    %c0_i32_0 = arith.constant 0 : i32
    %c0_i32_1 = arith.constant 0 : i32
    return %arg0, %arg1, %c0_i32, %c0_i32_0 : i32, i32, i32, i32
  }
  func.func @transform_1(%arg0: i32, %arg1: i32) -> (i32, i32) {
    %c0_i32 = arith.constant 0 : i32
    %c0_i32_0 = arith.constant 0 : i32
    %c0_i32_1 = arith.constant 0 : i32
    return %c0_i32, %c0_i32_0 : i32, i32
  }
  func.func @transform_2(%arg0: i32, %arg1: i32) -> (i32, i32) {
    %c0_i32 = arith.constant 0 : i32
    %c0_i32_0 = arith.constant 0 : i32
    %c0_i32_1 = arith.constant 0 : i32
    return %c0_i32, %c0_i32_0 : i32, i32
  }
  func.func @transform_3(%arg0: i32, %arg1: i32) -> (i32, i32) {
    %c0_i32 = arith.constant 0 : i32
    %c0_i32_0 = arith.constant 0 : i32
    %c0_i32_1 = arith.constant 0 : i32
    return %c0_i32, %c0_i32_0 : i32, i32
  }
  func.func @transform_4(%arg0: i32, %arg1: i32) -> (i32, i32) {
    %c0_i32 = arith.constant 0 : i32
    %c0_i32_0 = arith.constant 0 : i32
    %c0_i32_1 = arith.constant 0 : i32
    return %c0_i32, %c0_i32_0 : i32, i32
  }
  func.func @transform_5(%arg0: i32, %arg1: i32) -> (i32, i32) {
    %c0_i32 = arith.constant 0 : i32
    %c0_i32_0 = arith.constant 0 : i32
    %c0_i32_1 = arith.constant 0 : i32
    return %c0_i32, %c0_i32_0 : i32, i32
  }
  func.func @transform_6(%arg0: i32, %arg1: i32) -> (i32, i32) {
    %c0_i32 = arith.constant 0 : i32
    %c0_i32_0 = arith.constant 0 : i32
    %c0_i32_1 = arith.constant 0 : i32
    return %c0_i32, %c0_i32_0 : i32, i32
  }
  func.func @transform_7(%arg0: i32, %arg1: i32) -> (i32, i32, i32, i32) {
    %c0_i32 = arith.constant 0 : i32
    %c0_i32_0 = arith.constant 0 : i32
    %c0_i32_1 = arith.constant 0 : i32
    return %arg0, %arg1, %c0_i32, %c0_i32_0 : i32, i32, i32, i32
  }
}

</mosaic_0001>

<llo_original>
// kernel: tpu_custom_call.1
$region0: #{tpu_custom_call.1}
  #allocation0 [shape = 'u32[]', space=smem, size = 0x4, offset = 0x4, fixed_abs, tag = 'smem constant byte address 0x4 - core index']
  #allocation1 [shape = 'u32[144,128]{1,0:T(1,128)}', space=vmem, size = 0x12000, scoped, tag = 'internal scratch']
  #allocation2 [shape = 'f32[26,32,16]{2,1,0:T(8,128)}', space=vmem, size = 0x68000, scoped, tag = 'scratch operand']
  #allocation3 [shape = 'f32[256,16]{1,0:T(8,128)}', space=vmem, size = 0x20000, scoped, tag = 'scratch operand']
  %s0 = inlined_call_operand.vmem [shape: f32[2,1,416,4], index: 0, kind: input, shape index: {}]
  %s1 = inlined_call_operand.vmem [shape: bf16[4,16], index: 1, kind: input, shape index: {}]
  %s2 = inlined_call_operand.vmem [shape: f32[1,16], index: 2, kind: input, shape index: {}]
  %s3 = inlined_call_operand.vmem [shape: f32[121,16], index: 3, kind: input, shape index: {}]
  %s4 = inlined_call_operand.vmem [shape: bf16[16,4], index: 4, kind: input, shape index: {}]
  %s5 = inlined_call_operand.vmem [shape: f32[1,4], index: 5, kind: input, shape index: {}]
  %s6 = inlined_call_operand.vmem [shape: f32[1,4], index: 6, kind: input, shape index: {}]
  %s7 = inlined_call_operand.vmem [shape: f32[2,1,256,4], index: 7, kind: output, shape index: {}]
  %s8 = sld [smem:[#allocation0]]
  $region76: #{tpu_custom_call.1} parent=0
    _
  %s10 = ssub.s32 1, %s8
  %s11 = scalar_select 0, %s10, %s8
  loop: start=0, step=1, limit=4
  $region2: #{tpu_custom_call.1} parent=0 // loop_pre_header
    _
  $region3: #{tpu_custom_call.1} parent=0 // loop_header
    %s13 = sphi 0, %s17
    %p14 = scmp.ge.s32.totalorder %s13, 4
    %s20 = sphi 0, %s32
    %s21 = sphi 0, %s28
    %s22 = sphi 0, %s20
    %s23 = sphi 0, %s21
    %s24 = sphi 0, %s22
    %s25 = sphi 0, %s23
    %s37 = sphi 0, %s39
    %s40 = sphi 0, %s37
    %s41 = sphi 0, %s40
    %s57 = sphi 0, %s41
    %s61 = sphi 0, %s61
    %s63 = sphi 0, %s61
    %s64 = sphi 0, %s63
    %s78 = sphi 0, %s64
    %s82 = sphi 0, %s82
    %s84 = sphi 0, %s82
    %s85 = sphi 0, %s84
    %s99 = sphi 0, %s85
    %s103 = sphi 0, %s103
    %s105 = sphi 0, %s103
    %s106 = sphi 0, %s105
    %s120 = sphi 0, %s106
    %s124 = sphi 0, %s124
    %s126 = sphi 0, %s124
    %s127 = sphi 0, %s126
    %s141 = sphi 0, %s127
    %s145 = sphi 0, %s145
    %s147 = sphi 0, %s145
    %s148 = sphi 0, %s147
    %s162 = sphi 0, %s148
    %s166 = sphi 0, %s166
    %s168 = sphi 0, %s166
    %s169 = sphi 0, %s168
    %s183 = sphi 0, %s169
    %s191 = sphi 0, %s193
    %s194 = sphi 0, %s191
    %s195 = sphi 0, %s194
    %s211 = sphi 0, %s195
  $region4: #{tpu_custom_call.1} parent=0 // loop_header_branch
    %16 = sbr.rel (%p14) target = $region8
  $region5: #{tpu_custom_call.1} parent=0 // loop_body
    %s18 = ssub.s32 %s13, 1
    %s19 = ssub.s32 %s13, 2
    %s26 = sadd.s32 1, %s21
    %p27 = scmp.ge.s32.totalorder %s26, 1
    %s28 = scalar_select %p27, 0, %s26
    %s29 = sadd.s32 1, %s20
    %s30 = scalar_select %p27, %s29, %s20
    %p31 = scmp.ge.s32.totalorder %s30, 2
    %s32 = scalar_select %p31, 0, %s30
    %s33 = ssub.s32 %s20, %s32
    %s34 = ssub.s32 %s21, %s28
    %s35 = sor.u32 %s33, %s34
    %p36 = scmp.eq.s32.totalorder %s35, 0
    %s38 = sadd.s32 %s37, 1
    %s39 = scalar_select %p36, %s37, %s38
    %p42 = pneg %p36
    %p43 = scmp.eq.s32.totalorder %s13, 1
    %p44 = por %p42, %p43
    %p45 = scmp.ne.s32.totalorder %s37, %s40
    %p46 = scmp.eq.s32.totalorder %s13, 0
    %p47 = por %p45, %p46
    %p48 = scmp.ne.s32.totalorder %s37, %s40
    %p49 = scmp.eq.s32.totalorder %s18, 1
    %p50 = por %p48, %p49
    %p51 = scmp.ne.s32.totalorder %s40, %s41
    %p52 = scmp.eq.s32.totalorder %s18, 0
    %p53 = por %p51, %p52
    %p54 = scmp.ne.s32.totalorder %s40, %s41
    %p55 = scmp.eq.s32.totalorder %s19, 1
    %p56 = por %p54, %p55
    %p58 = scmp.ne.s32.totalorder %s41, %s57
    %p59 = scmp.eq.s32.totalorder %s19, 0
    %p60 = por %p58, %p59
    %s62 = sadd.s32 %s61, 1
    %p65 = scmp.eq.s32.totalorder %s13, 1
    %p66 = scmp.ne.s32.totalorder %s61, %s63
    %p67 = scmp.eq.s32.totalorder %s13, 0
    %p68 = por %p66, %p67
    %p69 = scmp.ne.s32.totalorder %s61, %s63
    %p70 = scmp.eq.s32.totalorder %s18, 1
    %p71 = por %p69, %p70
    %p72 = scmp.ne.s32.totalorder %s63, %s64
    %p73 = scmp.eq.s32.totalorder %s18, 0
    %p74 = por %p72, %p73
    %p75 = scmp.ne.s32.totalorder %s63, %s64
    %p76 = scmp.eq.s32.totalorder %s19, 1
    %p77 = por %p75, %p76
    %p79 = scmp.ne.s32.totalorder %s64, %s78
    %p80 = scmp.eq.s32.totalorder %s19, 0
    %p81 = por %p79, %p80
    %s83 = sadd.s32 %s82, 1
    %p86 = scmp.eq.s32.totalorder %s13, 1
    %p87 = scmp.ne.s32.totalorder %s82, %s84
    %p88 = scmp.eq.s32.totalorder %s13, 0
    %p89 = por %p87, %p88
    %p90 = scmp.ne.s32.totalorder %s82, %s84
    %p91 = scmp.eq.s32.totalorder %s18, 1
    %p92 = por %p90, %p91
    %p93 = scmp.ne.s32.totalorder %s84, %s85
    %p94 = scmp.eq.s32.totalorder %s18, 0
    %p95 = por %p93, %p94
    %p96 = scmp.ne.s32.totalorder %s84, %s85
    %p97 = scmp.eq.s32.totalorder %s19, 1
    %p98 = por %p96, %p97
    %p100 = scmp.ne.s32.totalorder %s85, %s99
    %p101 = scmp.eq.s32.totalorder %s19, 0
    %p102 = por %p100, %p101
    %s104 = sadd.s32 %s103, 1
    %p107 = scmp.eq.s32.totalorder %s13, 1
    %p108 = scmp.ne.s32.totalorder %s103, %s105
    %p109 = scmp.eq.s32.totalorder %s13, 0
    %p110 = por %p108, %p109
    %p111 = scmp.ne.s32.totalorder %s103, %s105
    %p112 = scmp.eq.s32.totalorder %s18, 1
    %p113 = por %p111, %p112
    %p114 = scmp.ne.s32.totalorder %s105, %s106
    %p115 = scmp.eq.s32.totalorder %s18, 0
    %p116 = por %p114, %p115
    %p117 = scmp.ne.s32.totalorder %s105, %s106
    %p118 = scmp.eq.s32.totalorder %s19, 1
    %p119 = por %p117, %p118
    %p121 = scmp.ne.s32.totalorder %s106, %s120
    %p122 = scmp.eq.s32.totalorder %s19, 0
    %p123 = por %p121, %p122
    %s125 = sadd.s32 %s124, 1
    %p128 = scmp.eq.s32.totalorder %s13, 1
    %p129 = scmp.ne.s32.totalorder %s124, %s126
    %p130 = scmp.eq.s32.totalorder %s13, 0
    %p131 = por %p129, %p130
    %p132 = scmp.ne.s32.totalorder %s124, %s126
    %p133 = scmp.eq.s32.totalorder %s18, 1
    %p134 = por %p132, %p133
    %p135 = scmp.ne.s32.totalorder %s126, %s127
    %p136 = scmp.eq.s32.totalorder %s18, 0
    %p137 = por %p135, %p136
    %p138 = scmp.ne.s32.totalorder %s126, %s127
    %p139 = scmp.eq.s32.totalorder %s19, 1
    %p140 = por %p138, %p139
    %p142 = scmp.ne.s32.totalorder %s127, %s141
    %p143 = scmp.eq.s32.totalorder %s19, 0
    %p144 = por %p142, %p143
    %s146 = sadd.s32 %s145, 1
    %p149 = scmp.eq.s32.totalorder %s13, 1
    %p150 = scmp.ne.s32.totalorder %s145, %s147
    %p151 = scmp.eq.s32.totalorder %s13, 0
    %p152 = por %p150, %p151
    %p153 = scmp.ne.s32.totalorder %s145, %s147
    %p154 = scmp.eq.s32.totalorder %s18, 1
    %p155 = por %p153, %p154
    %p156 = scmp.ne.s32.totalorder %s147, %s148
    %p157 = scmp.eq.s32.totalorder %s18, 0
    %p158 = por %p156, %p157
    %p159 = scmp.ne.s32.totalorder %s147, %s148
    %p160 = scmp.eq.s32.totalorder %s19, 1
    %p161 = por %p159, %p160
    %p163 = scmp.ne.s32.totalorder %s148, %s162
    %p164 = scmp.eq.s32.totalorder %s19, 0
    %p165 = por %p163, %p164
    %s167 = sadd.s32 %s166, 1
    %p170 = scmp.eq.s32.totalorder %s13, 1
    %p171 = scmp.ne.s32.totalorder %s166, %s168
    %p172 = scmp.eq.s32.totalorder %s13, 0
    %p173 = por %p171, %p172
    %p174 = scmp.ne.s32.totalorder %s166, %s168
    %p175 = scmp.eq.s32.totalorder %s18, 1
    %p176 = por %p174, %p175
    %p177 = scmp.ne.s32.totalorder %s168, %s169
    %p178 = scmp.eq.s32.totalorder %s18, 0
    %p179 = por %p177, %p178
    %p180 = scmp.ne.s32.totalorder %s168, %s169
    %p181 = scmp.eq.s32.totalorder %s19, 1
    %p182 = por %p180, %p181
    %p184 = scmp.ne.s32.totalorder %s169, %s183
    %p185 = scmp.eq.s32.totalorder %s19, 0
    %p186 = por %p184, %p185
    %s187 = ssub.s32 %s20, %s32
    %s188 = ssub.s32 %s21, %s28
    %s189 = sor.u32 %s187, %s188
    %p190 = scmp.eq.s32.totalorder %s189, 0
    %s192 = sadd.s32 %s191, 1
    %s193 = scalar_select %p190, %s191, %s192
    %p196 = pneg %p190
    %p197 = scmp.eq.s32.totalorder %s13, 1
    %p198 = por %p196, %p197
    %p199 = scmp.ne.s32.totalorder %s191, %s194
    %p200 = scmp.eq.s32.totalorder %s13, 0
    %p201 = por %p199, %p200
    %p202 = scmp.ne.s32.totalorder %s191, %s194
    %p203 = scmp.eq.s32.totalorder %s18, 1
    %p204 = por %p202, %p203
    %p205 = scmp.ne.s32.totalorder %s194, %s195
    %p206 = scmp.eq.s32.totalorder %s18, 0
    %p207 = por %p205, %p206
    %p208 = scmp.ne.s32.totalorder %s194, %s195
    %p209 = scmp.eq.s32.totalorder %s19, 1
    %p210 = por %p208, %p209
    %p212 = scmp.ne.s32.totalorder %s195, %s211
    %p213 = scmp.eq.s32.totalorder %s19, 0
    %p214 = por %p212, %p213
    %p215 = scmp.le.s32.totalorder 1, %s13
    %p216 = scmp.lt.s32.totalorder %s13, 3
    %p217 = pnand %p215, %p216
    %p218 = pneg %p217
    // Predicated region
    $region9: #{tpu_custom_call.1} parent=5 // pred_check
      _
    $region10: #{tpu_custom_call.1} parent=5 // pred_check_branch
      %220 = sbr.rel (%p217) target = $region12
    $region11: #{tpu_custom_call.1} parent=5 // pred_region
      %s221 = ssub.s32 %s13, 1
      // Predicated region
      $region13: #{tpu_custom_call.1} parent=11 // pred_check
        %p222 = pneg %p74
      $region14: #{tpu_custom_call.1} parent=11 // pred_check_branch
        %224 = sbr.rel (%p222) target = $region16
      $region15: #{tpu_custom_call.1} parent=11 // pred_region
        _
      $region16: #{tpu_custom_call.1} parent=11 // pred_fallthru
        _
      // Predicated region
      $region17: #{tpu_custom_call.1} parent=11 // pred_check
        %p225 = pneg %p95
      $region18: #{tpu_custom_call.1} parent=11 // pred_check_branch
        %227 = sbr.rel (%p225) target = $region20
      $region19: #{tpu_custom_call.1} parent=11 // pred_region
        _
      $region20: #{tpu_custom_call.1} parent=11 // pred_fallthru
        _
      // Predicated region
      $region21: #{tpu_custom_call.1} parent=11 // pred_check
        %p228 = pneg %p116
      $region22: #{tpu_custom_call.1} parent=11 // pred_check_branch
        %230 = sbr.rel (%p228) target = $region24
      $region23: #{tpu_custom_call.1} parent=11 // pred_region
        _
      $region24: #{tpu_custom_call.1} parent=11 // pred_fallthru
        _
      // Predicated region
      $region25: #{tpu_custom_call.1} parent=11 // pred_check
        %p231 = pneg %p137
      $region26: #{tpu_custom_call.1} parent=11 // pred_check_branch
        %233 = sbr.rel (%p231) target = $region28
      $region27: #{tpu_custom_call.1} parent=11 // pred_region
        _
      $region28: #{tpu_custom_call.1} parent=11 // pred_fallthru
        _
      // Predicated region
      $region29: #{tpu_custom_call.1} parent=11 // pred_check
        %p234 = pneg %p158
      $region30: #{tpu_custom_call.1} parent=11 // pred_check_branch
        %236 = sbr.rel (%p234) target = $region32
      $region31: #{tpu_custom_call.1} parent=11 // pred_region
        _
      $region32: #{tpu_custom_call.1} parent=11 // pred_fallthru
        _
      // Predicated region
      $region33: #{tpu_custom_call.1} parent=11 // pred_check
        %p237 = pneg %p179
      $region34: #{tpu_custom_call.1} parent=11 // pred_check_branch
        %239 = sbr.rel (%p237) target = $region36
      $region35: #{tpu_custom_call.1} parent=11 // pred_region
        _
      $region36: #{tpu_custom_call.1} parent=11 // pred_fallthru
        _
    $region12: #{tpu_custom_call.1} parent=5 // pred_fallthru
      _
    %p240 = scmp.lt.s32.totalorder %s13, 2
    // Predicated region
    $region37: #{tpu_custom_call.1} parent=5 // pred_check
      %p241 = pneg %p240
    $region38: #{tpu_custom_call.1} parent=5 // pred_check_branch
      %243 = sbr.rel (%p241) target = $region40
    $region39: #{tpu_custom_call.1} parent=5 // pred_region
      // Predicated region
      $region41: #{tpu_custom_call.1} parent=39 // pred_check
        %p244 = pneg %p47
      $region42: #{tpu_custom_call.1} parent=39 // pred_check_branch
        %246 = sbr.rel (%p244) target = $region44
      $region43: #{tpu_custom_call.1} parent=39 // pred_region
        %p247 = scmp.lt.s32.totalorder %s20, 1
        %s248 = scalar_select %p247, %s20, 1
        %p249 = scmp.lt.s32.totalorder %s21, 0
        %s250 = scalar_select %p249, %s21, 0
        %s251 = smul.addr %s250, 52
        %s252 = smul.addr %s248, 52
        %s253 = sadd.s32 %s251, %s252
        %s254 = smul.addr %s253, 8
        %s255 = scalar_lea.vmem %s0, %s254
      $region44: #{tpu_custom_call.1} parent=39 // pred_fallthru
        _
    $region40: #{tpu_custom_call.1} parent=5 // pred_fallthru
      _
    %p256 = scmp.le.s32.totalorder 1, %s13
    %p257 = scmp.lt.s32.totalorder %s13, 3
    %p258 = pnand %p256, %p257
    %p259 = pneg %p258
    // Predicated region
    $region45: #{tpu_custom_call.1} parent=5 // pred_check
      _
    $region46: #{tpu_custom_call.1} parent=5 // pred_check_branch
      %261 = sbr.rel (%p258) target = $region48
    $region47: #{tpu_custom_call.1} parent=5 // pred_region
      %s262 = ssub.s32 %s13, 1
      %p263 = scmp.lt.s32.totalorder %s22, 1
      %s264 = scalar_select %p263, %s22, 1
      %p265 = scmp.lt.s32.totalorder %s23, 0
      %s266 = scalar_select %p265, %s23, 0
      %s267 = smul.addr %s266, 52
      %s268 = smul.addr %s264, 52
      %s269 = sadd.s32 %s267, %s268
      %s270 = smul.addr %s269, 8
      %s271 = scalar_lea.vmem %s0, %s270
      %p272 = pneg %p53
      %p273 = pneg %p50
      %p274 = pneg %p74
      %p275 = pneg %p71
      %p276 = pneg %p95
      %p277 = pneg %p92
      %p278 = pneg %p116
      %p279 = pneg %p113
      %p280 = pneg %p137
      %p281 = pneg %p134
      %p282 = pneg %p158
      %p283 = pneg %p155
      %p284 = pneg %p179
      %p285 = pneg %p176
      %p286 = pneg %p207
      %p287 = pneg %p204
      %p288 = scmp.lt.s32.totalorder %s22, 1
      %s289 = scalar_select %p288, %s22, 1
      %p290 = scmp.lt.s32.totalorder %s23, 0
      %s291 = scalar_select %p290, %s23, 0
      %s292 = smul.addr %s291, 32
      %s293 = smul.addr %s289, 32
      %s294 = sadd.s32 %s292, %s293
      %s295 = smul.addr %s294, 8
      %s296 = scalar_lea.vmem %s7, %s295
      %p297 = scmp.lt.s32.totalorder %s22, 1
      %s298 = scalar_select %p297, %s22, 1
      %p299 = scmp.lt.s32.totalorder %s23, 0
      %s300 = scalar_select %p299, %s23, 0
      %s301 = smul.addr %s300, 52
      %s302 = smul.addr %s298, 52
      %s303 = sadd.s32 %s301, %s302
      %s304 = smul.addr %s303, 8
      %s305 = scalar_lea.vmem %s0, %s304
      %p306 = scmp.lt.s32.totalorder %s22, 1
      %s307 = scalar_select %p306, %s22, 1
      %p308 = scmp.lt.s32.totalorder %s23, 0
      %s309 = scalar_select %p308, %s23, 0
      %s310 = smul.addr %s309, 32
      %s311 = smul.addr %s307, 32
      %s312 = sadd.s32 %s310, %s311
      %s313 = smul.addr %s312, 8
      %s314 = scalar_lea.vmem %s7, %s313
      %v316 = vld [vmem:[%s305] sm:$0xff]
      %v317 = vld [vmem:[%s305 + $0x8] sm:$0xff]
      %v318 = vld [vmem:[%s305 + $0x10] sm:$0xff]
      %v319 = vld [vmem:[%s305 + $0x18] sm:$0xff]
      %v320 = vld [vmem:[%s305 + $0x20] sm:$0xff]
      %v321 = vld [vmem:[%s305 + $0x28] sm:$0xff]
      %v322 = vld [vmem:[%s305 + $0x30] sm:$0xff]
      %v323 = vld [vmem:[%s305 + $0x38] sm:$0xff]
      %v324 = vld [vmem:[%s305 + $0x40] sm:$0xff]
      %v325 = vld [vmem:[%s305 + $0x48] sm:$0xff]
      %v326 = vld [vmem:[%s305 + $0x50] sm:$0xff]
      %v327 = vld [vmem:[%s305 + $0x58] sm:$0xff]
      %v328 = vld [vmem:[%s305 + $0x60] sm:$0xff]
      %v329 = vld [vmem:[%s305 + $0x68] sm:$0xff]
      %v330 = vld [vmem:[%s305 + $0x70] sm:$0xff]
      %v331 = vld [vmem:[%s305 + $0x78] sm:$0xff]
      %v332 = vld [vmem:[%s305 + $0x80] sm:$0xff]
      %v333 = vld [vmem:[%s305 + $0x88] sm:$0xff]
      %v334 = vld [vmem:[%s305 + $0x90] sm:$0xff]
      %v335 = vld [vmem:[%s305 + $0x98] sm:$0xff]
      %v336 = vld [vmem:[%s305 + $0xa0] sm:$0xff]
      %v337 = vld [vmem:[%s305 + $0xa8] sm:$0xff]
      %v338 = vld [vmem:[%s305 + $0xb0] sm:$0xff]
      %v339 = vld [vmem:[%s305 + $0xb8] sm:$0xff]
      %v340 = vld [vmem:[%s305 + $0xc0] sm:$0xff]
      %v341 = vld [vmem:[%s305 + $0xc8] sm:$0xff]
      %v342 = vld [vmem:[%s305 + $0xd0] sm:$0xff]
      %v343 = vld [vmem:[%s305 + $0xd8] sm:$0xff]
      %v344 = vld [vmem:[%s305 + $0xe0] sm:$0xff]
      %v345 = vld [vmem:[%s305 + $0xe8] sm:$0xff]
      %v346 = vld [vmem:[%s305 + $0xf0] sm:$0xff]
      %v347 = vld [vmem:[%s305 + $0xf8] sm:$0xff]
      %v348 = vld [vmem:[%s305 + $0x100] sm:$0xff]
      %v349 = vld [vmem:[%s305 + $0x108] sm:$0xff]
      %v350 = vld [vmem:[%s305 + $0x110] sm:$0xff]
      %v351 = vld [vmem:[%s305 + $0x118] sm:$0xff]
      %v352 = vld [vmem:[%s305 + $0x120] sm:$0xff]
      %v353 = vld [vmem:[%s305 + $0x128] sm:$0xff]
      %v354 = vld [vmem:[%s305 + $0x130] sm:$0xff]
      %v355 = vld [vmem:[%s305 + $0x138] sm:$0xff]
      %v356 = vld [vmem:[%s305 + $0x140] sm:$0xff]
      %v357 = vld [vmem:[%s305 + $0x148] sm:$0xff]
      %v358 = vld [vmem:[%s305 + $0x150] sm:$0xff]
      %v359 = vld [vmem:[%s305 + $0x158] sm:$0xff]
      %v360 = vld [vmem:[%s305 + $0x160] sm:$0xff]
      %v361 = vld [vmem:[%s305 + $0x168] sm:$0xff]
      %v362 = vld [vmem:[%s305 + $0x170] sm:$0xff]
      %v363 = vld [vmem:[%s305 + $0x178] sm:$0xff]
      %v364 = vld [vmem:[%s305 + $0x180] sm:$0xff]
      %v365 = vld [vmem:[%s305 + $0x188] sm:$0xff]
      %v366 = vld [vmem:[%s305 + $0x190] sm:$0xff]
      %v367 = vld [vmem:[%s305 + $0x198] sm:$0xff]
      %v368 = vpack.c.bf16 %v317, %v316
      %v369 = vpack.c.bf16 %v319, %v318
      %v370 = vpack.c.bf16 %v321, %v320
      %v371 = vpack.c.bf16 %v323, %v322
      %v372 = vpack.c.bf16 %v325, %v324
      %v373 = vpack.c.bf16 %v327, %v326
      %v374 = vpack.c.bf16 %v329, %v328
      %v375 = vpack.c.bf16 %v331, %v330
      %v376 = vpack.c.bf16 %v333, %v332
      %v377 = vpack.c.bf16 %v335, %v334
      %v378 = vpack.c.bf16 %v337, %v336
      %v379 = vpack.c.bf16 %v339, %v338
      %v380 = vpack.c.bf16 %v341, %v340
      %v381 = vpack.c.bf16 %v343, %v342
      %v382 = vpack.c.bf16 %v345, %v344
      %v383 = vpack.c.bf16 %v347, %v346
      %v384 = vpack.c.bf16 %v349, %v348
      %v385 = vpack.c.bf16 %v351, %v350
      %v386 = vpack.c.bf16 %v353, %v352
      %v387 = vpack.c.bf16 %v355, %v354
      %v388 = vpack.c.bf16 %v357, %v356
      %v389 = vpack.c.bf16 %v359, %v358
      %v390 = vpack.c.bf16 %v361, %v360
      %v391 = vpack.c.bf16 %v363, %v362
      %v392 = vpack.c.bf16 %v365, %v364
      %v393 = vpack.c.bf16 %v367, %v366
      %v394 = vld [vmem:[%s1] sm:$0x3]
      %v395 = vld [vmem:[%s2] sm:$0x1]
      %v397 = vlaneseq
      %v398 = vshrl.u32 %v397, 7
      %v399 = vsub.s32 0, %v398
      %v400 = vrot.slane %v395, %v399
      %vm402 = vcmask 31744
      %v404 = vsel %vm402, %v368, 0
      %v407 = vsel %vm402, %v369, 0
      %v410 = vsel %vm402, %v370, 0
      %v413 = vsel %vm402, %v371, 0
      %v416 = vsel %vm402, %v372, 0
      %v419 = vsel %vm402, %v373, 0
      %v422 = vsel %vm402, %v374, 0
      %v425 = vsel %vm402, %v375, 0
      %v428 = vsel %vm402, %v376, 0
      %v431 = vsel %vm402, %v377, 0
      %v434 = vsel %vm402, %v378, 0
      %v437 = vsel %vm402, %v379, 0
      %v440 = vsel %vm402, %v380, 0
      %v443 = vsel %vm402, %v381, 0
      %v446 = vsel %vm402, %v382, 0
      %v449 = vsel %vm402, %v383, 0
      %v452 = vsel %vm402, %v384, 0
      %v455 = vsel %vm402, %v385, 0
      %v458 = vsel %vm402, %v386, 0
      %v461 = vsel %vm402, %v387, 0
      %v464 = vsel %vm402, %v388, 0
      %v467 = vsel %vm402, %v389, 0
      %v470 = vsel %vm402, %v390, 0
      %v473 = vsel %vm402, %v391, 0
      %v476 = vsel %vm402, %v392, 0
      %v479 = vsel %vm402, %v393, 0
      %vm481 = vcmask 1041408
      %v483 = vsel %vm481, %v394, 0
      %485 = vmatprep.subr.bf16.mxu0 0
      %486 = vmatpush1.bf16.msra.mxu0 %v483
      %487 = vmatprep.subr.bf16.mxu0 0
      %488 = vmatpush1.bf16.msra.mxu0 0
      %489 = vmatprep.subr.bf16.mxu0 0
      %490 = vmatpush1.bf16.msra.mxu0 0
      %491 = vmatprep.subr.bf16.mxu0 0
      %492 = vmatpush1.bf16.msra.mxu0 0
      %493 = vmatprep.subr.bf16.mxu0 0
      %494 = vmatpush1.bf16.msra.mxu0 0
      %495 = vmatprep.subr.bf16.mxu0 0
      %496 = vmatpush1.bf16.msra.mxu0 0
      %497 = vmatprep.subr.bf16.mxu0 0
      %498 = vmatpush1.bf16.msra.mxu0 0
      %499 = vmatprep.subr.bf16.mxu0 0
      %500 = vmatpush1.bf16.msra.mxu0 0
      %501 = vmatprep.subr.bf16.mxu0 0
      %502 = vmatpush1.bf16.msra.mxu0 0
      %503 = vmatprep.subr.bf16.mxu0 0
      %504 = vmatpush1.bf16.msra.mxu0 0
      %505 = vmatprep.subr.bf16.mxu0 0
      %506 = vmatpush1.bf16.msra.mxu0 0
      %507 = vmatprep.subr.bf16.mxu0 0
      %508 = vmatpush1.bf16.msra.mxu0 0
      %509 = vmatprep.subr.bf16.mxu0 0
      %510 = vmatpush1.bf16.msra.mxu0 0
      %511 = vmatprep.subr.bf16.mxu0 0
      %512 = vmatpush1.bf16.msra.mxu0 0
      %513 = vmatprep.subr.bf16.mxu0 0
      %514 = vmatpush1.bf16.msra.mxu0 0
      %515 = vmatprep.subr.bf16.mxu0 0
      %516 = vmatpush1.bf16.msra.mxu0 0
      %517 = vmatprep.mubr.bf16.mxu0 0
      %518 = vmatmul.mubr.bf16.gmra.mrb[0].mxu0 %v404
      %v519 = vpop.f32.mrb[0].mxu0
      %v520 = vadd.f32 %v400, %v519
      %v521 = vpop.f32.mrb[0].mxu0
      %v522 = vpop.f32.mrb[0].mxu0
      %v523 = vadd.f32 %v400, %v522
      %v524 = vpop.f32.mrb[0].mxu0
      %525 = vmatprep.mubr.bf16.mxu0 0
      %526 = vmatmul.mubr.bf16.gmra.mrb[0].mxu0 %v407
      %v527 = vpop.f32.mrb[0].mxu0
      %v528 = vadd.f32 %v400, %v527
      %v529 = vpop.f32.mrb[0].mxu0
      %v530 = vpop.f32.mrb[0].mxu0
      %v531 = vadd.f32 %v400, %v530
      %v532 = vpop.f32.mrb[0].mxu0
      %533 = vmatprep.mubr.bf16.mxu0 0
      %534 = vmatmul.mubr.bf16.gmra.mrb[0].mxu0 %v410
      %v535 = vpop.f32.mrb[0].mxu0
      %v536 = vadd.f32 %v400, %v535
      %v537 = vpop.f32.mrb[0].mxu0
      %v538 = vpop.f32.mrb[0].mxu0
      %v539 = vadd.f32 %v400, %v538
      %v540 = vpop.f32.mrb[0].mxu0
      %541 = vmatprep.mubr.bf16.mxu0 0
      %542 = vmatmul.mubr.bf16.gmra.mrb[0].mxu0 %v413
      %v543 = vpop.f32.mrb[0].mxu0
      %v544 = vadd.f32 %v400, %v543
      %v545 = vpop.f32.mrb[0].mxu0
      %v546 = vpop.f32.mrb[0].mxu0
      %v547 = vadd.f32 %v400, %v546
      %v548 = vpop.f32.mrb[0].mxu0
      %549 = vmatprep.mubr.bf16.mxu0 0
      %550 = vmatmul.mubr.bf16.gmra.mrb[0].mxu0 %v416
      %v551 = vpop.f32.mrb[0].mxu0
      %v552 = vadd.f32 %v400, %v551
      %v553 = vpop.f32.mrb[0].mxu0
      %v554 = vpop.f32.mrb[0].mxu0
      %v555 = vadd.f32 %v400, %v554
      %v556 = vpop.f32.mrb[0].mxu0
      %557 = vmatprep.mubr.bf16.mxu0 0
      %558 = vmatmul.mubr.bf16.gmra.mrb[0].mxu0 %v419
      %v559 = vpop.f32.mrb[0].mxu0
      %v560 = vadd.f32 %v400, %v559
      %v561 = vpop.f32.mrb[0].mxu0
      %v562 = vpop.f32.mrb[0].mxu0
      %v563 = vadd.f32 %v400, %v562
      %v564 = vpop.f32.mrb[0].mxu0
      %565 = vmatprep.mubr.bf16.mxu0 0
      %566 = vmatmul.mubr.bf16.gmra.mrb[0].mxu0 %v422
      %v567 = vpop.f32.mrb[0].mxu0
      %v568 = vadd.f32 %v400, %v567
      %v569 = vpop.f32.mrb[0].mxu0
      %v570 = vpop.f32.mrb[0].mxu0
      %v571 = vadd.f32 %v400, %v570
      %v572 = vpop.f32.mrb[0].mxu0
      %573 = vmatprep.mubr.bf16.mxu0 0
      %574 = vmatmul.mubr.bf16.gmra.mrb[0].mxu0 %v425
      %v575 = vpop.f32.mrb[0].mxu0
      %v576 = vadd.f32 %v400, %v575
      %v577 = vpop.f32.mrb[0].mxu0
      %v578 = vpop.f32.mrb[0].mxu0
      %v579 = vadd.f32 %v400, %v578
      %v580 = vpop.f32.mrb[0].mxu0
      %581 = vmatprep.mubr.bf16.mxu0 0
      %582 = vmatmul.mubr.bf16.gmra.mrb[0].mxu0 %v428
      %v583 = vpop.f32.mrb[0].mxu0
      %v584 = vadd.f32 %v400, %v583
      %v585 = vpop.f32.mrb[0].mxu0
      %v586 = vpop.f32.mrb[0].mxu0
      %v587 = vadd.f32 %v400, %v586
      %v588 = vpop.f32.mrb[0].mxu0
      %589 = vmatprep.mubr.bf16.mxu0 0
      %590 = vmatmul.mubr.bf16.gmra.mrb[0].mxu0 %v431
      %v591 = vpop.f32.mrb[0].mxu0
      %v592 = vadd.f32 %v400, %v591
      %v593 = vpop.f32.mrb[0].mxu0
      %v594 = vpop.f32.mrb[0].mxu0
      %v595 = vadd.f32 %v400, %v594
      %v596 = vpop.f32.mrb[0].mxu0
      %597 = vmatprep.mubr.bf16.mxu0 0
      %598 = vmatmul.mubr.bf16.gmra.mrb[0].mxu0 %v434
      %v599 = vpop.f32.mrb[0].mxu0
      %v600 = vadd.f32 %v400, %v599
      %v601 = vpop.f32.mrb[0].mxu0
      %v602 = vpop.f32.mrb[0].mxu0
      %v603 = vadd.f32 %v400, %v602
      %v604 = vpop.f32.mrb[0].mxu0
      %605 = vmatprep.mubr.bf16.mxu0 0
      %606 = vmatmul.mubr.bf16.gmra.mrb[0].mxu0 %v437
      %v607 = vpop.f32.mrb[0].mxu0
      %v608 = vadd.f32 %v400, %v607
      %v609 = vpop.f32.mrb[0].mxu0
      %v610 = vpop.f32.mrb[0].mxu0
      %v611 = vadd.f32 %v400, %v610
      %v612 = vpop.f32.mrb[0].mxu0
      %613 = vmatprep.mubr.bf16.mxu0 0
      %614 = vmatmul.mubr.bf16.gmra.mrb[0].mxu0 %v440
      %v615 = vpop.f32.mrb[0].mxu0
      %v616 = vadd.f32 %v400, %v615
      %v617 = vpop.f32.mrb[0].mxu0
      %v618 = vpop.f32.mrb[0].mxu0
      %v619 = vadd.f32 %v400, %v618
      %v620 = vpop.f32.mrb[0].mxu0
      %621 = vmatprep.mubr.bf16.mxu0 0
      %622 = vmatmul.mubr.bf16.gmra.mrb[0].mxu0 %v443
      %v623 = vpop.f32.mrb[0].mxu0
      %v624 = vadd.f32 %v400, %v623
      %v625 = vpop.f32.mrb[0].mxu0
      %v626 = vpop.f32.mrb[0].mxu0
      %v627 = vadd.f32 %v400, %v626
      %v628 = vpop.f32.mrb[0].mxu0
      %629 = vmatprep.mubr.bf16.mxu0 0
      %630 = vmatmul.mubr.bf16.gmra.mrb[0].mxu0 %v446
      %v631 = vpop.f32.mrb[0].mxu0
      %v632 = vadd.f32 %v400, %v631
      %v633 = vpop.f32.mrb[0].mxu0
      %v634 = vpop.f32.mrb[0].mxu0
      %v635 = vadd.f32 %v400, %v634
      %v636 = vpop.f32.mrb[0].mxu0
      %637 = vmatprep.mubr.bf16.mxu0 0
      %638 = vmatmul.mubr.bf16.gmra.mrb[0].mxu0 %v449
      %v639 = vpop.f32.mrb[0].mxu0
      %v640 = vadd.f32 %v400, %v639
      %v641 = vpop.f32.mrb[0].mxu0
      %v642 = vpop.f32.mrb[0].mxu0
      %v643 = vadd.f32 %v400, %v642
      %v644 = vpop.f32.mrb[0].mxu0
      %645 = vmatprep.mubr.bf16.mxu0 0
      %646 = vmatmul.mubr.bf16.gmra.mrb[0].mxu0 %v452
      %v647 = vpop.f32.mrb[0].mxu0
      %v648 = vadd.f32 %v400, %v647
      %v649 = vpop.f32.mrb[0].mxu0
      %v650 = vpop.f32.mrb[0].mxu0
      %v651 = vadd.f32 %v400, %v650
      %v652 = vpop.f32.mrb[0].mxu0
      %653 = vmatprep.mubr.bf16.mxu0 0
      %654 = vmatmul.mubr.bf16.gmra.mrb[0].mxu0 %v455
      %v655 = vpop.f32.mrb[0].mxu0
      %v656 = vadd.f32 %v400, %v655
      %v657 = vpop.f32.mrb[0].mxu0
      %v658 = vpop.f32.mrb[0].mxu0
      %v659 = vadd.f32 %v400, %v658
      %v660 = vpop.f32.mrb[0].mxu0
      %661 = vmatprep.mubr.bf16.mxu0 0
      %662 = vmatmul.mubr.bf16.gmra.mrb[0].mxu0 %v458
      %v663 = vpop.f32.mrb[0].mxu0
      %v664 = vadd.f32 %v400, %v663
      %v665 = vpop.f32.mrb[0].mxu0
      %v666 = vpop.f32.mrb[0].mxu0
      %v667 = vadd.f32 %v400, %v666
      %v668 = vpop.f32.mrb[0].mxu0
      %669 = vmatprep.mubr.bf16.mxu0 0
      %670 = vmatmul.mubr.bf16.gmra.mrb[0].mxu0 %v461
      %v671 = vpop.f32.mrb[0].mxu0
      %v672 = vadd.f32 %v400, %v671
      %v673 = vpop.f32.mrb[0].mxu0
      %v674 = vpop.f32.mrb[0].mxu0
      %v675 = vadd.f32 %v400, %v674
      %v676 = vpop.f32.mrb[0].mxu0
      %677 = vmatprep.mubr.bf16.mxu0 0
      %678 = vmatmul.mubr.bf16.gmra.mrb[0].mxu0 %v464
      %v679 = vpop.f32.mrb[0].mxu0
      %v680 = vadd.f32 %v400, %v679
      %v681 = vpop.f32.mrb[0].mxu0
      %v682 = vpop.f32.mrb[0].mxu0
      %v683 = vadd.f32 %v400, %v682
      %v684 = vpop.f32.mrb[0].mxu0
      %685 = vmatprep.mubr.bf16.mxu0 0
      %686 = vmatmul.mubr.bf16.gmra.mrb[0].mxu0 %v467
      %v687 = vpop.f32.mrb[0].mxu0
      %v688 = vadd.f32 %v400, %v687
      %v689 = vpop.f32.mrb[0].mxu0
      %v690 = vpop.f32.mrb[0].mxu0
      %v691 = vadd.f32 %v400, %v690
      %v692 = vpop.f32.mrb[0].mxu0
      %693 = vmatprep.mubr.bf16.mxu0 0
      %694 = vmatmul.mubr.bf16.gmra.mrb[0].mxu0 %v470
      %v695 = vpop.f32.mrb[0].mxu0
      %v696 = vadd.f32 %v400, %v695
      %v697 = vpop.f32.mrb[0].mxu0
      %v698 = vpop.f32.mrb[0].mxu0
      %v699 = vadd.f32 %v400, %v698
      %v700 = vpop.f32.mrb[0].mxu0
      %701 = vmatprep.mubr.bf16.mxu0 0
      %702 = vmatmul.mubr.bf16.gmra.mrb[0].mxu0 %v473
      %v703 = vpop.f32.mrb[0].mxu0
      %v704 = vadd.f32 %v400, %v703
      %v705 = vpop.f32.mrb[0].mxu0
      %v706 = vpop.f32.mrb[0].mxu0
      %v707 = vadd.f32 %v400, %v706
      %v708 = vpop.f32.mrb[0].mxu0
      %709 = vmatprep.mubr.bf16.mxu0 0
      %710 = vmatmul.mubr.bf16.gmra.mrb[0].mxu0 %v476
      %v711 = vpop.f32.mrb[0].mxu0
      %v712 = vadd.f32 %v400, %v711
      %v713 = vpop.f32.mrb[0].mxu0
      %v714 = vpop.f32.mrb[0].mxu0
      %v715 = vadd.f32 %v400, %v714
      %v716 = vpop.f32.mrb[0].mxu0
      %717 = vmatprep.mubr.bf16.mxu0 0
      %718 = vmatmul.mubr.bf16.gmra.mrb[0].mxu0 %v479
      %v719 = vpop.f32.mrb[0].mxu0
      %v720 = vadd.f32 %v400, %v719
      %v721 = vpop.f32.mrb[0].mxu0
      %v722 = vpop.f32.mrb[0].mxu0
      %v723 = vadd.f32 %v400, %v722
      %v724 = vpop.f32.mrb[0].mxu0
      %725 = vdwg.mxu0
      %v726 = vmax.f32 %v520, 0.0
      %v727 = vmax.f32 %v523, 0.0
      %v728 = vmax.f32 %v528, 0.0
      %v729 = vmax.f32 %v531, 0.0
      %v730 = vmax.f32 %v536, 0.0
      %v731 = vmax.f32 %v539, 0.0
      %v732 = vmax.f32 %v544, 0.0
      %v733 = vmax.f32 %v547, 0.0
      %v734 = vmax.f32 %v552, 0.0
      %v735 = vmax.f32 %v555, 0.0
      %v736 = vmax.f32 %v560, 0.0
      %v737 = vmax.f32 %v563, 0.0
      %v738 = vmax.f32 %v568, 0.0
      %v739 = vmax.f32 %v571, 0.0
      %v740 = vmax.f32 %v576, 0.0
      %v741 = vmax.f32 %v579, 0.0
      %v742 = vmax.f32 %v584, 0.0
      %v743 = vmax.f32 %v587, 0.0
      %v744 = vmax.f32 %v592, 0.0
      %v745 = vmax.f32 %v595, 0.0
      %v746 = vmax.f32 %v600, 0.0
      %v747 = vmax.f32 %v603, 0.0
      %v748 = vmax.f32 %v608, 0.0
      %v749 = vmax.f32 %v611, 0.0
      %v750 = vmax.f32 %v616, 0.0
      %v751 = vmax.f32 %v619, 0.0
      %v752 = vmax.f32 %v624, 0.0
      %v753 = vmax.f32 %v627, 0.0
      %v754 = vmax.f32 %v632, 0.0
      %v755 = vmax.f32 %v635, 0.0
      %v756 = vmax.f32 %v640, 0.0
      %v757 = vmax.f32 %v643, 0.0
      %v758 = vmax.f32 %v648, 0.0
      %v759 = vmax.f32 %v651, 0.0
      %v760 = vmax.f32 %v656, 0.0
      %v761 = vmax.f32 %v659, 0.0
      %v762 = vmax.f32 %v664, 0.0
      %v763 = vmax.f32 %v667, 0.0
      %v764 = vmax.f32 %v672, 0.0
      %v765 = vmax.f32 %v675, 0.0
      %v766 = vmax.f32 %v680, 0.0
      %v767 = vmax.f32 %v683, 0.0
      %v768 = vmax.f32 %v688, 0.0
      %v769 = vmax.f32 %v691, 0.0
      %v770 = vmax.f32 %v696, 0.0
      %v771 = vmax.f32 %v699, 0.0
      %v772 = vmax.f32 %v704, 0.0
      %v773 = vmax.f32 %v707, 0.0
      %v774 = vmax.f32 %v712, 0.0
      %v775 = vmax.f32 %v715, 0.0
      %v776 = vmax.f32 %v720, 0.0
      %v777 = vmax.f32 %v723, 0.0
      %p778 = scmp.eq.s32.totalorder %s23, 0
      // Predicated region
      $region49: #{tpu_custom_call.1} parent=47 // pred_check
        %p779 = pneg %p778
      $region50: #{tpu_custom_call.1} parent=47 // pred_check_branch
        %781 = sbr.rel (%p779) target = $region52
      $region51: #{tpu_custom_call.1} parent=47 // pred_region
        %vm782 = vcmask 130048
        %783 = vst.msk [vmem:[#allocation2] sm:$0xff] %vm782, 0.0
        %784 = vst.msk [vmem:[#allocation2 + $0x20] sm:$0xff] %vm782, 0.0
        %785 = vst.msk [vmem:[#allocation2 + $0x40] sm:$0xff] %vm782, 0.0
        %786 = vst.msk [vmem:[#allocation2 + $0x60] sm:$0xff] %vm782, 0.0
        %787 = vst.msk [vmem:[#allocation2 + $0x80] sm:$0xff] %vm782, 0.0
        %788 = vst.msk [vmem:[#allocation2 + $0xa0] sm:$0xff] %vm782, 0.0
        %789 = vst.msk [vmem:[#allocation2 + $0xc0] sm:$0xff] %vm782, 0.0
        %790 = vst.msk [vmem:[#allocation2 + $0xe0] sm:$0xff] %vm782, 0.0
        %791 = vst.msk [vmem:[#allocation2 + $0x100] sm:$0xff] %vm782, 0.0
        %792 = vst.msk [vmem:[#allocation2 + $0x120] sm:$0xff] %vm782, 0.0
        %793 = vst.msk [vmem:[#allocation2 + $0x140] sm:$0xff] %vm782, 0.0
        %794 = vst.msk [vmem:[#allocation2 + $0x160] sm:$0xff] %vm782, 0.0
        %795 = vst.msk [vmem:[#allocation2 + $0x180] sm:$0xff] %vm782, 0.0
        %796 = vst.msk [vmem:[#allocation2 + $0x1a0] sm:$0xff] %vm782, 0.0
        %797 = vst.msk [vmem:[#allocation2 + $0x1c0] sm:$0xff] %vm782, 0.0
        %798 = vst.msk [vmem:[#allocation2 + $0x1e0] sm:$0xff] %vm782, 0.0
        %799 = vst.msk [vmem:[#allocation2 + $0x200] sm:$0xff] %vm782, 0.0
        %800 = vst.msk [vmem:[#allocation2 + $0x220] sm:$0xff] %vm782, 0.0
        %801 = vst.msk [vmem:[#allocation2 + $0x240] sm:$0xff] %vm782, 0.0
        %802 = vst.msk [vmem:[#allocation2 + $0x260] sm:$0xff] %vm782, 0.0
        %803 = vst.msk [vmem:[#allocation2 + $0x280] sm:$0xff] %vm782, 0.0
        %804 = vst.msk [vmem:[#allocation2 + $0x2a0] sm:$0xff] %vm782, 0.0
        %805 = vst.msk [vmem:[#allocation2 + $0x2c0] sm:$0xff] %vm782, 0.0
        %806 = vst.msk [vmem:[#allocation2 + $0x2e0] sm:$0xff] %vm782, 0.0
        %807 = vst.msk [vmem:[#allocation2 + $0x300] sm:$0xff] %vm782, 0.0
        %808 = vst.msk [vmem:[#allocation2 + $0x320] sm:$0xff] %vm782, 0.0
        %809 = vst.msk [vmem:[#allocation2 + $0x18] sm:$0xff] %vm782, 0.0
        %810 = vst.msk [vmem:[#allocation2 + $0x38] sm:$0xff] %vm782, 0.0
        %811 = vst.msk [vmem:[#allocation2 + $0x58] sm:$0xff] %vm782, 0.0
        %812 = vst.msk [vmem:[#allocation2 + $0x78] sm:$0xff] %vm782, 0.0
        %813 = vst.msk [vmem:[#allocation2 + $0x98] sm:$0xff] %vm782, 0.0
        %814 = vst.msk [vmem:[#allocation2 + $0xb8] sm:$0xff] %vm782, 0.0
        %815 = vst.msk [vmem:[#allocation2 + $0xd8] sm:$0xff] %vm782, 0.0
        %816 = vst.msk [vmem:[#allocation2 + $0xf8] sm:$0xff] %vm782, 0.0
        %817 = vst.msk [vmem:[#allocation2 + $0x118] sm:$0xff] %vm782, 0.0
        %818 = vst.msk [vmem:[#allocation2 + $0x138] sm:$0xff] %vm782, 0.0
        %819 = vst.msk [vmem:[#allocation2 + $0x158] sm:$0xff] %vm782, 0.0
        %820 = vst.msk [vmem:[#allocation2 + $0x178] sm:$0xff] %vm782, 0.0
        %821 = vst.msk [vmem:[#allocation2 + $0x198] sm:$0xff] %vm782, 0.0
        %822 = vst.msk [vmem:[#allocation2 + $0x1b8] sm:$0xff] %vm782, 0.0
        %823 = vst.msk [vmem:[#allocation2 + $0x1d8] sm:$0xff] %vm782, 0.0
        %824 = vst.msk [vmem:[#allocation2 + $0x1f8] sm:$0xff] %vm782, 0.0
        %825 = vst.msk [vmem:[#allocation2 + $0x218] sm:$0xff] %vm782, 0.0
        %826 = vst.msk [vmem:[#allocation2 + $0x238] sm:$0xff] %vm782, 0.0
        %827 = vst.msk [vmem:[#allocation2 + $0x258] sm:$0xff] %vm782, 0.0
        %828 = vst.msk [vmem:[#allocation2 + $0x278] sm:$0xff] %vm782, 0.0
        %829 = vst.msk [vmem:[#allocation2 + $0x298] sm:$0xff] %vm782, 0.0
        %830 = vst.msk [vmem:[#allocation2 + $0x2b8] sm:$0xff] %vm782, 0.0
        %831 = vst.msk [vmem:[#allocation2 + $0x2d8] sm:$0xff] %vm782, 0.0
        %832 = vst.msk [vmem:[#allocation2 + $0x2f8] sm:$0xff] %vm782, 0.0
        %833 = vst.msk [vmem:[#allocation2 + $0x318] sm:$0xff] %vm782, 0.0
        %834 = vst.msk [vmem:[#allocation2 + $0x338] sm:$0xff] %vm782, 0.0
      $region52: #{tpu_custom_call.1} parent=47 // pred_fallthru
        _
      %vm835 = vcmask 130048
      %836 = vst.msk [vmem:[#allocation2 + $0x8] sm:$0xff] %vm835, %v726
      %837 = vst.msk [vmem:[#allocation2 + $0x10] sm:$0xff] %vm835, %v727
      %838 = vst.msk [vmem:[#allocation2 + $0x28] sm:$0xff] %vm835, %v728
      %839 = vst.msk [vmem:[#allocation2 + $0x30] sm:$0xff] %vm835, %v729
      %840 = vst.msk [vmem:[#allocation2 + $0x48] sm:$0xff] %vm835, %v730
      %841 = vst.msk [vmem:[#allocation2 + $0x50] sm:$0xff] %vm835, %v731
      %842 = vst.msk [vmem:[#allocation2 + $0x68] sm:$0xff] %vm835, %v732
      %843 = vst.msk [vmem:[#allocation2 + $0x70] sm:$0xff] %vm835, %v733
      %844 = vst.msk [vmem:[#allocation2 + $0x88] sm:$0xff] %vm835, %v734
      %845 = vst.msk [vmem:[#allocation2 + $0x90] sm:$0xff] %vm835, %v735
      %846 = vst.msk [vmem:[#allocation2 + $0xa8] sm:$0xff] %vm835, %v736
      %847 = vst.msk [vmem:[#allocation2 + $0xb0] sm:$0xff] %vm835, %v737
      %848 = vst.msk [vmem:[#allocation2 + $0xc8] sm:$0xff] %vm835, %v738
      %849 = vst.msk [vmem:[#allocation2 + $0xd0] sm:$0xff] %vm835, %v739
      %850 = vst.msk [vmem:[#allocation2 + $0xe8] sm:$0xff] %vm835, %v740
      %851 = vst.msk [vmem:[#allocation2 + $0xf0] sm:$0xff] %vm835, %v741
      %852 = vst.msk [vmem:[#allocation2 + $0x108] sm:$0xff] %vm835, %v742
      %853 = vst.msk [vmem:[#allocation2 + $0x110] sm:$0xff] %vm835, %v743
      %854 = vst.msk [vmem:[#allocation2 + $0x128] sm:$0xff] %vm835, %v744
      %855 = vst.msk [vmem:[#allocation2 + $0x130] sm:$0xff] %vm835, %v745
      %856 = vst.msk [vmem:[#allocation2 + $0x148] sm:$0xff] %vm835, %v746
      %857 = vst.msk [vmem:[#allocation2 + $0x150] sm:$0xff] %vm835, %v747
      %858 = vst.msk [vmem:[#allocation2 + $0x168] sm:$0xff] %vm835, %v748
      %859 = vst.msk [vmem:[#allocation2 + $0x170] sm:$0xff] %vm835, %v749
      %860 = vst.msk [vmem:[#allocation2 + $0x188] sm:$0xff] %vm835, %v750
      %861 = vst.msk [vmem:[#allocation2 + $0x190] sm:$0xff] %vm835, %v751
      %862 = vst.msk [vmem:[#allocation2 + $0x1a8] sm:$0xff] %vm835, %v752
      %863 = vst.msk [vmem:[#allocation2 + $0x1b0] sm:$0xff] %vm835, %v753
      %864 = vst.msk [vmem:[#allocation2 + $0x1c8] sm:$0xff] %vm835, %v754
      %865 = vst.msk [vmem:[#allocation2 + $0x1d0] sm:$0xff] %vm835, %v755
      %866 = vst.msk [vmem:[#allocation2 + $0x1e8] sm:$0xff] %vm835, %v756
      %867 = vst.msk [vmem:[#allocation2 + $0x1f0] sm:$0xff] %vm835, %v757
      %868 = vst.msk [vmem:[#allocation2 + $0x208] sm:$0xff] %vm835, %v758
      %869 = vst.msk [vmem:[#allocation2 + $0x210] sm:$0xff] %vm835, %v759
      %870 = vst.msk [vmem:[#allocation2 + $0x228] sm:$0xff] %vm835, %v760
      %871 = vst.msk [vmem:[#allocation2 + $0x230] sm:$0xff] %vm835, %v761
      %872 = vst.msk [vmem:[#allocation2 + $0x248] sm:$0xff] %vm835, %v762
      %873 = vst.msk [vmem:[#allocation2 + $0x250] sm:$0xff] %vm835, %v763
      %874 = vst.msk [vmem:[#allocation2 + $0x268] sm:$0xff] %vm835, %v764
      %875 = vst.msk [vmem:[#allocation2 + $0x270] sm:$0xff] %vm835, %v765
      %876 = vst.msk [vmem:[#allocation2 + $0x288] sm:$0xff] %vm835, %v766
      %877 = vst.msk [vmem:[#allocation2 + $0x290] sm:$0xff] %vm835, %v767
      %878 = vst.msk [vmem:[#allocation2 + $0x2a8] sm:$0xff] %vm835, %v768
      %879 = vst.msk [vmem:[#allocation2 + $0x2b0] sm:$0xff] %vm835, %v769
      %880 = vst.msk [vmem:[#allocation2 + $0x2c8] sm:$0xff] %vm835, %v770
      %881 = vst.msk [vmem:[#allocation2 + $0x2d0] sm:$0xff] %vm835, %v771
      %882 = vst.msk [vmem:[#allocation2 + $0x2e8] sm:$0xff] %vm835, %v772
      %883 = vst.msk [vmem:[#allocation2 + $0x2f0] sm:$0xff] %vm835, %v773
      %884 = vst.msk [vmem:[#allocation2 + $0x308] sm:$0xff] %vm835, %v774
      %885 = vst.msk [vmem:[#allocation2 + $0x310] sm:$0xff] %vm835, %v775
      %886 = vst.msk [vmem:[#allocation2 + $0x328] sm:$0xff] %vm835, %v776
      %887 = vst.msk [vmem:[#allocation2 + $0x330] sm:$0xff] %vm835, %v777
      // Predicated region
      $region53: #{tpu_custom_call.1} parent=47 // pred_check
        %p888 = pneg %p778
      $region54: #{tpu_custom_call.1} parent=47 // pred_check_branch
        %890 = sbr.rel (%p888) target = $region56
      $region55: #{tpu_custom_call.1} parent=47 // pred_region
        %891 = vst.msk [vmem:[#allocation2] sm:$0xff] %vm835, 0.0
        %892 = vst.msk [vmem:[#allocation2 + $0x8] sm:$0xff] %vm835, 0.0
        %893 = vst.msk [vmem:[#allocation2 + $0x10] sm:$0xff] %vm835, 0.0
        %894 = vst.msk [vmem:[#allocation2 + $0x18] sm:$0xff] %vm835, 0.0
        %895 = vst.msk [vmem:[#allocation2 + $0x20] sm:$0xff] %vm835, 0.0
        %896 = vst.msk [vmem:[#allocation2 + $0x28] sm:$0xff] %vm835, 0.0
        %897 = vst.msk [vmem:[#allocation2 + $0x30] sm:$0xff] %vm835, 0.0
        %898 = vst.msk [vmem:[#allocation2 + $0x38] sm:$0xff] %vm835, 0.0
        %899 = vst.msk [vmem:[#allocation2 + $0x40] sm:$0xff] %vm835, 0.0
        %900 = vst.msk [vmem:[#allocation2 + $0x48] sm:$0xff] %vm835, 0.0
        %901 = vst.msk [vmem:[#allocation2 + $0x50] sm:$0xff] %vm835, 0.0
        %902 = vst.msk [vmem:[#allocation2 + $0x58] sm:$0xff] %vm835, 0.0
        %903 = vst.msk [vmem:[#allocation2 + $0x60] sm:$0xff] %vm835, 0.0
        %904 = vst.msk [vmem:[#allocation2 + $0x68] sm:$0xff] %vm835, 0.0
        %905 = vst.msk [vmem:[#allocation2 + $0x70] sm:$0xff] %vm835, 0.0
        %906 = vst.msk [vmem:[#allocation2 + $0x78] sm:$0xff] %vm835, 0.0
        %907 = vst.msk [vmem:[#allocation2 + $0x80] sm:$0xff] %vm835, 0.0
        %908 = vst.msk [vmem:[#allocation2 + $0x88] sm:$0xff] %vm835, 0.0
        %909 = vst.msk [vmem:[#allocation2 + $0x90] sm:$0xff] %vm835, 0.0
        %910 = vst.msk [vmem:[#allocation2 + $0x98] sm:$0xff] %vm835, 0.0
        %s911 = scalar_lea.vmem [#allocation2], 672
        %912 = vst.msk [vmem:[%s911] sm:$0xff] %vm835, 0.0
        %913 = vst.msk [vmem:[%s911 + $0x8] sm:$0xff] %vm835, 0.0
        %914 = vst.msk [vmem:[%s911 + $0x10] sm:$0xff] %vm835, 0.0
        %915 = vst.msk [vmem:[%s911 + $0x18] sm:$0xff] %vm835, 0.0
        %916 = vst.msk [vmem:[%s911 + $0x20] sm:$0xff] %vm835, 0.0
        %917 = vst.msk [vmem:[%s911 + $0x28] sm:$0xff] %vm835, 0.0
        %918 = vst.msk [vmem:[%s911 + $0x30] sm:$0xff] %vm835, 0.0
        %919 = vst.msk [vmem:[%s911 + $0x38] sm:$0xff] %vm835, 0.0
        %920 = vst.msk [vmem:[%s911 + $0x40] sm:$0xff] %vm835, 0.0
        %921 = vst.msk [vmem:[%s911 + $0x48] sm:$0xff] %vm835, 0.0
        %922 = vst.msk [vmem:[%s911 + $0x50] sm:$0xff] %vm835, 0.0
        %923 = vst.msk [vmem:[%s911 + $0x58] sm:$0xff] %vm835, 0.0
        %924 = vst.msk [vmem:[%s911 + $0x60] sm:$0xff] %vm835, 0.0
        %925 = vst.msk [vmem:[%s911 + $0x68] sm:$0xff] %vm835, 0.0
        %926 = vst.msk [vmem:[%s911 + $0x70] sm:$0xff] %vm835, 0.0
        %927 = vst.msk [vmem:[%s911 + $0x78] sm:$0xff] %vm835, 0.0
        %928 = vst.msk [vmem:[%s911 + $0x80] sm:$0xff] %vm835, 0.0
        %929 = vst.msk [vmem:[%s911 + $0x88] sm:$0xff] %vm835, 0.0
        %930 = vst.msk [vmem:[%s911 + $0x90] sm:$0xff] %vm835, 0.0
        %931 = vst.msk [vmem:[%s911 + $0x98] sm:$0xff] %vm835, 0.0
      $region56: #{tpu_custom_call.1} parent=47 // pred_fallthru
        _
      loop: start=0, step=1, limit=16
      $region57: #{tpu_custom_call.1} parent=47 // loop_pre_header
        _
      $region58: #{tpu_custom_call.1} parent=47 // loop_header
        %s933 = sphi 0, %s937
        %p934 = scmp.ge.s32.totalorder %s933, 16
      $region59: #{tpu_custom_call.1} parent=47 // loop_header_branch
        %936 = sbr.rel (%p934) target = $region63
      $region60: #{tpu_custom_call.1} parent=47 // loop_body
        %s938 = smul.u32 %s933, 32
        %s939 = scalar_lea.vmem [#allocation2], %s938
        %v940 = vld [vmem:[%s939] sm:$0xff]
        %v941 = vld [vmem:[%s939 + $0x8] sm:$0xff]
        %v942 = vld [vmem:[%s939 + $0x10] sm:$0xff]
        %v943 = vld [vmem:[%s939 + $0x18] sm:$0xff]
        %v944 = vld [vmem:[%s3] sm:$0x1]
        %v945 = vlaneseq
        %v946 = vshrl.u32 %v945, 7
        %v947 = vsub.s32 0, %v946
        %v948 = vrot.slane %v944, %v947
        %v949 = vmul.f32 %v940, %v948
        %v950 = vmul.f32 %v941, %v948
        %v951 = vmul.f32 %v942, %v948
        %v952 = vadd.f32 %v949, 0.0
        %v953 = vadd.f32 %v950, 0.0
        %v954 = vadd.f32 %v951, 0.0
        %s955 = sadd.s32 %s933, 1
        %s956 = smul.u32 %s955, 32
        %s957 = scalar_lea.vmem [#allocation2], %s956
        %v958 = vld [vmem:[%s957] sm:$0xff]
        %v959 = vld [vmem:[%s957 + $0x8] sm:$0xff]
        %v960 = vld [vmem:[%s957 + $0x10] sm:$0xff]
        %v961 = vld [vmem:[%s957 + $0x18] sm:$0xff]
        %v962 = vld [vmem:[%s3 + $0xb] sm:$0x1]
        %v963 = vlaneseq
        %v964 = vshrl.u32 %v963, 7
        %v965 = vsub.s32 0, %v964
        %v966 = vrot.slane %v962, %v965
        %v967 = vmul.f32 %v958, %v966
        %v968 = vmul.f32 %v959, %v966
        %v969 = vmul.f32 %v960, %v966
        %v970 = vadd.f32 %v952, %v967
        %v971 = vadd.f32 %v953, %v968
        %v972 = vadd.f32 %v954, %v969
        %s973 = sadd.s32 %s933, 2
        %s974 = smul.u32 %s973, 32
        %s975 = scalar_lea.vmem [#allocation2], %s974
        %v976 = vld [vmem:[%s975] sm:$0xff]
        %v977 = vld [vmem:[%s975 + $0x8] sm:$0xff]
        %v978 = vld [vmem:[%s975 + $0x10] sm:$0xff]
        %v979 = vld [vmem:[%s975 + $0x18] sm:$0xff]
        %v980 = vld [vmem:[%s3 + $0x16] sm:$0x1]
        %v981 = vlaneseq
        %v982 = vshrl.u32 %v981, 7
        %v983 = vsub.s32 0, %v982
        %v984 = vrot.slane %v980, %v983
        %v985 = vmul.f32 %v976, %v984
        %v986 = vmul.f32 %v977, %v984
        %v987 = vmul.f32 %v978, %v984
        %v988 = vadd.f32 %v970, %v985
        %v989 = vadd.f32 %v971, %v986
        %v990 = vadd.f32 %v972, %v987
        %s991 = sadd.s32 %s933, 3
        %s992 = smul.u32 %s991, 32
        %s993 = scalar_lea.vmem [#allocation2], %s992
        %v994 = vld [vmem:[%s993] sm:$0xff]
        %v995 = vld [vmem:[%s993 + $0x8] sm:$0xff]
        %v996 = vld [vmem:[%s993 + $0x10] sm:$0xff]
        %v997 = vld [vmem:[%s993 + $0x18] sm:$0xff]
        %v998 = vld [vmem:[%s3 + $0x21] sm:$0x1]
        %v999 = vlaneseq
        %v1000 = vshrl.u32 %v999, 7
        %v1001 = vsub.s32 0, %v1000
        %v1002 = vrot.slane %v998, %v1001
        %v1003 = vmul.f32 %v994, %v1002
        %v1004 = vmul.f32 %v995, %v1002
        %v1005 = vmul.f32 %v996, %v1002
        %v1006 = vadd.f32 %v988, %v1003
        %v1007 = vadd.f32 %v989, %v1004
        %v1008 = vadd.f32 %v990, %v1005
        %s1009 = sadd.s32 %s933, 4
        %s1010 = smul.u32 %s1009, 32
        %s1011 = scalar_lea.vmem [#allocation2], %s1010
        %v1012 = vld [vmem:[%s1011] sm:$0xff]
        %v1013 = vld [vmem:[%s1011 + $0x8] sm:$0xff]
        %v1014 = vld [vmem:[%s1011 + $0x10] sm:$0xff]
        %v1015 = vld [vmem:[%s1011 + $0x18] sm:$0xff]
        %v1016 = vld [vmem:[%s3 + $0x2c] sm:$0x1]
        %v1017 = vlaneseq
        %v1018 = vshrl.u32 %v1017, 7
        %v1019 = vsub.s32 0, %v1018
        %v1020 = vrot.slane %v1016, %v1019
        %v1021 = vmul.f32 %v1012, %v1020
        %v1022 = vmul.f32 %v1013, %v1020
        %v1023 = vmul.f32 %v1014, %v1020
        %v1024 = vadd.f32 %v1006, %v1021
        %v1025 = vadd.f32 %v1007, %v1022
        %v1026 = vadd.f32 %v1008, %v1023
        %s1027 = sadd.s32 %s933, 5
        %s1028 = smul.u32 %s1027, 32
        %s1029 = scalar_lea.vmem [#allocation2], %s1028
        %v1030 = vld [vmem:[%s1029] sm:$0xff]
        %v1031 = vld [vmem:[%s1029 + $0x8] sm:$0xff]
        %v1032 = vld [vmem:[%s1029 + $0x10] sm:$0xff]
        %v1033 = vld [vmem:[%s1029 + $0x18] sm:$0xff]
        %v1034 = vld [vmem:[%s3 + $0x37] sm:$0x1]
        %v1035 = vlaneseq
        %v1036 = vshrl.u32 %v1035, 7
        %v1037 = vsub.s32 0, %v1036
        %v1038 = vrot.slane %v1034, %v1037
        %v1039 = vmul.f32 %v1030, %v1038
        %v1040 = vmul.f32 %v1031, %v1038
        %v1041 = vmul.f32 %v1032, %v1038
        %v1042 = vadd.f32 %v1024, %v1039
        %v1043 = vadd.f32 %v1025, %v1040
        %v1044 = vadd.f32 %v1026, %v1041
        %s1045 = sadd.s32 %s933, 6
        %s1046 = smul.u32 %s1045, 32
        %s1047 = scalar_lea.vmem [#allocation2], %s1046
        %v1048 = vld [vmem:[%s1047] sm:$0xff]
        %v1049 = vld [vmem:[%s1047 + $0x8] sm:$0xff]
        %v1050 = vld [vmem:[%s1047 + $0x10] sm:$0xff]
        %v1051 = vld [vmem:[%s1047 + $0x18] sm:$0xff]
        %v1052 = vld [vmem:[%s3 + $0x42] sm:$0x1]
        %v1053 = vlaneseq
        %v1054 = vshrl.u32 %v1053, 7
        %v1055 = vsub.s32 0, %v1054
        %v1056 = vrot.slane %v1052, %v1055
        %v1057 = vmul.f32 %v1048, %v1056
        %v1058 = vmul.f32 %v1049, %v1056
        %v1059 = vmul.f32 %v1050, %v1056
        %v1060 = vadd.f32 %v1042, %v1057
        %v1061 = vadd.f32 %v1043, %v1058
        %v1062 = vadd.f32 %v1044, %v1059
        %s1063 = sadd.s32 %s933, 7
        %s1064 = smul.u32 %s1063, 32
        %s1065 = scalar_lea.vmem [#allocation2], %s1064
        %v1066 = vld [vmem:[%s1065] sm:$0xff]
        %v1067 = vld [vmem:[%s1065 + $0x8] sm:$0xff]
        %v1068 = vld [vmem:[%s1065 + $0x10] sm:$0xff]
        %v1069 = vld [vmem:[%s1065 + $0x18] sm:$0xff]
        %v1070 = vld [vmem:[%s3 + $0x4d] sm:$0x1]
        %v1071 = vlaneseq
        %v1072 = vshrl.u32 %v1071, 7
        %v1073 = vsub.s32 0, %v1072
        %v1074 = vrot.slane %v1070, %v1073
        %v1075 = vmul.f32 %v1066, %v1074
        %v1076 = vmul.f32 %v1067, %v1074
        %v1077 = vmul.f32 %v1068, %v1074
        %v1078 = vadd.f32 %v1060, %v1075
        %v1079 = vadd.f32 %v1061, %v1076
        %v1080 = vadd.f32 %v1062, %v1077
        %s1081 = sadd.s32 %s933, 8
        %s1082 = smul.u32 %s1081, 32
        %s1083 = scalar_lea.vmem [#allocation2], %s1082
        %v1084 = vld [vmem:[%s1083] sm:$0xff]
        %v1085 = vld [vmem:[%s1083 + $0x8] sm:$0xff]
        %v1086 = vld [vmem:[%s1083 + $0x10] sm:$0xff]
        %v1087 = vld [vmem:[%s1083 + $0x18] sm:$0xff]
        %v1088 = vld [vmem:[%s3 + $0x58] sm:$0x1]
        %v1089 = vlaneseq
        %v1090 = vshrl.u32 %v1089, 7
        %v1091 = vsub.s32 0, %v1090
        %v1092 = vrot.slane %v1088, %v1091
        %v1093 = vmul.f32 %v1084, %v1092
        %v1094 = vmul.f32 %v1085, %v1092
        %v1095 = vmul.f32 %v1086, %v1092
        %v1096 = vadd.f32 %v1078, %v1093
        %v1097 = vadd.f32 %v1079, %v1094
        %v1098 = vadd.f32 %v1080, %v1095
        %s1099 = sadd.s32 %s933, 9
        %s1100 = smul.u32 %s1099, 32
        %s1101 = scalar_lea.vmem [#allocation2], %s1100
        %v1102 = vld [vmem:[%s1101] sm:$0xff]
        %v1103 = vld [vmem:[%s1101 + $0x8] sm:$0xff]
        %v1104 = vld [vmem:[%s1101 + $0x10] sm:$0xff]
        %v1105 = vld [vmem:[%s1101 + $0x18] sm:$0xff]
        %v1106 = vld [vmem:[%s3 + $0x63] sm:$0x1]
        %v1107 = vlaneseq
        %v1108 = vshrl.u32 %v1107, 7
        %v1109 = vsub.s32 0, %v1108
        %v1110 = vrot.slane %v1106, %v1109
        %v1111 = vmul.f32 %v1102, %v1110
        %v1112 = vmul.f32 %v1103, %v1110
        %v1113 = vmul.f32 %v1104, %v1110
        %v1114 = vadd.f32 %v1096, %v1111
        %v1115 = vadd.f32 %v1097, %v1112
        %v1116 = vadd.f32 %v1098, %v1113
        %s1117 = sadd.s32 %s933, 10
        %s1118 = smul.u32 %s1117, 32
        %s1119 = scalar_lea.vmem [#allocation2], %s1118
        %v1120 = vld [vmem:[%s1119] sm:$0xff]
        %v1121 = vld [vmem:[%s1119 + $0x8] sm:$0xff]
        %v1122 = vld [vmem:[%s1119 + $0x10] sm:$0xff]
        %v1123 = vld [vmem:[%s1119 + $0x18] sm:$0xff]
        %v1124 = vld [vmem:[%s3 + $0x6e] sm:$0x1]
        %v1125 = vlaneseq
        %v1126 = vshrl.u32 %v1125, 7
        %v1127 = vsub.s32 0, %v1126
        %v1128 = vrot.slane %v1124, %v1127
        %v1129 = vmul.f32 %v1120, %v1128
        %v1130 = vmul.f32 %v1121, %v1128
        %v1131 = vmul.f32 %v1122, %v1128
        %v1132 = vadd.f32 %v1114, %v1129
        %v1133 = vadd.f32 %v1115, %v1130
        %v1134 = vadd.f32 %v1116, %v1131
        %v1135 = vrot.slane %v1132, 3
        %v1136 = vrot.slane %v1133, 3
        %v1137 = vrot.slane %v1134, 3
        %v1138 = vlaneseq
        %v1139 = vshrl.u32 %v1138, 7
        %vm1140 = vcmp.lt.s32.totalorder %v1139, 5
        %v1141 = vsel %vm1140, %v1136, %v1137
        %v1142 = vsel %vm1140, %v1135, %v1136
        %v1143 = vadd.f32 %v1142, 0.0
        %v1144 = vadd.f32 %v1141, 0.0
        %v1145 = vld [vmem:[%s3 + $0x1] sm:$0x1]
        %v1146 = vlaneseq
        %v1147 = vshrl.u32 %v1146, 7
        %v1148 = vsub.s32 0, %v1147
        %v1149 = vrot.slane %v1145, %v1148
        %v1150 = vmul.f32 %v940, %v1149
        %v1151 = vmul.f32 %v941, %v1149
        %v1152 = vmul.f32 %v942, %v1149
        %v1153 = vadd.f32 %v1150, 0.0
        %v1154 = vadd.f32 %v1151, 0.0
        %v1155 = vadd.f32 %v1152, 0.0
        %v1156 = vld [vmem:[%s3 + $0xc] sm:$0x1]
        %v1157 = vlaneseq
        %v1158 = vshrl.u32 %v1157, 7
        %v1159 = vsub.s32 0, %v1158
        %v1160 = vrot.slane %v1156, %v1159
        %v1161 = vmul.f32 %v958, %v1160
        %v1162 = vmul.f32 %v959, %v1160
        %v1163 = vmul.f32 %v960, %v1160
        %v1164 = vadd.f32 %v1153, %v1161
        %v1165 = vadd.f32 %v1154, %v1162
        %v1166 = vadd.f32 %v1155, %v1163
        %v1167 = vld [vmem:[%s3 + $0x17] sm:$0x1]
        %v1168 = vlaneseq
        %v1169 = vshrl.u32 %v1168, 7
        %v1170 = vsub.s32 0, %v1169
        %v1171 = vrot.slane %v1167, %v1170
        %v1172 = vmul.f32 %v976, %v1171
        %v1173 = vmul.f32 %v977, %v1171
        %v1174 = vmul.f32 %v978, %v1171
        %v1175 = vadd.f32 %v1164, %v1172
        %v1176 = vadd.f32 %v1165, %v1173
        %v1177 = vadd.f32 %v1166, %v1174
        %v1178 = vld [vmem:[%s3 + $0x22] sm:$0x1]
        %v1179 = vlaneseq
        %v1180 = vshrl.u32 %v1179, 7
        %v1181 = vsub.s32 0, %v1180
        %v1182 = vrot.slane %v1178, %v1181
        %v1183 = vmul.f32 %v994, %v1182
        %v1184 = vmul.f32 %v995, %v1182
        %v1185 = vmul.f32 %v996, %v1182
        %v1186 = vadd.f32 %v1175, %v1183
        %v1187 = vadd.f32 %v1176, %v1184
        %v1188 = vadd.f32 %v1177, %v1185
        %v1189 = vld [vmem:[%s3 + $0x2d] sm:$0x1]
        %v1190 = vlaneseq
        %v1191 = vshrl.u32 %v1190, 7
        %v1192 = vsub.s32 0, %v1191
        %v1193 = vrot.slane %v1189, %v1192
        %v1194 = vmul.f32 %v1012, %v1193
        %v1195 = vmul.f32 %v1013, %v1193
        %v1196 = vmul.f32 %v1014, %v1193
        %v1197 = vadd.f32 %v1186, %v1194
        %v1198 = vadd.f32 %v1187, %v1195
        %v1199 = vadd.f32 %v1188, %v1196
        %v1200 = vld [vmem:[%s3 + $0x38] sm:$0x1]
        %v1201 = vlaneseq
        %v1202 = vshrl.u32 %v1201, 7
        %v1203 = vsub.s32 0, %v1202
        %v1204 = vrot.slane %v1200, %v1203
        %v1205 = vmul.f32 %v1030, %v1204
        %v1206 = vmul.f32 %v1031, %v1204
        %v1207 = vmul.f32 %v1032, %v1204
        %v1208 = vadd.f32 %v1197, %v1205
        %v1209 = vadd.f32 %v1198, %v1206
        %v1210 = vadd.f32 %v1199, %v1207
        %v1211 = vld [vmem:[%s3 + $0x43] sm:$0x1]
        %v1212 = vlaneseq
        %v1213 = vshrl.u32 %v1212, 7
        %v1214 = vsub.s32 0, %v1213
        %v1215 = vrot.slane %v1211, %v1214
        %v1216 = vmul.f32 %v1048, %v1215
        %v1217 = vmul.f32 %v1049, %v1215
        %v1218 = vmul.f32 %v1050, %v1215
        %v1219 = vadd.f32 %v1208, %v1216
        %v1220 = vadd.f32 %v1209, %v1217
        %v1221 = vadd.f32 %v1210, %v1218
        %v1222 = vld [vmem:[%s3 + $0x4e] sm:$0x1]
        %v1223 = vlaneseq
        %v1224 = vshrl.u32 %v1223, 7
        %v1225 = vsub.s32 0, %v1224
        %v1226 = vrot.slane %v1222, %v1225
        %v1227 = vmul.f32 %v1066, %v1226
        %v1228 = vmul.f32 %v1067, %v1226
        %v1229 = vmul.f32 %v1068, %v1226
        %v1230 = vadd.f32 %v1219, %v1227
        %v1231 = vadd.f32 %v1220, %v1228
        %v1232 = vadd.f32 %v1221, %v1229
        %v1233 = vld [vmem:[%s3 + $0x59] sm:$0x1]
        %v1234 = vlaneseq
        %v1235 = vshrl.u32 %v1234, 7
        %v1236 = vsub.s32 0, %v1235
        %v1237 = vrot.slane %v1233, %v1236
        %v1238 = vmul.f32 %v1084, %v1237
        %v1239 = vmul.f32 %v1085, %v1237
        %v1240 = vmul.f32 %v1086, %v1237
        %v1241 = vadd.f32 %v1230, %v1238
        %v1242 = vadd.f32 %v1231, %v1239
        %v1243 = vadd.f32 %v1232, %v1240
        %v1244 = vld [vmem:[%s3 + $0x64] sm:$0x1]
        %v1245 = vlaneseq
        %v1246 = vshrl.u32 %v1245, 7
        %v1247 = vsub.s32 0, %v1246
        %v1248 = vrot.slane %v1244, %v1247
        %v1249 = vmul.f32 %v1102, %v1248
        %v1250 = vmul.f32 %v1103, %v1248
        %v1251 = vmul.f32 %v1104, %v1248
        %v1252 = vadd.f32 %v1241, %v1249
        %v1253 = vadd.f32 %v1242, %v1250
        %v1254 = vadd.f32 %v1243, %v1251
        %v1255 = vld [vmem:[%s3 + $0x6f] sm:$0x1]
        %v1256 = vlaneseq
        %v1257 = vshrl.u32 %v1256, 7
        %v1258 = vsub.s32 0, %v1257
        %v1259 = vrot.slane %v1255, %v1258
        %v1260 = vmul.f32 %v1120, %v1259
        %v1261 = vmul.f32 %v1121, %v1259
        %v1262 = vmul.f32 %v1122, %v1259
        %v1263 = vadd.f32 %v1252, %v1260
        %v1264 = vadd.f32 %v1253, %v1261
        %v1265 = vadd.f32 %v1254, %v1262
        %v1266 = vrot.slane %v1263, 4
        %v1267 = vrot.slane %v1264, 4
        %v1268 = vrot.slane %v1265, 4
        %vm1269 = vcmp.lt.s32.totalorder %v1139, 4
        %v1270 = vsel %vm1269, %v1267, %v1268
        %v1271 = vsel %vm1269, %v1266, %v1267
        %v1272 = vadd.f32 %v1143, %v1271
        %v1273 = vadd.f32 %v1144, %v1270
        %v1274 = vld [vmem:[%s3 + $0x2] sm:$0x1]
        %v1275 = vlaneseq
        %v1276 = vshrl.u32 %v1275, 7
        %v1277 = vsub.s32 0, %v1276
        %v1278 = vrot.slane %v1274, %v1277
        %v1279 = vmul.f32 %v940, %v1278
        %v1280 = vmul.f32 %v941, %v1278
        %v1281 = vmul.f32 %v942, %v1278
        %v1282 = vadd.f32 %v1279, 0.0
        %v1283 = vadd.f32 %v1280, 0.0
        %v1284 = vadd.f32 %v1281, 0.0
        %v1285 = vld [vmem:[%s3 + $0xd] sm:$0x1]
        %v1286 = vlaneseq
        %v1287 = vshrl.u32 %v1286, 7
        %v1288 = vsub.s32 0, %v1287
        %v1289 = vrot.slane %v1285, %v1288
        %v1290 = vmul.f32 %v958, %v1289
        %v1291 = vmul.f32 %v959, %v1289
        %v1292 = vmul.f32 %v960, %v1289
        %v1293 = vadd.f32 %v1282, %v1290
        %v1294 = vadd.f32 %v1283, %v1291
        %v1295 = vadd.f32 %v1284, %v1292
        %v1296 = vld [vmem:[%s3 + $0x18] sm:$0x1]
        %v1297 = vlaneseq
        %v1298 = vshrl.u32 %v1297, 7
        %v1299 = vsub.s32 0, %v1298
        %v1300 = vrot.slane %v1296, %v1299
        %v1301 = vmul.f32 %v976, %v1300
        %v1302 = vmul.f32 %v977, %v1300
        %v1303 = vmul.f32 %v978, %v1300
        %v1304 = vadd.f32 %v1293, %v1301
        %v1305 = vadd.f32 %v1294, %v1302
        %v1306 = vadd.f32 %v1295, %v1303
        %v1307 = vld [vmem:[%s3 + $0x23] sm:$0x1]
        %v1308 = vlaneseq
        %v1309 = vshrl.u32 %v1308, 7
        %v1310 = vsub.s32 0, %v1309
        %v1311 = vrot.slane %v1307, %v1310
        %v1312 = vmul.f32 %v994, %v1311
        %v1313 = vmul.f32 %v995, %v1311
        %v1314 = vmul.f32 %v996, %v1311
        %v1315 = vadd.f32 %v1304, %v1312
        %v1316 = vadd.f32 %v1305, %v1313
        %v1317 = vadd.f32 %v1306, %v1314
        %v1318 = vld [vmem:[%s3 + $0x2e] sm:$0x1]
        %v1319 = vlaneseq
        %v1320 = vshrl.u32 %v1319, 7
        %v1321 = vsub.s32 0, %v1320
        %v1322 = vrot.slane %v1318, %v1321
        %v1323 = vmul.f32 %v1012, %v1322
        %v1324 = vmul.f32 %v1013, %v1322
        %v1325 = vmul.f32 %v1014, %v1322
        %v1326 = vadd.f32 %v1315, %v1323
        %v1327 = vadd.f32 %v1316, %v1324
        %v1328 = vadd.f32 %v1317, %v1325
        %v1329 = vld [vmem:[%s3 + $0x39] sm:$0x1]
        %v1330 = vlaneseq
        %v1331 = vshrl.u32 %v1330, 7
        %v1332 = vsub.s32 0, %v1331
        %v1333 = vrot.slane %v1329, %v1332
        %v1334 = vmul.f32 %v1030, %v1333
        %v1335 = vmul.f32 %v1031, %v1333
        %v1336 = vmul.f32 %v1032, %v1333
        %v1337 = vadd.f32 %v1326, %v1334
        %v1338 = vadd.f32 %v1327, %v1335
        %v1339 = vadd.f32 %v1328, %v1336
        %v1340 = vld [vmem:[%s3 + $0x44] sm:$0x1]
        %v1341 = vlaneseq
        %v1342 = vshrl.u32 %v1341, 7
        %v1343 = vsub.s32 0, %v1342
        %v1344 = vrot.slane %v1340, %v1343
        %v1345 = vmul.f32 %v1048, %v1344
        %v1346 = vmul.f32 %v1049, %v1344
        %v1347 = vmul.f32 %v1050, %v1344
        %v1348 = vadd.f32 %v1337, %v1345
        %v1349 = vadd.f32 %v1338, %v1346
        %v1350 = vadd.f32 %v1339, %v1347
        %v1351 = vld [vmem:[%s3 + $0x4f] sm:$0x1]
        %v1352 = vlaneseq
        %v1353 = vshrl.u32 %v1352, 7
        %v1354 = vsub.s32 0, %v1353
        %v1355 = vrot.slane %v1351, %v1354
        %v1356 = vmul.f32 %v1066, %v1355
        %v1357 = vmul.f32 %v1067, %v1355
        %v1358 = vmul.f32 %v1068, %v1355
        %v1359 = vadd.f32 %v1348, %v1356
        %v1360 = vadd.f32 %v1349, %v1357
        %v1361 = vadd.f32 %v1350, %v1358
        %v1362 = vld [vmem:[%s3 + $0x5a] sm:$0x1]
        %v1363 = vlaneseq
        %v1364 = vshrl.u32 %v1363, 7
        %v1365 = vsub.s32 0, %v1364
        %v1366 = vrot.slane %v1362, %v1365
        %v1367 = vmul.f32 %v1084, %v1366
        %v1368 = vmul.f32 %v1085, %v1366
        %v1369 = vmul.f32 %v1086, %v1366
        %v1370 = vadd.f32 %v1359, %v1367
        %v1371 = vadd.f32 %v1360, %v1368
        %v1372 = vadd.f32 %v1361, %v1369
        %v1373 = vld [vmem:[%s3 + $0x65] sm:$0x1]
        %v1374 = vlaneseq
        %v1375 = vshrl.u32 %v1374, 7
        %v1376 = vsub.s32 0, %v1375
        %v1377 = vrot.slane %v1373, %v1376
        %v1378 = vmul.f32 %v1102, %v1377
        %v1379 = vmul.f32 %v1103, %v1377
        %v1380 = vmul.f32 %v1104, %v1377
        %v1381 = vadd.f32 %v1370, %v1378
        %v1382 = vadd.f32 %v1371, %v1379
        %v1383 = vadd.f32 %v1372, %v1380
        %v1384 = vld [vmem:[%s3 + $0x70] sm:$0x1]
        %v1385 = vlaneseq
        %v1386 = vshrl.u32 %v1385, 7
        %v1387 = vsub.s32 0, %v1386
        %v1388 = vrot.slane %v1384, %v1387
        %v1389 = vmul.f32 %v1120, %v1388
        %v1390 = vmul.f32 %v1121, %v1388
        %v1391 = vmul.f32 %v1122, %v1388
        %v1392 = vadd.f32 %v1381, %v1389
        %v1393 = vadd.f32 %v1382, %v1390
        %v1394 = vadd.f32 %v1383, %v1391
        %v1395 = vrot.slane %v1392, 5
        %v1396 = vrot.slane %v1393, 5
        %v1397 = vrot.slane %v1394, 5
        %vm1398 = vcmp.lt.s32.totalorder %v1139, 3
        %v1399 = vsel %vm1398, %v1396, %v1397
        %v1400 = vsel %vm1398, %v1395, %v1396
        %v1401 = vadd.f32 %v1272, %v1400
        %v1402 = vadd.f32 %v1273, %v1399
        %v1403 = vld [vmem:[%s3 + $0x3] sm:$0x1]
        %v1404 = vlaneseq
        %v1405 = vshrl.u32 %v1404, 7
        %v1406 = vsub.s32 0, %v1405
        %v1407 = vrot.slane %v1403, %v1406
        %v1408 = vmul.f32 %v940, %v1407
        %v1409 = vmul.f32 %v941, %v1407
        %v1410 = vmul.f32 %v942, %v1407
        %v1411 = vadd.f32 %v1408, 0.0
        %v1412 = vadd.f32 %v1409, 0.0
        %v1413 = vadd.f32 %v1410, 0.0
        %v1414 = vld [vmem:[%s3 + $0xe] sm:$0x1]
        %v1415 = vlaneseq
        %v1416 = vshrl.u32 %v1415, 7
        %v1417 = vsub.s32 0, %v1416
        %v1418 = vrot.slane %v1414, %v1417
        %v1419 = vmul.f32 %v958, %v1418
        %v1420 = vmul.f32 %v959, %v1418
        %v1421 = vmul.f32 %v960, %v1418
        %v1422 = vadd.f32 %v1411, %v1419
        %v1423 = vadd.f32 %v1412, %v1420
        %v1424 = vadd.f32 %v1413, %v1421
        %v1425 = vld [vmem:[%s3 + $0x19] sm:$0x1]
        %v1426 = vlaneseq
        %v1427 = vshrl.u32 %v1426, 7
        %v1428 = vsub.s32 0, %v1427
        %v1429 = vrot.slane %v1425, %v1428
        %v1430 = vmul.f32 %v976, %v1429
        %v1431 = vmul.f32 %v977, %v1429
        %v1432 = vmul.f32 %v978, %v1429
        %v1433 = vadd.f32 %v1422, %v1430
        %v1434 = vadd.f32 %v1423, %v1431
        %v1435 = vadd.f32 %v1424, %v1432
        %v1436 = vld [vmem:[%s3 + $0x24] sm:$0x1]
        %v1437 = vlaneseq
        %v1438 = vshrl.u32 %v1437, 7
        %v1439 = vsub.s32 0, %v1438
        %v1440 = vrot.slane %v1436, %v1439
        %v1441 = vmul.f32 %v994, %v1440
        %v1442 = vmul.f32 %v995, %v1440
        %v1443 = vmul.f32 %v996, %v1440
        %v1444 = vadd.f32 %v1433, %v1441
        %v1445 = vadd.f32 %v1434, %v1442
        %v1446 = vadd.f32 %v1435, %v1443
        %v1447 = vld [vmem:[%s3 + $0x2f] sm:$0x1]
        %v1448 = vlaneseq
        %v1449 = vshrl.u32 %v1448, 7
        %v1450 = vsub.s32 0, %v1449
        %v1451 = vrot.slane %v1447, %v1450
        %v1452 = vmul.f32 %v1012, %v1451
        %v1453 = vmul.f32 %v1013, %v1451
        %v1454 = vmul.f32 %v1014, %v1451
        %v1455 = vadd.f32 %v1444, %v1452
        %v1456 = vadd.f32 %v1445, %v1453
        %v1457 = vadd.f32 %v1446, %v1454
        %v1458 = vld [vmem:[%s3 + $0x3a] sm:$0x1]
        %v1459 = vlaneseq
        %v1460 = vshrl.u32 %v1459, 7
        %v1461 = vsub.s32 0, %v1460
        %v1462 = vrot.slane %v1458, %v1461
        %v1463 = vmul.f32 %v1030, %v1462
        %v1464 = vmul.f32 %v1031, %v1462
        %v1465 = vmul.f32 %v1032, %v1462
        %v1466 = vadd.f32 %v1455, %v1463
        %v1467 = vadd.f32 %v1456, %v1464
        %v1468 = vadd.f32 %v1457, %v1465
        %v1469 = vld [vmem:[%s3 + $0x45] sm:$0x1]
        %v1470 = vlaneseq
        %v1471 = vshrl.u32 %v1470, 7
        %v1472 = vsub.s32 0, %v1471
        %v1473 = vrot.slane %v1469, %v1472
        %v1474 = vmul.f32 %v1048, %v1473
        %v1475 = vmul.f32 %v1049, %v1473
        %v1476 = vmul.f32 %v1050, %v1473
        %v1477 = vadd.f32 %v1466, %v1474
        %v1478 = vadd.f32 %v1467, %v1475
        %v1479 = vadd.f32 %v1468, %v1476
        %v1480 = vld [vmem:[%s3 + $0x50] sm:$0x1]
        %v1481 = vlaneseq
        %v1482 = vshrl.u32 %v1481, 7
        %v1483 = vsub.s32 0, %v1482
        %v1484 = vrot.slane %v1480, %v1483
        %v1485 = vmul.f32 %v1066, %v1484
        %v1486 = vmul.f32 %v1067, %v1484
        %v1487 = vmul.f32 %v1068, %v1484
        %v1488 = vadd.f32 %v1477, %v1485
        %v1489 = vadd.f32 %v1478, %v1486
        %v1490 = vadd.f32 %v1479, %v1487
        %v1491 = vld [vmem:[%s3 + $0x5b] sm:$0x1]
        %v1492 = vlaneseq
        %v1493 = vshrl.u32 %v1492, 7
        %v1494 = vsub.s32 0, %v1493
        %v1495 = vrot.slane %v1491, %v1494
        %v1496 = vmul.f32 %v1084, %v1495
        %v1497 = vmul.f32 %v1085, %v1495
        %v1498 = vmul.f32 %v1086, %v1495
        %v1499 = vadd.f32 %v1488, %v1496
        %v1500 = vadd.f32 %v1489, %v1497
        %v1501 = vadd.f32 %v1490, %v1498
        %v1502 = vld [vmem:[%s3 + $0x66] sm:$0x1]
        %v1503 = vlaneseq
        %v1504 = vshrl.u32 %v1503, 7
        %v1505 = vsub.s32 0, %v1504
        %v1506 = vrot.slane %v1502, %v1505
        %v1507 = vmul.f32 %v1102, %v1506
        %v1508 = vmul.f32 %v1103, %v1506
        %v1509 = vmul.f32 %v1104, %v1506
        %v1510 = vadd.f32 %v1499, %v1507
        %v1511 = vadd.f32 %v1500, %v1508
        %v1512 = vadd.f32 %v1501, %v1509
        %v1513 = vld [vmem:[%s3 + $0x71] sm:$0x1]
        %v1514 = vlaneseq
        %v1515 = vshrl.u32 %v1514, 7
        %v1516 = vsub.s32 0, %v1515
        %v1517 = vrot.slane %v1513, %v1516
        %v1518 = vmul.f32 %v1120, %v1517
        %v1519 = vmul.f32 %v1121, %v1517
        %v1520 = vmul.f32 %v1122, %v1517
        %v1521 = vadd.f32 %v1510, %v1518
        %v1522 = vadd.f32 %v1511, %v1519
        %v1523 = vadd.f32 %v1512, %v1520
        %v1524 = vrot.slane %v1521, 6
        %v1525 = vrot.slane %v1522, 6
        %v1526 = vrot.slane %v1523, 6
        %vm1527 = vcmp.lt.s32.totalorder %v1139, 2
        %v1528 = vsel %vm1527, %v1525, %v1526
        %v1529 = vsel %vm1527, %v1524, %v1525
        %v1530 = vadd.f32 %v1401, %v1529
        %v1531 = vadd.f32 %v1402, %v1528
        %v1532 = vld [vmem:[%s3 + $0x4] sm:$0x1]
        %v1533 = vlaneseq
        %v1534 = vshrl.u32 %v1533, 7
        %v1535 = vsub.s32 0, %v1534
        %v1536 = vrot.slane %v1532, %v1535
        %v1537 = vmul.f32 %v940, %v1536
        %v1538 = vmul.f32 %v941, %v1536
        %v1539 = vmul.f32 %v942, %v1536
        %v1540 = vadd.f32 %v1537, 0.0
        %v1541 = vadd.f32 %v1538, 0.0
        %v1542 = vadd.f32 %v1539, 0.0
        %v1543 = vld [vmem:[%s3 + $0xf] sm:$0x1]
        %v1544 = vlaneseq
        %v1545 = vshrl.u32 %v1544, 7
        %v1546 = vsub.s32 0, %v1545
        %v1547 = vrot.slane %v1543, %v1546
        %v1548 = vmul.f32 %v958, %v1547
        %v1549 = vmul.f32 %v959, %v1547
        %v1550 = vmul.f32 %v960, %v1547
        %v1551 = vadd.f32 %v1540, %v1548
        %v1552 = vadd.f32 %v1541, %v1549
        %v1553 = vadd.f32 %v1542, %v1550
        %v1554 = vld [vmem:[%s3 + $0x1a] sm:$0x1]
        %v1555 = vlaneseq
        %v1556 = vshrl.u32 %v1555, 7
        %v1557 = vsub.s32 0, %v1556
        %v1558 = vrot.slane %v1554, %v1557
        %v1559 = vmul.f32 %v976, %v1558
        %v1560 = vmul.f32 %v977, %v1558
        %v1561 = vmul.f32 %v978, %v1558
        %v1562 = vadd.f32 %v1551, %v1559
        %v1563 = vadd.f32 %v1552, %v1560
        %v1564 = vadd.f32 %v1553, %v1561
        %v1565 = vld [vmem:[%s3 + $0x25] sm:$0x1]
        %v1566 = vlaneseq
        %v1567 = vshrl.u32 %v1566, 7
        %v1568 = vsub.s32 0, %v1567
        %v1569 = vrot.slane %v1565, %v1568
        %v1570 = vmul.f32 %v994, %v1569
        %v1571 = vmul.f32 %v995, %v1569
        %v1572 = vmul.f32 %v996, %v1569
        %v1573 = vadd.f32 %v1562, %v1570
        %v1574 = vadd.f32 %v1563, %v1571
        %v1575 = vadd.f32 %v1564, %v1572
        %v1576 = vld [vmem:[%s3 + $0x30] sm:$0x1]
        %v1577 = vlaneseq
        %v1578 = vshrl.u32 %v1577, 7
        %v1579 = vsub.s32 0, %v1578
        %v1580 = vrot.slane %v1576, %v1579
        %v1581 = vmul.f32 %v1012, %v1580
        %v1582 = vmul.f32 %v1013, %v1580
        %v1583 = vmul.f32 %v1014, %v1580
        %v1584 = vadd.f32 %v1573, %v1581
        %v1585 = vadd.f32 %v1574, %v1582
        %v1586 = vadd.f32 %v1575, %v1583
        %v1587 = vld [vmem:[%s3 + $0x3b] sm:$0x1]
        %v1588 = vlaneseq
        %v1589 = vshrl.u32 %v1588, 7
        %v1590 = vsub.s32 0, %v1589
        %v1591 = vrot.slane %v1587, %v1590
        %v1592 = vmul.f32 %v1030, %v1591
        %v1593 = vmul.f32 %v1031, %v1591
        %v1594 = vmul.f32 %v1032, %v1591
        %v1595 = vadd.f32 %v1584, %v1592
        %v1596 = vadd.f32 %v1585, %v1593
        %v1597 = vadd.f32 %v1586, %v1594
        %v1598 = vld [vmem:[%s3 + $0x46] sm:$0x1]
        %v1599 = vlaneseq
        %v1600 = vshrl.u32 %v1599, 7
        %v1601 = vsub.s32 0, %v1600
        %v1602 = vrot.slane %v1598, %v1601
        %v1603 = vmul.f32 %v1048, %v1602
        %v1604 = vmul.f32 %v1049, %v1602
        %v1605 = vmul.f32 %v1050, %v1602
        %v1606 = vadd.f32 %v1595, %v1603
        %v1607 = vadd.f32 %v1596, %v1604
        %v1608 = vadd.f32 %v1597, %v1605
        %v1609 = vld [vmem:[%s3 + $0x51] sm:$0x1]
        %v1610 = vlaneseq
        %v1611 = vshrl.u32 %v1610, 7
        %v1612 = vsub.s32 0, %v1611
        %v1613 = vrot.slane %v1609, %v1612
        %v1614 = vmul.f32 %v1066, %v1613
        %v1615 = vmul.f32 %v1067, %v1613
        %v1616 = vmul.f32 %v1068, %v1613
        %v1617 = vadd.f32 %v1606, %v1614
        %v1618 = vadd.f32 %v1607, %v1615
        %v1619 = vadd.f32 %v1608, %v1616
        %v1620 = vld [vmem:[%s3 + $0x5c] sm:$0x1]
        %v1621 = vlaneseq
        %v1622 = vshrl.u32 %v1621, 7
        %v1623 = vsub.s32 0, %v1622
        %v1624 = vrot.slane %v1620, %v1623
        %v1625 = vmul.f32 %v1084, %v1624
        %v1626 = vmul.f32 %v1085, %v1624
        %v1627 = vmul.f32 %v1086, %v1624
        %v1628 = vadd.f32 %v1617, %v1625
        %v1629 = vadd.f32 %v1618, %v1626
        %v1630 = vadd.f32 %v1619, %v1627
        %v1631 = vld [vmem:[%s3 + $0x67] sm:$0x1]
        %v1632 = vlaneseq
        %v1633 = vshrl.u32 %v1632, 7
        %v1634 = vsub.s32 0, %v1633
        %v1635 = vrot.slane %v1631, %v1634
        %v1636 = vmul.f32 %v1102, %v1635
        %v1637 = vmul.f32 %v1103, %v1635
        %v1638 = vmul.f32 %v1104, %v1635
        %v1639 = vadd.f32 %v1628, %v1636
        %v1640 = vadd.f32 %v1629, %v1637
        %v1641 = vadd.f32 %v1630, %v1638
        %v1642 = vld [vmem:[%s3 + $0x72] sm:$0x1]
        %v1643 = vlaneseq
        %v1644 = vshrl.u32 %v1643, 7
        %v1645 = vsub.s32 0, %v1644
        %v1646 = vrot.slane %v1642, %v1645
        %v1647 = vmul.f32 %v1120, %v1646
        %v1648 = vmul.f32 %v1121, %v1646
        %v1649 = vmul.f32 %v1122, %v1646
        %v1650 = vadd.f32 %v1639, %v1647
        %v1651 = vadd.f32 %v1640, %v1648
        %v1652 = vadd.f32 %v1641, %v1649
        %v1653 = vrot.slane %v1650, 7
        %v1654 = vrot.slane %v1651, 7
        %v1655 = vrot.slane %v1652, 7
        %vm1656 = vcmp.lt.s32.totalorder %v1139, 1
        %v1657 = vsel %vm1656, %v1654, %v1655
        %v1658 = vsel %vm1656, %v1653, %v1654
        %v1659 = vadd.f32 %v1530, %v1658
        %v1660 = vadd.f32 %v1531, %v1657
        %v1661 = vld [vmem:[%s3 + $0x5] sm:$0x1]
        %v1662 = vlaneseq
        %v1663 = vshrl.u32 %v1662, 7
        %v1664 = vsub.s32 0, %v1663
        %v1665 = vrot.slane %v1661, %v1664
        %v1666 = vmul.f32 %v941, %v1665
        %v1667 = vmul.f32 %v942, %v1665
        %v1668 = vadd.f32 %v1666, 0.0
        %v1669 = vadd.f32 %v1667, 0.0
        %v1670 = vld [vmem:[%s3 + $0x10] sm:$0x1]
        %v1671 = vlaneseq
        %v1672 = vshrl.u32 %v1671, 7
        %v1673 = vsub.s32 0, %v1672
        %v1674 = vrot.slane %v1670, %v1673
        %v1675 = vmul.f32 %v959, %v1674
        %v1676 = vmul.f32 %v960, %v1674
        %v1677 = vadd.f32 %v1668, %v1675
        %v1678 = vadd.f32 %v1669, %v1676
        %v1679 = vld [vmem:[%s3 + $0x1b] sm:$0x1]
        %v1680 = vlaneseq
        %v1681 = vshrl.u32 %v1680, 7
        %v1682 = vsub.s32 0, %v1681
        %v1683 = vrot.slane %v1679, %v1682
        %v1684 = vmul.f32 %v977, %v1683
        %v1685 = vmul.f32 %v978, %v1683
        %v1686 = vadd.f32 %v1677, %v1684
        %v1687 = vadd.f32 %v1678, %v1685
        %v1688 = vld [vmem:[%s3 + $0x26] sm:$0x1]
        %v1689 = vlaneseq
        %v1690 = vshrl.u32 %v1689, 7
        %v1691 = vsub.s32 0, %v1690
        %v1692 = vrot.slane %v1688, %v1691
        %v1693 = vmul.f32 %v995, %v1692
        %v1694 = vmul.f32 %v996, %v1692
        %v1695 = vadd.f32 %v1686, %v1693
        %v1696 = vadd.f32 %v1687, %v1694
        %v1697 = vld [vmem:[%s3 + $0x31] sm:$0x1]
        %v1698 = vlaneseq
        %v1699 = vshrl.u32 %v1698, 7
        %v1700 = vsub.s32 0, %v1699
        %v1701 = vrot.slane %v1697, %v1700
        %v1702 = vmul.f32 %v1013, %v1701
        %v1703 = vmul.f32 %v1014, %v1701
        %v1704 = vadd.f32 %v1695, %v1702
        %v1705 = vadd.f32 %v1696, %v1703
        %v1706 = vld [vmem:[%s3 + $0x3c] sm:$0x1]
        %v1707 = vlaneseq
        %v1708 = vshrl.u32 %v1707, 7
        %v1709 = vsub.s32 0, %v1708
        %v1710 = vrot.slane %v1706, %v1709
        %v1711 = vmul.f32 %v1031, %v1710
        %v1712 = vmul.f32 %v1032, %v1710
        %v1713 = vadd.f32 %v1704, %v1711
        %v1714 = vadd.f32 %v1705, %v1712
        %v1715 = vld [vmem:[%s3 + $0x47] sm:$0x1]
        %v1716 = vlaneseq
        %v1717 = vshrl.u32 %v1716, 7
        %v1718 = vsub.s32 0, %v1717
        %v1719 = vrot.slane %v1715, %v1718
        %v1720 = vmul.f32 %v1049, %v1719
        %v1721 = vmul.f32 %v1050, %v1719
        %v1722 = vadd.f32 %v1713, %v1720
        %v1723 = vadd.f32 %v1714, %v1721
        %v1724 = vld [vmem:[%s3 + $0x52] sm:$0x1]
        %v1725 = vlaneseq
        %v1726 = vshrl.u32 %v1725, 7
        %v1727 = vsub.s32 0, %v1726
        %v1728 = vrot.slane %v1724, %v1727
        %v1729 = vmul.f32 %v1067, %v1728
        %v1730 = vmul.f32 %v1068, %v1728
        %v1731 = vadd.f32 %v1722, %v1729
        %v1732 = vadd.f32 %v1723, %v1730
        %v1733 = vld [vmem:[%s3 + $0x5d] sm:$0x1]
        %v1734 = vlaneseq
        %v1735 = vshrl.u32 %v1734, 7
        %v1736 = vsub.s32 0, %v1735
        %v1737 = vrot.slane %v1733, %v1736
        %v1738 = vmul.f32 %v1085, %v1737
        %v1739 = vmul.f32 %v1086, %v1737
        %v1740 = vadd.f32 %v1731, %v1738
        %v1741 = vadd.f32 %v1732, %v1739
        %v1742 = vld [vmem:[%s3 + $0x68] sm:$0x1]
        %v1743 = vlaneseq
        %v1744 = vshrl.u32 %v1743, 7
        %v1745 = vsub.s32 0, %v1744
        %v1746 = vrot.slane %v1742, %v1745
        %v1747 = vmul.f32 %v1103, %v1746
        %v1748 = vmul.f32 %v1104, %v1746
        %v1749 = vadd.f32 %v1740, %v1747
        %v1750 = vadd.f32 %v1741, %v1748
        %v1751 = vld [vmem:[%s3 + $0x73] sm:$0x1]
        %v1752 = vlaneseq
        %v1753 = vshrl.u32 %v1752, 7
        %v1754 = vsub.s32 0, %v1753
        %v1755 = vrot.slane %v1751, %v1754
        %v1756 = vmul.f32 %v1121, %v1755
        %v1757 = vmul.f32 %v1122, %v1755
        %v1758 = vadd.f32 %v1749, %v1756
        %v1759 = vadd.f32 %v1750, %v1757
        %v1760 = vadd.f32 %v1659, %v1758
        %v1761 = vadd.f32 %v1660, %v1759
        %v1762 = vld [vmem:[%s3 + $0x6] sm:$0x1]
        %v1763 = vlaneseq
        %v1764 = vshrl.u32 %v1763, 7
        %v1765 = vsub.s32 0, %v1764
        %v1766 = vrot.slane %v1762, %v1765
        %v1767 = vmul.f32 %v941, %v1766
        %v1768 = vmul.f32 %v942, %v1766
        %v1769 = vmul.f32 %v943, %v1766
        %v1770 = vadd.f32 %v1767, 0.0
        %v1771 = vadd.f32 %v1768, 0.0
        %v1772 = vadd.f32 %v1769, 0.0
        %v1773 = vld [vmem:[%s3 + $0x11] sm:$0x1]
        %v1774 = vlaneseq
        %v1775 = vshrl.u32 %v1774, 7
        %v1776 = vsub.s32 0, %v1775
        %v1777 = vrot.slane %v1773, %v1776
        %v1778 = vmul.f32 %v959, %v1777
        %v1779 = vmul.f32 %v960, %v1777
        %v1780 = vmul.f32 %v961, %v1777
        %v1781 = vadd.f32 %v1770, %v1778
        %v1782 = vadd.f32 %v1771, %v1779
        %v1783 = vadd.f32 %v1772, %v1780
        %v1784 = vld [vmem:[%s3 + $0x1c] sm:$0x1]
        %v1785 = vlaneseq
        %v1786 = vshrl.u32 %v1785, 7
        %v1787 = vsub.s32 0, %v1786
        %v1788 = vrot.slane %v1784, %v1787
        %v1789 = vmul.f32 %v977, %v1788
        %v1790 = vmul.f32 %v978, %v1788
        %v1791 = vmul.f32 %v979, %v1788
        %v1792 = vadd.f32 %v1781, %v1789
        %v1793 = vadd.f32 %v1782, %v1790
        %v1794 = vadd.f32 %v1783, %v1791
        %v1795 = vld [vmem:[%s3 + $0x27] sm:$0x1]
        %v1796 = vlaneseq
        %v1797 = vshrl.u32 %v1796, 7
        %v1798 = vsub.s32 0, %v1797
        %v1799 = vrot.slane %v1795, %v1798
        %v1800 = vmul.f32 %v995, %v1799
        %v1801 = vmul.f32 %v996, %v1799
        %v1802 = vmul.f32 %v997, %v1799
        %v1803 = vadd.f32 %v1792, %v1800
        %v1804 = vadd.f32 %v1793, %v1801
        %v1805 = vadd.f32 %v1794, %v1802
        %v1806 = vld [vmem:[%s3 + $0x32] sm:$0x1]
        %v1807 = vlaneseq
        %v1808 = vshrl.u32 %v1807, 7
        %v1809 = vsub.s32 0, %v1808
        %v1810 = vrot.slane %v1806, %v1809
        %v1811 = vmul.f32 %v1013, %v1810
        %v1812 = vmul.f32 %v1014, %v1810
        %v1813 = vmul.f32 %v1015, %v1810
        %v1814 = vadd.f32 %v1803, %v1811
        %v1815 = vadd.f32 %v1804, %v1812
        %v1816 = vadd.f32 %v1805, %v1813
        %v1817 = vld [vmem:[%s3 + $0x3d] sm:$0x1]
        %v1818 = vlaneseq
        %v1819 = vshrl.u32 %v1818, 7
        %v1820 = vsub.s32 0, %v1819
        %v1821 = vrot.slane %v1817, %v1820
        %v1822 = vmul.f32 %v1031, %v1821
        %v1823 = vmul.f32 %v1032, %v1821
        %v1824 = vmul.f32 %v1033, %v1821
        %v1825 = vadd.f32 %v1814, %v1822
        %v1826 = vadd.f32 %v1815, %v1823
        %v1827 = vadd.f32 %v1816, %v1824
        %v1828 = vld [vmem:[%s3 + $0x48] sm:$0x1]
        %v1829 = vlaneseq
        %v1830 = vshrl.u32 %v1829, 7
        %v1831 = vsub.s32 0, %v1830
        %v1832 = vrot.slane %v1828, %v1831
        %v1833 = vmul.f32 %v1049, %v1832
        %v1834 = vmul.f32 %v1050, %v1832
        %v1835 = vmul.f32 %v1051, %v1832
        %v1836 = vadd.f32 %v1825, %v1833
        %v1837 = vadd.f32 %v1826, %v1834
        %v1838 = vadd.f32 %v1827, %v1835
        %v1839 = vld [vmem:[%s3 + $0x53] sm:$0x1]
        %v1840 = vlaneseq
        %v1841 = vshrl.u32 %v1840, 7
        %v1842 = vsub.s32 0, %v1841
        %v1843 = vrot.slane %v1839, %v1842
        %v1844 = vmul.f32 %v1067, %v1843
        %v1845 = vmul.f32 %v1068, %v1843
        %v1846 = vmul.f32 %v1069, %v1843
        %v1847 = vadd.f32 %v1836, %v1844
        %v1848 = vadd.f32 %v1837, %v1845
        %v1849 = vadd.f32 %v1838, %v1846
        %v1850 = vld [vmem:[%s3 + $0x5e] sm:$0x1]
        %v1851 = vlaneseq
        %v1852 = vshrl.u32 %v1851, 7
        %v1853 = vsub.s32 0, %v1852
        %v1854 = vrot.slane %v1850, %v1853
        %v1855 = vmul.f32 %v1085, %v1854
        %v1856 = vmul.f32 %v1086, %v1854
        %v1857 = vmul.f32 %v1087, %v1854
        %v1858 = vadd.f32 %v1847, %v1855
        %v1859 = vadd.f32 %v1848, %v1856
        %v1860 = vadd.f32 %v1849, %v1857
        %v1861 = vld [vmem:[%s3 + $0x69] sm:$0x1]
        %v1862 = vlaneseq
        %v1863 = vshrl.u32 %v1862, 7
        %v1864 = vsub.s32 0, %v1863
        %v1865 = vrot.slane %v1861, %v1864
        %v1866 = vmul.f32 %v1103, %v1865
        %v1867 = vmul.f32 %v1104, %v1865
        %v1868 = vmul.f32 %v1105, %v1865
        %v1869 = vadd.f32 %v1858, %v1866
        %v1870 = vadd.f32 %v1859, %v1867
        %v1871 = vadd.f32 %v1860, %v1868
        %v1872 = vld [vmem:[%s3 + $0x74] sm:$0x1]
        %v1873 = vlaneseq
        %v1874 = vshrl.u32 %v1873, 7
        %v1875 = vsub.s32 0, %v1874
        %v1876 = vrot.slane %v1872, %v1875
        %v1877 = vmul.f32 %v1121, %v1876
        %v1878 = vmul.f32 %v1122, %v1876
        %v1879 = vmul.f32 %v1123, %v1876
        %v1880 = vadd.f32 %v1869, %v1877
        %v1881 = vadd.f32 %v1870, %v1878
        %v1882 = vadd.f32 %v1871, %v1879
        %v1883 = vrot.slane %v1880, 1
        %v1884 = vrot.slane %v1881, 1
        %v1885 = vrot.slane %v1882, 1
        %vm1886 = vcmp.lt.s32.totalorder %v1139, 7
        %v1887 = vsel %vm1886, %v1884, %v1885
        %v1888 = vsel %vm1886, %v1883, %v1884
        %v1889 = vadd.f32 %v1760, %v1888
        %v1890 = vadd.f32 %v1761, %v1887
        %v1891 = vld [vmem:[%s3 + $0x7] sm:$0x1]
        %v1892 = vlaneseq
        %v1893 = vshrl.u32 %v1892, 7
        %v1894 = vsub.s32 0, %v1893
        %v1895 = vrot.slane %v1891, %v1894
        %v1896 = vmul.f32 %v941, %v1895
        %v1897 = vmul.f32 %v942, %v1895
        %v1898 = vmul.f32 %v943, %v1895
        %v1899 = vadd.f32 %v1896, 0.0
        %v1900 = vadd.f32 %v1897, 0.0
        %v1901 = vadd.f32 %v1898, 0.0
        %v1902 = vld [vmem:[%s3 + $0x12] sm:$0x1]
        %v1903 = vlaneseq
        %v1904 = vshrl.u32 %v1903, 7
        %v1905 = vsub.s32 0, %v1904
        %v1906 = vrot.slane %v1902, %v1905
        %v1907 = vmul.f32 %v959, %v1906
        %v1908 = vmul.f32 %v960, %v1906
        %v1909 = vmul.f32 %v961, %v1906
        %v1910 = vadd.f32 %v1899, %v1907
        %v1911 = vadd.f32 %v1900, %v1908
        %v1912 = vadd.f32 %v1901, %v1909
        %v1913 = vld [vmem:[%s3 + $0x1d] sm:$0x1]
        %v1914 = vlaneseq
        %v1915 = vshrl.u32 %v1914, 7
        %v1916 = vsub.s32 0, %v1915
        %v1917 = vrot.slane %v1913, %v1916
        %v1918 = vmul.f32 %v977, %v1917
        %v1919 = vmul.f32 %v978, %v1917
        %v1920 = vmul.f32 %v979, %v1917
        %v1921 = vadd.f32 %v1910, %v1918
        %v1922 = vadd.f32 %v1911, %v1919
        %v1923 = vadd.f32 %v1912, %v1920
        %v1924 = vld [vmem:[%s3 + $0x28] sm:$0x1]
        %v1925 = vlaneseq
        %v1926 = vshrl.u32 %v1925, 7
        %v1927 = vsub.s32 0, %v1926
        %v1928 = vrot.slane %v1924, %v1927
        %v1929 = vmul.f32 %v995, %v1928
        %v1930 = vmul.f32 %v996, %v1928
        %v1931 = vmul.f32 %v997, %v1928
        %v1932 = vadd.f32 %v1921, %v1929
        %v1933 = vadd.f32 %v1922, %v1930
        %v1934 = vadd.f32 %v1923, %v1931
        %v1935 = vld [vmem:[%s3 + $0x33] sm:$0x1]
        %v1936 = vlaneseq
        %v1937 = vshrl.u32 %v1936, 7
        %v1938 = vsub.s32 0, %v1937
        %v1939 = vrot.slane %v1935, %v1938
        %v1940 = vmul.f32 %v1013, %v1939
        %v1941 = vmul.f32 %v1014, %v1939
        %v1942 = vmul.f32 %v1015, %v1939
        %v1943 = vadd.f32 %v1932, %v1940
        %v1944 = vadd.f32 %v1933, %v1941
        %v1945 = vadd.f32 %v1934, %v1942
        %v1946 = vld [vmem:[%s3 + $0x3e] sm:$0x1]
        %v1947 = vlaneseq
        %v1948 = vshrl.u32 %v1947, 7
        %v1949 = vsub.s32 0, %v1948
        %v1950 = vrot.slane %v1946, %v1949
        %v1951 = vmul.f32 %v1031, %v1950
        %v1952 = vmul.f32 %v1032, %v1950
        %v1953 = vmul.f32 %v1033, %v1950
        %v1954 = vadd.f32 %v1943, %v1951
        %v1955 = vadd.f32 %v1944, %v1952
        %v1956 = vadd.f32 %v1945, %v1953
        %v1957 = vld [vmem:[%s3 + $0x49] sm:$0x1]
        %v1958 = vlaneseq
        %v1959 = vshrl.u32 %v1958, 7
        %v1960 = vsub.s32 0, %v1959
        %v1961 = vrot.slane %v1957, %v1960
        %v1962 = vmul.f32 %v1049, %v1961
        %v1963 = vmul.f32 %v1050, %v1961
        %v1964 = vmul.f32 %v1051, %v1961
        %v1965 = vadd.f32 %v1954, %v1962
        %v1966 = vadd.f32 %v1955, %v1963
        %v1967 = vadd.f32 %v1956, %v1964
        %v1968 = vld [vmem:[%s3 + $0x54] sm:$0x1]
        %v1969 = vlaneseq
        %v1970 = vshrl.u32 %v1969, 7
        %v1971 = vsub.s32 0, %v1970
        %v1972 = vrot.slane %v1968, %v1971
        %v1973 = vmul.f32 %v1067, %v1972
        %v1974 = vmul.f32 %v1068, %v1972
        %v1975 = vmul.f32 %v1069, %v1972
        %v1976 = vadd.f32 %v1965, %v1973
        %v1977 = vadd.f32 %v1966, %v1974
        %v1978 = vadd.f32 %v1967, %v1975
        %v1979 = vld [vmem:[%s3 + $0x5f] sm:$0x1]
        %v1980 = vlaneseq
        %v1981 = vshrl.u32 %v1980, 7
        %v1982 = vsub.s32 0, %v1981
        %v1983 = vrot.slane %v1979, %v1982
        %v1984 = vmul.f32 %v1085, %v1983
        %v1985 = vmul.f32 %v1086, %v1983
        %v1986 = vmul.f32 %v1087, %v1983
        %v1987 = vadd.f32 %v1976, %v1984
        %v1988 = vadd.f32 %v1977, %v1985
        %v1989 = vadd.f32 %v1978, %v1986
        %v1990 = vld [vmem:[%s3 + $0x6a] sm:$0x1]
        %v1991 = vlaneseq
        %v1992 = vshrl.u32 %v1991, 7
        %v1993 = vsub.s32 0, %v1992
        %v1994 = vrot.slane %v1990, %v1993
        %v1995 = vmul.f32 %v1103, %v1994
        %v1996 = vmul.f32 %v1104, %v1994
        %v1997 = vmul.f32 %v1105, %v1994
        %v1998 = vadd.f32 %v1987, %v1995
        %v1999 = vadd.f32 %v1988, %v1996
        %v2000 = vadd.f32 %v1989, %v1997
        %v2001 = vld [vmem:[%s3 + $0x75] sm:$0x1]
        %v2002 = vlaneseq
        %v2003 = vshrl.u32 %v2002, 7
        %v2004 = vsub.s32 0, %v2003
        %v2005 = vrot.slane %v2001, %v2004
        %v2006 = vmul.f32 %v1121, %v2005
        %v2007 = vmul.f32 %v1122, %v2005
        %v2008 = vmul.f32 %v1123, %v2005
        %v2009 = vadd.f32 %v1998, %v2006
        %v2010 = vadd.f32 %v1999, %v2007
        %v2011 = vadd.f32 %v2000, %v2008
        %v2012 = vrot.slane %v2009, 2
        %v2013 = vrot.slane %v2010, 2
        %v2014 = vrot.slane %v2011, 2
        %vm2015 = vcmp.lt.s32.totalorder %v1139, 6
        %v2016 = vsel %vm2015, %v2013, %v2014
        %v2017 = vsel %vm2015, %v2012, %v2013
        %v2018 = vadd.f32 %v1889, %v2017
        %v2019 = vadd.f32 %v1890, %v2016
        %v2020 = vld [vmem:[%s3 + $0x8] sm:$0x1]
        %v2021 = vlaneseq
        %v2022 = vshrl.u32 %v2021, 7
        %v2023 = vsub.s32 0, %v2022
        %v2024 = vrot.slane %v2020, %v2023
        %v2025 = vmul.f32 %v941, %v2024
        %v2026 = vmul.f32 %v942, %v2024
        %v2027 = vmul.f32 %v943, %v2024
        %v2028 = vadd.f32 %v2025, 0.0
        %v2029 = vadd.f32 %v2026, 0.0
        %v2030 = vadd.f32 %v2027, 0.0
        %v2031 = vld [vmem:[%s3 + $0x13] sm:$0x1]
        %v2032 = vlaneseq
        %v2033 = vshrl.u32 %v2032, 7
        %v2034 = vsub.s32 0, %v2033
        %v2035 = vrot.slane %v2031, %v2034
        %v2036 = vmul.f32 %v959, %v2035
        %v2037 = vmul.f32 %v960, %v2035
        %v2038 = vmul.f32 %v961, %v2035
        %v2039 = vadd.f32 %v2028, %v2036
        %v2040 = vadd.f32 %v2029, %v2037
        %v2041 = vadd.f32 %v2030, %v2038
        %v2042 = vld [vmem:[%s3 + $0x1e] sm:$0x1]
        %v2043 = vlaneseq
        %v2044 = vshrl.u32 %v2043, 7
        %v2045 = vsub.s32 0, %v2044
        %v2046 = vrot.slane %v2042, %v2045
        %v2047 = vmul.f32 %v977, %v2046
        %v2048 = vmul.f32 %v978, %v2046
        %v2049 = vmul.f32 %v979, %v2046
        %v2050 = vadd.f32 %v2039, %v2047
        %v2051 = vadd.f32 %v2040, %v2048
        %v2052 = vadd.f32 %v2041, %v2049
        %v2053 = vld [vmem:[%s3 + $0x29] sm:$0x1]
        %v2054 = vlaneseq
        %v2055 = vshrl.u32 %v2054, 7
        %v2056 = vsub.s32 0, %v2055
        %v2057 = vrot.slane %v2053, %v2056
        %v2058 = vmul.f32 %v995, %v2057
        %v2059 = vmul.f32 %v996, %v2057
        %v2060 = vmul.f32 %v997, %v2057
        %v2061 = vadd.f32 %v2050, %v2058
        %v2062 = vadd.f32 %v2051, %v2059
        %v2063 = vadd.f32 %v2052, %v2060
        %v2064 = vld [vmem:[%s3 + $0x34] sm:$0x1]
        %v2065 = vlaneseq
        %v2066 = vshrl.u32 %v2065, 7
        %v2067 = vsub.s32 0, %v2066
        %v2068 = vrot.slane %v2064, %v2067
        %v2069 = vmul.f32 %v1013, %v2068
        %v2070 = vmul.f32 %v1014, %v2068
        %v2071 = vmul.f32 %v1015, %v2068
        %v2072 = vadd.f32 %v2061, %v2069
        %v2073 = vadd.f32 %v2062, %v2070
        %v2074 = vadd.f32 %v2063, %v2071
        %v2075 = vld [vmem:[%s3 + $0x3f] sm:$0x1]
        %v2076 = vlaneseq
        %v2077 = vshrl.u32 %v2076, 7
        %v2078 = vsub.s32 0, %v2077
        %v2079 = vrot.slane %v2075, %v2078
        %v2080 = vmul.f32 %v1031, %v2079
        %v2081 = vmul.f32 %v1032, %v2079
        %v2082 = vmul.f32 %v1033, %v2079
        %v2083 = vadd.f32 %v2072, %v2080
        %v2084 = vadd.f32 %v2073, %v2081
        %v2085 = vadd.f32 %v2074, %v2082
        %v2086 = vld [vmem:[%s3 + $0x4a] sm:$0x1]
        %v2087 = vlaneseq
        %v2088 = vshrl.u32 %v2087, 7
        %v2089 = vsub.s32 0, %v2088
        %v2090 = vrot.slane %v2086, %v2089
        %v2091 = vmul.f32 %v1049, %v2090
        %v2092 = vmul.f32 %v1050, %v2090
        %v2093 = vmul.f32 %v1051, %v2090
        %v2094 = vadd.f32 %v2083, %v2091
        %v2095 = vadd.f32 %v2084, %v2092
        %v2096 = vadd.f32 %v2085, %v2093
        %v2097 = vld [vmem:[%s3 + $0x55] sm:$0x1]
        %v2098 = vlaneseq
        %v2099 = vshrl.u32 %v2098, 7
        %v2100 = vsub.s32 0, %v2099
        %v2101 = vrot.slane %v2097, %v2100
        %v2102 = vmul.f32 %v1067, %v2101
        %v2103 = vmul.f32 %v1068, %v2101
        %v2104 = vmul.f32 %v1069, %v2101
        %v2105 = vadd.f32 %v2094, %v2102
        %v2106 = vadd.f32 %v2095, %v2103
        %v2107 = vadd.f32 %v2096, %v2104
        %v2108 = vld [vmem:[%s3 + $0x60] sm:$0x1]
        %v2109 = vlaneseq
        %v2110 = vshrl.u32 %v2109, 7
        %v2111 = vsub.s32 0, %v2110
        %v2112 = vrot.slane %v2108, %v2111
        %v2113 = vmul.f32 %v1085, %v2112
        %v2114 = vmul.f32 %v1086, %v2112
        %v2115 = vmul.f32 %v1087, %v2112
        %v2116 = vadd.f32 %v2105, %v2113
        %v2117 = vadd.f32 %v2106, %v2114
        %v2118 = vadd.f32 %v2107, %v2115
        %v2119 = vld [vmem:[%s3 + $0x6b] sm:$0x1]
        %v2120 = vlaneseq
        %v2121 = vshrl.u32 %v2120, 7
        %v2122 = vsub.s32 0, %v2121
        %v2123 = vrot.slane %v2119, %v2122
        %v2124 = vmul.f32 %v1103, %v2123
        %v2125 = vmul.f32 %v1104, %v2123
        %v2126 = vmul.f32 %v1105, %v2123
        %v2127 = vadd.f32 %v2116, %v2124
        %v2128 = vadd.f32 %v2117, %v2125
        %v2129 = vadd.f32 %v2118, %v2126
        %v2130 = vld [vmem:[%s3 + $0x76] sm:$0x1]
        %v2131 = vlaneseq
        %v2132 = vshrl.u32 %v2131, 7
        %v2133 = vsub.s32 0, %v2132
        %v2134 = vrot.slane %v2130, %v2133
        %v2135 = vmul.f32 %v1121, %v2134
        %v2136 = vmul.f32 %v1122, %v2134
        %v2137 = vmul.f32 %v1123, %v2134
        %v2138 = vadd.f32 %v2127, %v2135
        %v2139 = vadd.f32 %v2128, %v2136
        %v2140 = vadd.f32 %v2129, %v2137
        %v2141 = vrot.slane %v2138, 3
        %v2142 = vrot.slane %v2139, 3
        %v2143 = vrot.slane %v2140, 3
        %v2144 = vsel %vm1140, %v2142, %v2143
        %v2145 = vsel %vm1140, %v2141, %v2142
        %v2146 = vadd.f32 %v2018, %v2145
        %v2147 = vadd.f32 %v2019, %v2144
        %v2148 = vld [vmem:[%s3 + $0x9] sm:$0x1]
        %v2149 = vlaneseq
        %v2150 = vshrl.u32 %v2149, 7
        %v2151 = vsub.s32 0, %v2150
        %v2152 = vrot.slane %v2148, %v2151
        %v2153 = vmul.f32 %v941, %v2152
        %v2154 = vmul.f32 %v942, %v2152
        %v2155 = vmul.f32 %v943, %v2152
        %v2156 = vadd.f32 %v2153, 0.0
        %v2157 = vadd.f32 %v2154, 0.0
        %v2158 = vadd.f32 %v2155, 0.0
        %v2159 = vld [vmem:[%s3 + $0x14] sm:$0x1]
        %v2160 = vlaneseq
        %v2161 = vshrl.u32 %v2160, 7
        %v2162 = vsub.s32 0, %v2161
        %v2163 = vrot.slane %v2159, %v2162
        %v2164 = vmul.f32 %v959, %v2163
        %v2165 = vmul.f32 %v960, %v2163
        %v2166 = vmul.f32 %v961, %v2163
        %v2167 = vadd.f32 %v2156, %v2164
        %v2168 = vadd.f32 %v2157, %v2165
        %v2169 = vadd.f32 %v2158, %v2166
        %v2170 = vld [vmem:[%s3 + $0x1f] sm:$0x1]
        %v2171 = vlaneseq
        %v2172 = vshrl.u32 %v2171, 7
        %v2173 = vsub.s32 0, %v2172
        %v2174 = vrot.slane %v2170, %v2173
        %v2175 = vmul.f32 %v977, %v2174
        %v2176 = vmul.f32 %v978, %v2174
        %v2177 = vmul.f32 %v979, %v2174
        %v2178 = vadd.f32 %v2167, %v2175
        %v2179 = vadd.f32 %v2168, %v2176
        %v2180 = vadd.f32 %v2169, %v2177
        %v2181 = vld [vmem:[%s3 + $0x2a] sm:$0x1]
        %v2182 = vlaneseq
        %v2183 = vshrl.u32 %v2182, 7
        %v2184 = vsub.s32 0, %v2183
        %v2185 = vrot.slane %v2181, %v2184
        %v2186 = vmul.f32 %v995, %v2185
        %v2187 = vmul.f32 %v996, %v2185
        %v2188 = vmul.f32 %v997, %v2185
        %v2189 = vadd.f32 %v2178, %v2186
        %v2190 = vadd.f32 %v2179, %v2187
        %v2191 = vadd.f32 %v2180, %v2188
        %v2192 = vld [vmem:[%s3 + $0x35] sm:$0x1]
        %v2193 = vlaneseq
        %v2194 = vshrl.u32 %v2193, 7
        %v2195 = vsub.s32 0, %v2194
        %v2196 = vrot.slane %v2192, %v2195
        %v2197 = vmul.f32 %v1013, %v2196
        %v2198 = vmul.f32 %v1014, %v2196
        %v2199 = vmul.f32 %v1015, %v2196
        %v2200 = vadd.f32 %v2189, %v2197
        %v2201 = vadd.f32 %v2190, %v2198
        %v2202 = vadd.f32 %v2191, %v2199
        %v2203 = vld [vmem:[%s3 + $0x40] sm:$0x1]
        %v2204 = vlaneseq
        %v2205 = vshrl.u32 %v2204, 7
        %v2206 = vsub.s32 0, %v2205
        %v2207 = vrot.slane %v2203, %v2206
        %v2208 = vmul.f32 %v1031, %v2207
        %v2209 = vmul.f32 %v1032, %v2207
        %v2210 = vmul.f32 %v1033, %v2207
        %v2211 = vadd.f32 %v2200, %v2208
        %v2212 = vadd.f32 %v2201, %v2209
        %v2213 = vadd.f32 %v2202, %v2210
        %v2214 = vld [vmem:[%s3 + $0x4b] sm:$0x1]
        %v2215 = vlaneseq
        %v2216 = vshrl.u32 %v2215, 7
        %v2217 = vsub.s32 0, %v2216
        %v2218 = vrot.slane %v2214, %v2217
        %v2219 = vmul.f32 %v1049, %v2218
        %v2220 = vmul.f32 %v1050, %v2218
        %v2221 = vmul.f32 %v1051, %v2218
        %v2222 = vadd.f32 %v2211, %v2219
        %v2223 = vadd.f32 %v2212, %v2220
        %v2224 = vadd.f32 %v2213, %v2221
        %v2225 = vld [vmem:[%s3 + $0x56] sm:$0x1]
        %v2226 = vlaneseq
        %v2227 = vshrl.u32 %v2226, 7
        %v2228 = vsub.s32 0, %v2227
        %v2229 = vrot.slane %v2225, %v2228
        %v2230 = vmul.f32 %v1067, %v2229
        %v2231 = vmul.f32 %v1068, %v2229
        %v2232 = vmul.f32 %v1069, %v2229
        %v2233 = vadd.f32 %v2222, %v2230
        %v2234 = vadd.f32 %v2223, %v2231
        %v2235 = vadd.f32 %v2224, %v2232
        %v2236 = vld [vmem:[%s3 + $0x61] sm:$0x1]
        %v2237 = vlaneseq
        %v2238 = vshrl.u32 %v2237, 7
        %v2239 = vsub.s32 0, %v2238
        %v2240 = vrot.slane %v2236, %v2239
        %v2241 = vmul.f32 %v1085, %v2240
        %v2242 = vmul.f32 %v1086, %v2240
        %v2243 = vmul.f32 %v1087, %v2240
        %v2244 = vadd.f32 %v2233, %v2241
        %v2245 = vadd.f32 %v2234, %v2242
        %v2246 = vadd.f32 %v2235, %v2243
        %v2247 = vld [vmem:[%s3 + $0x6c] sm:$0x1]
        %v2248 = vlaneseq
        %v2249 = vshrl.u32 %v2248, 7
        %v2250 = vsub.s32 0, %v2249
        %v2251 = vrot.slane %v2247, %v2250
        %v2252 = vmul.f32 %v1103, %v2251
        %v2253 = vmul.f32 %v1104, %v2251
        %v2254 = vmul.f32 %v1105, %v2251
        %v2255 = vadd.f32 %v2244, %v2252
        %v2256 = vadd.f32 %v2245, %v2253
        %v2257 = vadd.f32 %v2246, %v2254
        %v2258 = vld [vmem:[%s3 + $0x77] sm:$0x1]
        %v2259 = vlaneseq
        %v2260 = vshrl.u32 %v2259, 7
        %v2261 = vsub.s32 0, %v2260
        %v2262 = vrot.slane %v2258, %v2261
        %v2263 = vmul.f32 %v1121, %v2262
        %v2264 = vmul.f32 %v1122, %v2262
        %v2265 = vmul.f32 %v1123, %v2262
        %v2266 = vadd.f32 %v2255, %v2263
        %v2267 = vadd.f32 %v2256, %v2264
        %v2268 = vadd.f32 %v2257, %v2265
        %v2269 = vrot.slane %v2266, 4
        %v2270 = vrot.slane %v2267, 4
        %v2271 = vrot.slane %v2268, 4
        %v2272 = vsel %vm1269, %v2270, %v2271
        %v2273 = vsel %vm1269, %v2269, %v2270
        %v2274 = vadd.f32 %v2146, %v2273
        %v2275 = vadd.f32 %v2147, %v2272
        %v2276 = vld [vmem:[%s3 + $0xa] sm:$0x1]
        %v2277 = vlaneseq
        %v2278 = vshrl.u32 %v2277, 7
        %v2279 = vsub.s32 0, %v2278
        %v2280 = vrot.slane %v2276, %v2279
        %v2281 = vmul.f32 %v941, %v2280
        %v2282 = vmul.f32 %v942, %v2280
        %v2283 = vmul.f32 %v943, %v2280
        %v2284 = vadd.f32 %v2281, 0.0
        %v2285 = vadd.f32 %v2282, 0.0
        %v2286 = vadd.f32 %v2283, 0.0
        %v2287 = vld [vmem:[%s3 + $0x15] sm:$0x1]
        %v2288 = vlaneseq
        %v2289 = vshrl.u32 %v2288, 7
        %v2290 = vsub.s32 0, %v2289
        %v2291 = vrot.slane %v2287, %v2290
        %v2292 = vmul.f32 %v959, %v2291
        %v2293 = vmul.f32 %v960, %v2291
        %v2294 = vmul.f32 %v961, %v2291
        %v2295 = vadd.f32 %v2284, %v2292
        %v2296 = vadd.f32 %v2285, %v2293
        %v2297 = vadd.f32 %v2286, %v2294
        %v2298 = vld [vmem:[%s3 + $0x20] sm:$0x1]
        %v2299 = vlaneseq
        %v2300 = vshrl.u32 %v2299, 7
        %v2301 = vsub.s32 0, %v2300
        %v2302 = vrot.slane %v2298, %v2301
        %v2303 = vmul.f32 %v977, %v2302
        %v2304 = vmul.f32 %v978, %v2302
        %v2305 = vmul.f32 %v979, %v2302
        %v2306 = vadd.f32 %v2295, %v2303
        %v2307 = vadd.f32 %v2296, %v2304
        %v2308 = vadd.f32 %v2297, %v2305
        %v2309 = vld [vmem:[%s3 + $0x2b] sm:$0x1]
        %v2310 = vlaneseq
        %v2311 = vshrl.u32 %v2310, 7
        %v2312 = vsub.s32 0, %v2311
        %v2313 = vrot.slane %v2309, %v2312
        %v2314 = vmul.f32 %v995, %v2313
        %v2315 = vmul.f32 %v996, %v2313
        %v2316 = vmul.f32 %v997, %v2313
        %v2317 = vadd.f32 %v2306, %v2314
        %v2318 = vadd.f32 %v2307, %v2315
        %v2319 = vadd.f32 %v2308, %v2316
        %v2320 = vld [vmem:[%s3 + $0x36] sm:$0x1]
        %v2321 = vlaneseq
        %v2322 = vshrl.u32 %v2321, 7
        %v2323 = vsub.s32 0, %v2322
        %v2324 = vrot.slane %v2320, %v2323
        %v2325 = vmul.f32 %v1013, %v2324
        %v2326 = vmul.f32 %v1014, %v2324
        %v2327 = vmul.f32 %v1015, %v2324
        %v2328 = vadd.f32 %v2317, %v2325
        %v2329 = vadd.f32 %v2318, %v2326
        %v2330 = vadd.f32 %v2319, %v2327
        %v2331 = vld [vmem:[%s3 + $0x41] sm:$0x1]
        %v2332 = vlaneseq
        %v2333 = vshrl.u32 %v2332, 7
        %v2334 = vsub.s32 0, %v2333
        %v2335 = vrot.slane %v2331, %v2334
        %v2336 = vmul.f32 %v1031, %v2335
        %v2337 = vmul.f32 %v1032, %v2335
        %v2338 = vmul.f32 %v1033, %v2335
        %v2339 = vadd.f32 %v2328, %v2336
        %v2340 = vadd.f32 %v2329, %v2337
        %v2341 = vadd.f32 %v2330, %v2338
        %v2342 = vld [vmem:[%s3 + $0x4c] sm:$0x1]
        %v2343 = vlaneseq
        %v2344 = vshrl.u32 %v2343, 7
        %v2345 = vsub.s32 0, %v2344
        %v2346 = vrot.slane %v2342, %v2345
        %v2347 = vmul.f32 %v1049, %v2346
        %v2348 = vmul.f32 %v1050, %v2346
        %v2349 = vmul.f32 %v1051, %v2346
        %v2350 = vadd.f32 %v2339, %v2347
        %v2351 = vadd.f32 %v2340, %v2348
        %v2352 = vadd.f32 %v2341, %v2349
        %v2353 = vld [vmem:[%s3 + $0x57] sm:$0x1]
        %v2354 = vlaneseq
        %v2355 = vshrl.u32 %v2354, 7
        %v2356 = vsub.s32 0, %v2355
        %v2357 = vrot.slane %v2353, %v2356
        %v2358 = vmul.f32 %v1067, %v2357
        %v2359 = vmul.f32 %v1068, %v2357
        %v2360 = vmul.f32 %v1069, %v2357
        %v2361 = vadd.f32 %v2350, %v2358
        %v2362 = vadd.f32 %v2351, %v2359
        %v2363 = vadd.f32 %v2352, %v2360
        %v2364 = vld [vmem:[%s3 + $0x62] sm:$0x1]
        %v2365 = vlaneseq
        %v2366 = vshrl.u32 %v2365, 7
        %v2367 = vsub.s32 0, %v2366
        %v2368 = vrot.slane %v2364, %v2367
        %v2369 = vmul.f32 %v1085, %v2368
        %v2370 = vmul.f32 %v1086, %v2368
        %v2371 = vmul.f32 %v1087, %v2368
        %v2372 = vadd.f32 %v2361, %v2369
        %v2373 = vadd.f32 %v2362, %v2370
        %v2374 = vadd.f32 %v2363, %v2371
        %v2375 = vld [vmem:[%s3 + $0x6d] sm:$0x1]
        %v2376 = vlaneseq
        %v2377 = vshrl.u32 %v2376, 7
        %v2378 = vsub.s32 0, %v2377
        %v2379 = vrot.slane %v2375, %v2378
        %v2380 = vmul.f32 %v1103, %v2379
        %v2381 = vmul.f32 %v1104, %v2379
        %v2382 = vmul.f32 %v1105, %v2379
        %v2383 = vadd.f32 %v2372, %v2380
        %v2384 = vadd.f32 %v2373, %v2381
        %v2385 = vadd.f32 %v2374, %v2382
        %v2386 = vld [vmem:[%s3 + $0x78] sm:$0x1]
        %v2387 = vlaneseq
        %v2388 = vshrl.u32 %v2387, 7
        %v2389 = vsub.s32 0, %v2388
        %v2390 = vrot.slane %v2386, %v2389
        %v2391 = vmul.f32 %v1121, %v2390
        %v2392 = vmul.f32 %v1122, %v2390
        %v2393 = vmul.f32 %v1123, %v2390
        %v2394 = vadd.f32 %v2383, %v2391
        %v2395 = vadd.f32 %v2384, %v2392
        %v2396 = vadd.f32 %v2385, %v2393
        %v2397 = vrot.slane %v2394, 5
        %v2398 = vrot.slane %v2395, 5
        %v2399 = vrot.slane %v2396, 5
        %v2400 = vsel %vm1398, %v2398, %v2399
        %v2401 = vsel %vm1398, %v2397, %v2398
        %v2402 = vadd.f32 %v2274, %v2401
        %v2403 = vadd.f32 %v2275, %v2400
        %s2404 = smul.u32 %s933, 16
        %s2405 = scalar_lea.vmem [#allocation3], %s2404
        %2406 = vst.msk [vmem:[%s2405] sm:$0xff] %vm835, %v2402
        %2407 = vst.msk [vmem:[%s2405 + $0x8] sm:$0xff] %vm835, %v2403
      $region61: #{tpu_custom_call.1} parent=47 // loop_footer
        %s937 = sadd.s32 1, %s933
      $region62: #{tpu_custom_call.1} parent=47 // loop_footer_branch
        %932 = sbr.rel target = $region58
      $region63: #{tpu_custom_call.1} parent=47 // loop_exit
        _
      %v2408 = vld [vmem:[#allocation3] sm:$0xff]
      %v2409 = vld [vmem:[#allocation3 + $0x8] sm:$0xff]
      %v2410 = vld [vmem:[#allocation3 + $0x10] sm:$0xff]
      %v2411 = vld [vmem:[#allocation3 + $0x18] sm:$0xff]
      %v2412 = vld [vmem:[#allocation3 + $0x20] sm:$0xff]
      %v2413 = vld [vmem:[#allocation3 + $0x28] sm:$0xff]
      %v2414 = vld [vmem:[#allocation3 + $0x30] sm:$0xff]
      %v2415 = vld [vmem:[#allocation3 + $0x38] sm:$0xff]
      %v2416 = vld [vmem:[#allocation3 + $0x40] sm:$0xff]
      %v2417 = vld [vmem:[#allocation3 + $0x48] sm:$0xff]
      %v2418 = vld [vmem:[#allocation3 + $0x50] sm:$0xff]
      %v2419 = vld [vmem:[#allocation3 + $0x58] sm:$0xff]
      %v2420 = vld [vmem:[#allocation3 + $0x60] sm:$0xff]
      %v2421 = vld [vmem:[#allocation3 + $0x68] sm:$0xff]
      %v2422 = vld [vmem:[#allocation3 + $0x70] sm:$0xff]
      %v2423 = vld [vmem:[#allocation3 + $0x78] sm:$0xff]
      %v2424 = vld [vmem:[#allocation3 + $0x80] sm:$0xff]
      %v2425 = vld [vmem:[#allocation3 + $0x88] sm:$0xff]
      %v2426 = vld [vmem:[#allocation3 + $0x90] sm:$0xff]
      %v2427 = vld [vmem:[#allocation3 + $0x98] sm:$0xff]
      %v2428 = vld [vmem:[#allocation3 + $0xa0] sm:$0xff]
      %v2429 = vld [vmem:[#allocation3 + $0xa8] sm:$0xff]
      %v2430 = vld [vmem:[#allocation3 + $0xb0] sm:$0xff]
      %v2431 = vld [vmem:[#allocation3 + $0xb8] sm:$0xff]
      %v2432 = vld [vmem:[#allocation3 + $0xc0] sm:$0xff]
      %v2433 = vld [vmem:[#allocation3 + $0xc8] sm:$0xff]
      %v2434 = vld [vmem:[#allocation3 + $0xd0] sm:$0xff]
      %v2435 = vld [vmem:[#allocation3 + $0xd8] sm:$0xff]
      %v2436 = vld [vmem:[#allocation3 + $0xe0] sm:$0xff]
      %v2437 = vld [vmem:[#allocation3 + $0xe8] sm:$0xff]
      %v2438 = vld [vmem:[#allocation3 + $0xf0] sm:$0xff]
      %v2439 = vld [vmem:[#allocation3 + $0xf8] sm:$0xff]
      %v2440 = vpack.c.bf16 %v2409, %v2408
      %v2441 = vpack.c.bf16 %v2411, %v2410
      %v2442 = vpack.c.bf16 %v2413, %v2412
      %v2443 = vpack.c.bf16 %v2415, %v2414
      %v2444 = vpack.c.bf16 %v2417, %v2416
      %v2445 = vpack.c.bf16 %v2419, %v2418
      %v2446 = vpack.c.bf16 %v2421, %v2420
      %v2447 = vpack.c.bf16 %v2423, %v2422
      %v2448 = vpack.c.bf16 %v2425, %v2424
      %v2449 = vpack.c.bf16 %v2427, %v2426
      %v2450 = vpack.c.bf16 %v2429, %v2428
      %v2451 = vpack.c.bf16 %v2431, %v2430
      %v2452 = vpack.c.bf16 %v2433, %v2432
      %v2453 = vpack.c.bf16 %v2435, %v2434
      %v2454 = vpack.c.bf16 %v2437, %v2436
      %v2455 = vpack.c.bf16 %v2439, %v2438
      %v2456 = vld [vmem:[%s4] sm:$0xf]
      %v2457 = vld [vmem:[%s4 + $0x4] sm:$0xf]
      %v2458 = vld [vmem:[%s5] sm:$0x1]
      %v2460 = vlaneseq
      %v2461 = vshrl.u32 %v2460, 7
      %v2462 = vsub.s32 0, %v2461
      %v2463 = vrot.slane %v2458, %v2462
      %v2467 = vunpack.c.l.b16 %v2456
      %v2468 = vunpack.c.l.b16 %v2457
      %v2469 = vpack.c.b16 %v2468, %v2467
      %v2472 = vsel %vm835, %v2440, 0
      %v2475 = vsel %vm835, %v2441, 0
      %v2478 = vsel %vm835, %v2442, 0
      %v2481 = vsel %vm835, %v2443, 0
      %v2484 = vsel %vm835, %v2444, 0
      %v2487 = vsel %vm835, %v2445, 0
      %v2490 = vsel %vm835, %v2446, 0
      %v2493 = vsel %vm835, %v2447, 0
      %v2496 = vsel %vm835, %v2448, 0
      %v2499 = vsel %vm835, %v2449, 0
      %v2502 = vsel %vm835, %v2450, 0
      %v2505 = vsel %vm835, %v2451, 0
      %v2508 = vsel %vm835, %v2452, 0
      %v2511 = vsel %vm835, %v2453, 0
      %v2514 = vsel %vm835, %v2454, 0
      %v2517 = vsel %vm835, %v2455, 0
      %2519 = vmatprep.subr.bf16.mxu0 0
      %2520 = vmatpush1.bf16.msra.mxu0 %v2469
      %2521 = vmatprep.subr.bf16.mxu0 0
      %2522 = vmatpush1.bf16.msra.mxu0 0
      %2523 = vmatprep.subr.bf16.mxu0 0
      %2524 = vmatpush1.bf16.msra.mxu0 0
      %2525 = vmatprep.subr.bf16.mxu0 0
      %2526 = vmatpush1.bf16.msra.mxu0 0
      %2527 = vmatprep.subr.bf16.mxu0 0
      %2528 = vmatpush1.bf16.msra.mxu0 0
      %2529 = vmatprep.subr.bf16.mxu0 0
      %2530 = vmatpush1.bf16.msra.mxu0 0
      %2531 = vmatprep.subr.bf16.mxu0 0
      %2532 = vmatpush1.bf16.msra.mxu0 0
      %2533 = vmatprep.subr.bf16.mxu0 0
      %2534 = vmatpush1.bf16.msra.mxu0 0
      %2535 = vmatprep.subr.bf16.mxu0 0
      %2536 = vmatpush1.bf16.msra.mxu0 0
      %2537 = vmatprep.subr.bf16.mxu0 0
      %2538 = vmatpush1.bf16.msra.mxu0 0
      %2539 = vmatprep.subr.bf16.mxu0 0
      %2540 = vmatpush1.bf16.msra.mxu0 0
      %2541 = vmatprep.subr.bf16.mxu0 0
      %2542 = vmatpush1.bf16.msra.mxu0 0
      %2543 = vmatprep.subr.bf16.mxu0 0
      %2544 = vmatpush1.bf16.msra.mxu0 0
      %2545 = vmatprep.subr.bf16.mxu0 0
      %2546 = vmatpush1.bf16.msra.mxu0 0
      %2547 = vmatprep.subr.bf16.mxu0 0
      %2548 = vmatpush1.bf16.msra.mxu0 0
      %2549 = vmatprep.subr.bf16.mxu0 0
      %2550 = vmatpush1.bf16.msra.mxu0 0
      %2551 = vmatprep.mubr.bf16.mxu0 0
      %2552 = vmatmul.mubr.bf16.gmra.mrb[0].mxu0 %v2472
      %v2553 = vpop.f32.mrb[0].mxu0
      %v2554 = vadd.f32 %v2463, %v2553
      %v2555 = vpop.f32.mrb[0].mxu0
      %v2556 = vpop.f32.mrb[0].mxu0
      %v2557 = vadd.f32 %v2463, %v2556
      %v2558 = vpop.f32.mrb[0].mxu0
      %2559 = vmatprep.mubr.bf16.mxu0 0
      %2560 = vmatmul.mubr.bf16.gmra.mrb[0].mxu0 %v2475
      %v2561 = vpop.f32.mrb[0].mxu0
      %v2562 = vadd.f32 %v2463, %v2561
      %v2563 = vpop.f32.mrb[0].mxu0
      %v2564 = vpop.f32.mrb[0].mxu0
      %v2565 = vadd.f32 %v2463, %v2564
      %v2566 = vpop.f32.mrb[0].mxu0
      %2567 = vmatprep.mubr.bf16.mxu0 0
      %2568 = vmatmul.mubr.bf16.gmra.mrb[0].mxu0 %v2478
      %v2569 = vpop.f32.mrb[0].mxu0
      %v2570 = vadd.f32 %v2463, %v2569
      %v2571 = vpop.f32.mrb[0].mxu0
      %v2572 = vpop.f32.mrb[0].mxu0
      %v2573 = vadd.f32 %v2463, %v2572
      %v2574 = vpop.f32.mrb[0].mxu0
      %2575 = vmatprep.mubr.bf16.mxu0 0
      %2576 = vmatmul.mubr.bf16.gmra.mrb[0].mxu0 %v2481
      %v2577 = vpop.f32.mrb[0].mxu0
      %v2578 = vadd.f32 %v2463, %v2577
      %v2579 = vpop.f32.mrb[0].mxu0
      %v2580 = vpop.f32.mrb[0].mxu0
      %v2581 = vadd.f32 %v2463, %v2580
      %v2582 = vpop.f32.mrb[0].mxu0
      %2583 = vmatprep.mubr.bf16.mxu0 0
      %2584 = vmatmul.mubr.bf16.gmra.mrb[0].mxu0 %v2484
      %v2585 = vpop.f32.mrb[0].mxu0
      %v2586 = vadd.f32 %v2463, %v2585
      %v2587 = vpop.f32.mrb[0].mxu0
      %v2588 = vpop.f32.mrb[0].mxu0
      %v2589 = vadd.f32 %v2463, %v2588
      %v2590 = vpop.f32.mrb[0].mxu0
      %2591 = vmatprep.mubr.bf16.mxu0 0
      %2592 = vmatmul.mubr.bf16.gmra.mrb[0].mxu0 %v2487
      %v2593 = vpop.f32.mrb[0].mxu0
      %v2594 = vadd.f32 %v2463, %v2593
      %v2595 = vpop.f32.mrb[0].mxu0
      %v2596 = vpop.f32.mrb[0].mxu0
      %v2597 = vadd.f32 %v2463, %v2596
      %v2598 = vpop.f32.mrb[0].mxu0
      %2599 = vmatprep.mubr.bf16.mxu0 0
      %2600 = vmatmul.mubr.bf16.gmra.mrb[0].mxu0 %v2490
      %v2601 = vpop.f32.mrb[0].mxu0
      %v2602 = vadd.f32 %v2463, %v2601
      %v2603 = vpop.f32.mrb[0].mxu0
      %v2604 = vpop.f32.mrb[0].mxu0
      %v2605 = vadd.f32 %v2463, %v2604
      %v2606 = vpop.f32.mrb[0].mxu0
      %2607 = vmatprep.mubr.bf16.mxu0 0
      %2608 = vmatmul.mubr.bf16.gmra.mrb[0].mxu0 %v2493
      %v2609 = vpop.f32.mrb[0].mxu0
      %v2610 = vadd.f32 %v2463, %v2609
      %v2611 = vpop.f32.mrb[0].mxu0
      %v2612 = vpop.f32.mrb[0].mxu0
      %v2613 = vadd.f32 %v2463, %v2612
      %v2614 = vpop.f32.mrb[0].mxu0
      %2615 = vmatprep.mubr.bf16.mxu0 0
      %2616 = vmatmul.mubr.bf16.gmra.mrb[0].mxu0 %v2496
      %v2617 = vpop.f32.mrb[0].mxu0
      %v2618 = vadd.f32 %v2463, %v2617
      %v2619 = vpop.f32.mrb[0].mxu0
      %v2620 = vpop.f32.mrb[0].mxu0
      %v2621 = vadd.f32 %v2463, %v2620
      %v2622 = vpop.f32.mrb[0].mxu0
      %2623 = vmatprep.mubr.bf16.mxu0 0
      %2624 = vmatmul.mubr.bf16.gmra.mrb[0].mxu0 %v2499
      %v2625 = vpop.f32.mrb[0].mxu0
      %v2626 = vadd.f32 %v2463, %v2625
      %v2627 = vpop.f32.mrb[0].mxu0
      %v2628 = vpop.f32.mrb[0].mxu0
      %v2629 = vadd.f32 %v2463, %v2628
      %v2630 = vpop.f32.mrb[0].mxu0
      %2631 = vmatprep.mubr.bf16.mxu0 0
      %2632 = vmatmul.mubr.bf16.gmra.mrb[0].mxu0 %v2502
      %v2633 = vpop.f32.mrb[0].mxu0
      %v2634 = vadd.f32 %v2463, %v2633
      %v2635 = vpop.f32.mrb[0].mxu0
      %v2636 = vpop.f32.mrb[0].mxu0
      %v2637 = vadd.f32 %v2463, %v2636
      %v2638 = vpop.f32.mrb[0].mxu0
      %2639 = vmatprep.mubr.bf16.mxu0 0
      %2640 = vmatmul.mubr.bf16.gmra.mrb[0].mxu0 %v2505
      %v2641 = vpop.f32.mrb[0].mxu0
      %v2642 = vadd.f32 %v2463, %v2641
      %v2643 = vpop.f32.mrb[0].mxu0
      %v2644 = vpop.f32.mrb[0].mxu0
      %v2645 = vadd.f32 %v2463, %v2644
      %v2646 = vpop.f32.mrb[0].mxu0
      %2647 = vmatprep.mubr.bf16.mxu0 0
      %2648 = vmatmul.mubr.bf16.gmra.mrb[0].mxu0 %v2508
      %v2649 = vpop.f32.mrb[0].mxu0
      %v2650 = vadd.f32 %v2463, %v2649
      %v2651 = vpop.f32.mrb[0].mxu0
      %v2652 = vpop.f32.mrb[0].mxu0
      %v2653 = vadd.f32 %v2463, %v2652
      %v2654 = vpop.f32.mrb[0].mxu0
      %2655 = vmatprep.mubr.bf16.mxu0 0
      %2656 = vmatmul.mubr.bf16.gmra.mrb[0].mxu0 %v2511
      %v2657 = vpop.f32.mrb[0].mxu0
      %v2658 = vadd.f32 %v2463, %v2657
      %v2659 = vpop.f32.mrb[0].mxu0
      %v2660 = vpop.f32.mrb[0].mxu0
      %v2661 = vadd.f32 %v2463, %v2660
      %v2662 = vpop.f32.mrb[0].mxu0
      %2663 = vmatprep.mubr.bf16.mxu0 0
      %2664 = vmatmul.mubr.bf16.gmra.mrb[0].mxu0 %v2514
      %v2665 = vpop.f32.mrb[0].mxu0
      %v2666 = vadd.f32 %v2463, %v2665
      %v2667 = vpop.f32.mrb[0].mxu0
      %v2668 = vpop.f32.mrb[0].mxu0
      %v2669 = vadd.f32 %v2463, %v2668
      %v2670 = vpop.f32.mrb[0].mxu0
      %2671 = vmatprep.mubr.bf16.mxu0 0
      %2672 = vmatmul.mubr.bf16.gmra.mrb[0].mxu0 %v2517
      %v2673 = vpop.f32.mrb[0].mxu0
      %v2674 = vadd.f32 %v2463, %v2673
      %v2675 = vpop.f32.mrb[0].mxu0
      %v2676 = vpop.f32.mrb[0].mxu0
      %v2677 = vadd.f32 %v2463, %v2676
      %v2678 = vpop.f32.mrb[0].mxu0
      %2679 = vdwg.mxu0
      %v2680 = vld [vmem:[%s6] sm:$0x1]
      %v2682 = vlaneseq
      %v2683 = vshrl.u32 %v2682, 7
      %v2684 = vsub.s32 0, %v2683
      %v2685 = vrot.slane %v2680, %v2684
      %v2687 = vmul.f32 %v2554, %v2685
      %v2688 = vmul.f32 %v2557, %v2685
      %v2689 = vmul.f32 %v2562, %v2685
      %v2690 = vmul.f32 %v2565, %v2685
      %v2691 = vmul.f32 %v2570, %v2685
      %v2692 = vmul.f32 %v2573, %v2685
      %v2693 = vmul.f32 %v2578, %v2685
      %v2694 = vmul.f32 %v2581, %v2685
      %v2695 = vmul.f32 %v2586, %v2685
      %v2696 = vmul.f32 %v2589, %v2685
      %v2697 = vmul.f32 %v2594, %v2685
      %v2698 = vmul.f32 %v2597, %v2685
      %v2699 = vmul.f32 %v2602, %v2685
      %v2700 = vmul.f32 %v2605, %v2685
      %v2701 = vmul.f32 %v2610, %v2685
      %v2702 = vmul.f32 %v2613, %v2685
      %v2703 = vmul.f32 %v2618, %v2685
      %v2704 = vmul.f32 %v2621, %v2685
      %v2705 = vmul.f32 %v2626, %v2685
      %v2706 = vmul.f32 %v2629, %v2685
      %v2707 = vmul.f32 %v2634, %v2685
      %v2708 = vmul.f32 %v2637, %v2685
      %v2709 = vmul.f32 %v2642, %v2685
      %v2710 = vmul.f32 %v2645, %v2685
      %v2711 = vmul.f32 %v2650, %v2685
      %v2712 = vmul.f32 %v2653, %v2685
      %v2713 = vmul.f32 %v2658, %v2685
      %v2714 = vmul.f32 %v2661, %v2685
      %v2715 = vmul.f32 %v2666, %v2685
      %v2716 = vmul.f32 %v2669, %v2685
      %v2717 = vmul.f32 %v2674, %v2685
      %v2718 = vmul.f32 %v2677, %v2685
      %v2719 = vld [vmem:[%s305 + $0x50] sm:$0xff]
      %v2720 = vld [vmem:[%s305 + $0x58] sm:$0xff]
      %v2721 = vld [vmem:[%s305 + $0x60] sm:$0xff]
      %v2722 = vld [vmem:[%s305 + $0x68] sm:$0xff]
      %v2723 = vld [vmem:[%s305 + $0x70] sm:$0xff]
      %v2724 = vld [vmem:[%s305 + $0x78] sm:$0xff]
      %v2725 = vld [vmem:[%s305 + $0x80] sm:$0xff]
      %v2726 = vld [vmem:[%s305 + $0x88] sm:$0xff]
      %v2727 = vld [vmem:[%s305 + $0x90] sm:$0xff]
      %v2728 = vld [vmem:[%s305 + $0x98] sm:$0xff]
      %v2729 = vld [vmem:[%s305 + $0xa0] sm:$0xff]
      %v2730 = vld [vmem:[%s305 + $0xa8] sm:$0xff]
      %v2731 = vld [vmem:[%s305 + $0xb0] sm:$0xff]
      %v2732 = vld [vmem:[%s305 + $0xb8] sm:$0xff]
      %v2733 = vld [vmem:[%s305 + $0xc0] sm:$0xff]
      %v2734 = vld [vmem:[%s305 + $0xc8] sm:$0xff]
      %v2735 = vld [vmem:[%s305 + $0xd0] sm:$0xff]
      %v2736 = vld [vmem:[%s305 + $0xd8] sm:$0xff]
      %v2737 = vld [vmem:[%s305 + $0xe0] sm:$0xff]
      %v2738 = vld [vmem:[%s305 + $0xe8] sm:$0xff]
      %v2739 = vld [vmem:[%s305 + $0xf0] sm:$0xff]
      %v2740 = vld [vmem:[%s305 + $0xf8] sm:$0xff]
      %v2741 = vld [vmem:[%s305 + $0x100] sm:$0xff]
      %v2742 = vld [vmem:[%s305 + $0x108] sm:$0xff]
      %v2743 = vld [vmem:[%s305 + $0x110] sm:$0xff]
      %v2744 = vld [vmem:[%s305 + $0x118] sm:$0xff]
      %v2745 = vld [vmem:[%s305 + $0x120] sm:$0xff]
      %v2746 = vld [vmem:[%s305 + $0x128] sm:$0xff]
      %v2747 = vld [vmem:[%s305 + $0x130] sm:$0xff]
      %v2748 = vld [vmem:[%s305 + $0x138] sm:$0xff]
      %v2749 = vld [vmem:[%s305 + $0x140] sm:$0xff]
      %v2750 = vld [vmem:[%s305 + $0x148] sm:$0xff]
      %v2751 = vadd.f32 %v2687, %v2719
      %v2752 = vadd.f32 %v2688, %v2720
      %v2753 = vadd.f32 %v2689, %v2721
      %v2754 = vadd.f32 %v2690, %v2722
      %v2755 = vadd.f32 %v2691, %v2723
      %v2756 = vadd.f32 %v2692, %v2724
      %v2757 = vadd.f32 %v2693, %v2725
      %v2758 = vadd.f32 %v2694, %v2726
      %v2759 = vadd.f32 %v2695, %v2727
      %v2760 = vadd.f32 %v2696, %v2728
      %v2761 = vadd.f32 %v2697, %v2729
      %v2762 = vadd.f32 %v2698, %v2730
      %v2763 = vadd.f32 %v2699, %v2731
      %v2764 = vadd.f32 %v2700, %v2732
      %v2765 = vadd.f32 %v2701, %v2733
      %v2766 = vadd.f32 %v2702, %v2734
      %v2767 = vadd.f32 %v2703, %v2735
      %v2768 = vadd.f32 %v2704, %v2736
      %v2769 = vadd.f32 %v2705, %v2737
      %v2770 = vadd.f32 %v2706, %v2738
      %v2771 = vadd.f32 %v2707, %v2739
      %v2772 = vadd.f32 %v2708, %v2740
      %v2773 = vadd.f32 %v2709, %v2741
      %v2774 = vadd.f32 %v2710, %v2742
      %v2775 = vadd.f32 %v2711, %v2743
      %v2776 = vadd.f32 %v2712, %v2744
      %v2777 = vadd.f32 %v2713, %v2745
      %v2778 = vadd.f32 %v2714, %v2746
      %v2779 = vadd.f32 %v2715, %v2747
      %v2780 = vadd.f32 %v2716, %v2748
      %v2781 = vadd.f32 %v2717, %v2749
      %v2782 = vadd.f32 %v2718, %v2750
      %2783 = vst.msk [vmem:[%s314] sm:$0xff] %vm402, %v2751
      %2784 = vst.msk [vmem:[%s314 + $0x8] sm:$0xff] %vm402, %v2752
      %2785 = vst.msk [vmem:[%s314 + $0x10] sm:$0xff] %vm402, %v2753
      %2786 = vst.msk [vmem:[%s314 + $0x18] sm:$0xff] %vm402, %v2754
      %2787 = vst.msk [vmem:[%s314 + $0x20] sm:$0xff] %vm402, %v2755
      %2788 = vst.msk [vmem:[%s314 + $0x28] sm:$0xff] %vm402, %v2756
      %2789 = vst.msk [vmem:[%s314 + $0x30] sm:$0xff] %vm402, %v2757
      %2790 = vst.msk [vmem:[%s314 + $0x38] sm:$0xff] %vm402, %v2758
      %2791 = vst.msk [vmem:[%s314 + $0x40] sm:$0xff] %vm402, %v2759
      %2792 = vst.msk [vmem:[%s314 + $0x48] sm:$0xff] %vm402, %v2760
      %2793 = vst.msk [vmem:[%s314 + $0x50] sm:$0xff] %vm402, %v2761
      %2794 = vst.msk [vmem:[%s314 + $0x58] sm:$0xff] %vm402, %v2762
      %2795 = vst.msk [vmem:[%s314 + $0x60] sm:$0xff] %vm402, %v2763
      %2796 = vst.msk [vmem:[%s314 + $0x68] sm:$0xff] %vm402, %v2764
      %2797 = vst.msk [vmem:[%s314 + $0x70] sm:$0xff] %vm402, %v2765
      %2798 = vst.msk [vmem:[%s314 + $0x78] sm:$0xff] %vm402, %v2766
      %2799 = vst.msk [vmem:[%s314 + $0x80] sm:$0xff] %vm402, %v2767
      %2800 = vst.msk [vmem:[%s314 + $0x88] sm:$0xff] %vm402, %v2768
      %2801 = vst.msk [vmem:[%s314 + $0x90] sm:$0xff] %vm402, %v2769
      %2802 = vst.msk [vmem:[%s314 + $0x98] sm:$0xff] %vm402, %v2770
      %2803 = vst.msk [vmem:[%s314 + $0xa0] sm:$0xff] %vm402, %v2771
      %2804 = vst.msk [vmem:[%s314 + $0xa8] sm:$0xff] %vm402, %v2772
      %2805 = vst.msk [vmem:[%s314 + $0xb0] sm:$0xff] %vm402, %v2773
      %2806 = vst.msk [vmem:[%s314 + $0xb8] sm:$0xff] %vm402, %v2774
      %2807 = vst.msk [vmem:[%s314 + $0xc0] sm:$0xff] %vm402, %v2775
      %2808 = vst.msk [vmem:[%s314 + $0xc8] sm:$0xff] %vm402, %v2776
      %2809 = vst.msk [vmem:[%s314 + $0xd0] sm:$0xff] %vm402, %v2777
      %2810 = vst.msk [vmem:[%s314 + $0xd8] sm:$0xff] %vm402, %v2778
      %2811 = vst.msk [vmem:[%s314 + $0xe0] sm:$0xff] %vm402, %v2779
      %2812 = vst.msk [vmem:[%s314 + $0xe8] sm:$0xff] %vm402, %v2780
      %2813 = vst.msk [vmem:[%s314 + $0xf0] sm:$0xff] %vm402, %v2781
      %2814 = vst.msk [vmem:[%s314 + $0xf8] sm:$0xff] %vm402, %v2782
      %p2815 = scmp.lt.s32.totalorder %s22, 1
      %s2816 = scalar_select %p2815, %s22, 1
      %p2817 = scmp.lt.s32.totalorder %s23, 0
      %s2818 = scalar_select %p2817, %s23, 0
      %s2819 = smul.addr %s2818, 32
      %s2820 = smul.addr %s2816, 32
      %s2821 = sadd.s32 %s2819, %s2820
      %s2822 = smul.addr %s2821, 8
      %s2823 = scalar_lea.vmem %s7, %s2822
      // Predicated region
      $region64: #{tpu_custom_call.1} parent=47 // pred_check
        %p2824 = pneg %p204
      $region65: #{tpu_custom_call.1} parent=47 // pred_check_branch
        %2826 = sbr.rel (%p2824) target = $region67
      $region66: #{tpu_custom_call.1} parent=47 // pred_region
        _
      $region67: #{tpu_custom_call.1} parent=47 // pred_fallthru
        _
    $region48: #{tpu_custom_call.1} parent=5 // pred_fallthru
      _
    %p2827 = scmp.le.s32.totalorder 2, %s13
    // Predicated region
    $region68: #{tpu_custom_call.1} parent=5 // pred_check
      %p2828 = pneg %p2827
    $region69: #{tpu_custom_call.1} parent=5 // pred_check_branch
      %2830 = sbr.rel (%p2828) target = $region71
    $region70: #{tpu_custom_call.1} parent=5 // pred_region
      %s2831 = ssub.s32 %s13, 2
      // Predicated region
      $region72: #{tpu_custom_call.1} parent=70 // pred_check
        %p2832 = pneg %p210
      $region73: #{tpu_custom_call.1} parent=70 // pred_check_branch
        %2834 = sbr.rel (%p2832) target = $region75
      $region74: #{tpu_custom_call.1} parent=70 // pred_region
        %p2835 = scmp.lt.s32.totalorder %s24, 1
        %s2836 = scalar_select %p2835, %s24, 1
        %p2837 = scmp.lt.s32.totalorder %s25, 0
        %s2838 = scalar_select %p2837, %s25, 0
        %s2839 = smul.addr %s2838, 32
        %s2840 = smul.addr %s2836, 32
        %s2841 = sadd.s32 %s2839, %s2840
        %s2842 = smul.addr %s2841, 8
        %s2843 = scalar_lea.vmem %s7, %s2842
      $region75: #{tpu_custom_call.1} parent=70 // pred_fallthru
        _
    $region71: #{tpu_custom_call.1} parent=5 // pred_fallthru
      _
  $region6: #{tpu_custom_call.1} parent=0 // loop_footer
    %s17 = sadd.s32 1, %s13
  $region7: #{tpu_custom_call.1} parent=0 // loop_footer_branch
    %12 = sbr.rel target = $region3
  $region8: #{tpu_custom_call.1} parent=0 // loop_exit
    _

</llo_original>
